<compile_context>
chip_gen: v6e
topology: v6e:2x2x1
jax: 0.10.0
libtpu: 0.0.40
codegen_flags: <defaults>
</compile_context>

<pallas_src>
import functools

import jax
import jax.numpy as jnp
from jax import lax
from jax.experimental import pallas as pl
from jax.experimental.pallas import tpu as pltpu

EPS = 1e-5
LANE = 128


def _pad_to(n, m=LANE):
    return ((n + m - 1) // m) * m


def _pad_chan(a, axis, new):
    pad = [(0, 0)] * a.ndim
    pad[axis] = (0, new - a.shape[axis])
    return jnp.pad(a, pad)


def fold_bn(gamma, beta, mean, var):
    scale = gamma / jnp.sqrt(var + EPS)
    bias = beta - mean * scale
    return scale.reshape(1, -1), bias.reshape(1, -1)


def _vmem_limit_bytes():
    # v7x has 64 MiB VMEM per TensorCore, v5e/v6e have 128 MiB.  Leave headroom
    # for Mosaic's internal scratch, use the rest for deeper buffering.
    try:
        cap = int(pltpu.get_tpu_info().vmem_capacity_bytes)
    except Exception:
        cap = 64 * 1024 * 1024
    return int(min(96 * 1024 * 1024, max(cap - 16 * 1024 * 1024, 32 * 1024 * 1024)))


# --------------------------------------------------------------------------
# Fused bottleneck kernel (one grid step == one row tile of one image)
# --------------------------------------------------------------------------

def _bottleneck_kernel(*refs, stride, has_proj):
    if has_proj:
        (x_ref, w1_ref, b1_ref, w2_ref, b2_ref, w3_ref, b3_ref,
         wsc_ref, bsc_ref, o_ref, x1p_ref) = refs
    else:
        (x_ref, w1_ref, b1_ref, w2_ref, b2_ref, w3_ref, b3_ref,
         o_ref, x1p_ref) = refs

    _, _, th_in, W, cin_p = x_ref.shape            # tile input rows incl. halo
    _, th_out, wo, c4_p = o_ref.shape              # tile output rows
    wd_p = x1p_ref.shape[-1]
    s = stride

    def sp(off, size):
        # window honouring the conv stride (plain slice when stride == 1)
        return pl.ds(off, size) if s == 1 else pl.ds(off, size, s)

    xfull = x_ref[0, 0]                            # (th_in, W, cin_p) bf16

    # ---- conv1 (1x1, BN scale folded into weights) + ReLU over the tile -----
    a1 = jnp.dot(xfull.reshape(th_in * W, cin_p), w1_ref[...],
                 preferred_element_type=jnp.float32)
    a1 = jnp.maximum(a1 + b1_ref[...], 0.0)

    # Write interior into the column-padded scratch; zero only the two halo
    # columns (cheap, and correct regardless of which core ran the last step).
    zcol = jnp.zeros((th_in, 1, wd_p), jnp.bfloat16)
    x1p_ref[:, pl.ds(0, 1), :] = zcol
    x1p_ref[:, pl.ds(W + 1, 1), :] = zcol
    x1p_ref[:, pl.ds(1, W), :] = a1.reshape(th_in, W, wd_p).astype(jnp.bfloat16)

    # ---- conv2 (3x3, stride, pad=1, folded BN) + ReLU ------------------------
    # 3 column-shifted planes -> 9 aligned row-slab taps, f32 MXU accumulation.
    # TODO(synk): for stride=2, store planes split by column parity to avoid
    # strided sublane reads entirely.
    planes = [x1p_ref[:, sp(dx, wo), :] for dx in range(3)]   # (th_in, wo, wd_p)
    acc = None
    for dy in range(3):
        for dx in range(3):
            rows = planes[dx][dy:dy + (th_out - 1) * s + 1:s]  # (th_out, wo, wd_p)
            tap = rows.reshape(th_out * wo, wd_p)
            # TODO(synk): K-pack tap pairs to (M, 2*wd_p) matmuls to fill the
            # 256-deep MXU on v6e/v7x when wd_p == 128.
            d = jnp.dot(tap, w2_ref[dy * 3 + dx],
                        preferred_element_type=jnp.float32)
            acc = d if acc is None else acc + d
    a2 = jnp.maximum(acc + b2_ref[...], 0.0).astype(jnp.bfloat16)

    # ---- shortcut -------------------------------------------------------------
    if has_proj:
        xs = xfull[1:1 + (th_out - 1) * s + 1:s, 0:(wo - 1) * s + 1:s, :]
        sc = jnp.dot(xs.reshape(th_out * wo, cin_p), wsc_ref[...],
                     preferred_element_type=jnp.float32) + bsc_ref[...]
    else:
        # identity: stride == 1 and cin_p == c4_p (padded lanes are zero)
        sc = xfull[1:1 + th_out].reshape(th_out * wo, c4_p).astype(jnp.float32)

    # ---- conv3 (1x1, folded BN) + residual add + ReLU, bf16 store -------------
    a3 = jnp.dot(a2, w3_ref[...], preferred_element_type=jnp.float32)
    out = jnp.maximum(a3 + b3_ref[...] + sc, 0.0)
    o_ref[...] = out.reshape(1, th_out, wo, c4_p).astype(o_ref.dtype)


# --------------------------------------------------------------------------
# Host wrapper
# --------------------------------------------------------------------------

def bottleneck_forward(x_nchw, p, *, stride=1, groups=1, row_tile=8):
    # TODO(synk): grouped 3x3 conv (groups > 1) would need block-diagonal matmuls.
    assert groups == 1, "only groups=1 implemented"
    x = jnp.transpose(x_nchw, (0, 2, 3, 1))                    # NHWC
    N, H, W, cin = x.shape
    width = p["w1"].shape[-1]
    cout4 = p["w3"].shape[-1]
    has_proj = "w_sc" in p
    if not has_proj:
        assert stride == 1 and cin == cout4

    cin_p, wd_p, c4_p = _pad_to(cin), _pad_to(width), _pad_to(cout4)
    Ho = (H - 1) // stride + 1
    Wo = (W - 1) // stride + 1

    # Row tiling: th_out output rows per grid step (largest divisor of Ho that
    # is <= row_tile).  Each tile's input window carries a 1-row conv halo on
    # both sides; conv1 (a cheap 1x1) is recomputed on the halo rows.
    th_out = max(d for d in range(1, min(row_tile, Ho) + 1) if Ho % d == 0)
    nt = Ho // th_out
    th_in = (th_out - 1) * stride + 3

    # Host-side prep: zero-pad channels to lane multiples, cast to bf16 once,
    # build overlapping row windows (halo) so kernel blocks stay non-overlapping.
    xb = _pad_chan(x, 3, cin_p).astype(jnp.bfloat16)
    xpad = jnp.pad(xb, ((0, 0), (1, 1), (0, 0), (0, 0)))        # conv2 pad=1 in H
    x_tiles = jnp.stack(
        [lax.slice_in_dim(xpad, t * th_out * stride,
                          t * th_out * stride + th_in, axis=1)
         for t in range(nt)], axis=1)                           # (N,nt,th_in,W,cin_p)

    # Fold BN scale into the f32 conv weights (output-channel axis) before the
    # bf16 cast; only the f32 bias add stays inside the kernel.
    s1, b1 = fold_bn(*p["bn1"])
    s2, b2 = fold_bn(*p["bn2"])
    s3, b3 = fold_bn(*p["bn3"])
    w1 = p["w1"].reshape(cin, width) * s1
    w2 = p["w2"].reshape(9, width, width) * s2
    w3 = p["w3"].reshape(width, cout4) * s3
    w1 = _pad_chan(_pad_chan(w1, 0, cin_p), 1, wd_p).astype(jnp.bfloat16)
    w2 = _pad_chan(_pad_chan(w2, 1, wd_p), 2, wd_p).astype(jnp.bfloat16)
    w3 = _pad_chan(_pad_chan(w3, 0, wd_p), 1, c4_p).astype(jnp.bfloat16)
    b1 = _pad_chan(b1, 1, wd_p)
    b2 = _pad_chan(b2, 1, wd_p)
    b3 = _pad_chan(b3, 1, c4_p)

    def const_spec(a):
        # Block == whole array, block index constant across the grid
        # -> stays VMEM-resident, no per-step re-DMA.
        nd = a.ndim
        return pl.BlockSpec(a.shape, lambda n, t, _nd=nd: (0,) * _nd)

    ins = [x_tiles, w1, b1, w2, b2, w3, b3]
    # TODO(synk): consider pipeline_mode=pl.Buffered(3) on the x spec if the
    # per-tile input DMA shows up exposed on v7x.
    in_specs = ([pl.BlockSpec((1, 1, th_in, W, cin_p),
                              lambda n, t: (n, t, 0, 0, 0))]
                + [const_spec(a) for a in ins[1:]])

    if has_proj:
        ssc, bsc = fold_bn(*p["bn_sc"])
        wsc = p["w_sc"].reshape(cin, cout4) * ssc
        wsc = _pad_chan(_pad_chan(wsc, 0, cin_p), 1, c4_p).astype(jnp.bfloat16)
        bsc = _pad_chan(bsc, 1, c4_p)
        ins += [wsc, bsc]
        in_specs += [const_spec(wsc), const_spec(bsc)]

    flops = (2 * N * H * W * cin_p * wd_p
             + 2 * N * Ho * Wo * (9 * wd_p * wd_p + wd_p * c4_p))
    if has_proj:
        flops += 2 * N * Ho * Wo * cin_p * c4_p
    bytes_accessed = (sum(int(a.size) * a.dtype.itemsize for a in ins)
                      + N * Ho * Wo * c4_p * 2)                 # bf16 output

    out = pl.pallas_call(
        functools.partial(_bottleneck_kernel, stride=stride, has_proj=has_proj),
        grid=(N, nt),
        in_specs=in_specs,
        out_specs=pl.BlockSpec((1, th_out, Wo, c4_p), lambda n, t: (n, t, 0, 0)),
        out_shape=jax.ShapeDtypeStruct((N, Ho, Wo, c4_p), jnp.bfloat16),
        scratch_shapes=[pltpu.VMEM((th_in, W + 2, wd_p), jnp.bfloat16)],
        compiler_params=pltpu.CompilerParams(
            dimension_semantics=("parallel", "parallel"),
            vmem_limit_bytes=_vmem_limit_bytes()),
        cost_estimate=pl.CostEstimate(
            flops=int(flops), transcendentals=0,
            bytes_accessed=int(bytes_accessed)),
    )(*ins)

    out = out[..., :cout4]                                      # drop lane padding
    return jnp.transpose(out, (0, 3, 1, 2))                     # NCHW, bf16


# --------------------------------------------------------------------------
# Parameter init (deterministic "pretend-trained" weights / BN stats)
# --------------------------------------------------------------------------

def init_bottleneck_params(key, inchannel, outchannel, stride=1, groups=1,
                           base_width=64):
    width = int(outchannel * (base_width / 64.0)) * groups
    cout4 = outchannel * 4
    keys = jax.random.split(key, 8)

    def conv_w(k, kh, kw, cin, cout):
        return 0.1 * jax.random.normal(k, (kh, kw, cin, cout), jnp.float32)

    def bn_p(k, c):
        k1, k2, k3, k4 = jax.random.split(k, 4)
        gamma = 1.0 + 0.1 * jax.random.normal(k1, (c,), jnp.float32)
        beta = 0.1 * jax.random.normal(k2, (c,), jnp.float32)
        mean = 0.05 * jax.random.normal(k3, (c,), jnp.float32)
        var = 0.5 + jnp.abs(jax.random.normal(k4, (c,), jnp.float32))
        return (gamma, beta, mean, var)

    p = {
        "w1": conv_w(keys[0], 1, 1, inchannel, width), "bn1": bn_p(keys[1], width),
        "w2": conv_w(keys[2], 3, 3, width, width), "bn2": bn_p(keys[3], width),
        "w3": conv_w(keys[4], 1, 1, width, cout4), "bn3": bn_p(keys[5], cout4),
    }
    if stride != 1 or inchannel != cout4:
        p["w_sc"] = conv_w(keys[6], 1, 1, inchannel, cout4)
        p["bn_sc"] = bn_p(keys[7], cout4)
    return p


# --------------------------------------------------------------------------
# Pure-JAX reference (lax.conv, f32) for correctness check
# --------------------------------------------------------------------------

def reference_forward(x_nchw, p, *, stride=1, groups=1):
    x = jnp.transpose(x_nchw, (0, 2, 3, 1)).astype(jnp.float32)
    dn = ("NHWC", "HWIO", "NHWC")

    def conv(y, w, s, pad):
        return lax.conv_general_dilated(y, w, (s, s), [(pad, pad), (pad, pad)],
                                        dimension_numbers=dn)

    def bn(y, params):
        scale, bias = fold_bn(*params)
        return y * scale + bias

    h = jax.nn.relu(bn(conv(x, p["w1"], 1, 0), p["bn1"]))
    h = jax.nn.relu(bn(conv(h, p["w2"], stride, 1), p["bn2"]))
    h = bn(conv(h, p["w3"], 1, 0), p["bn3"])
    if "w_sc" in p:
        sc = bn(conv(x, p["w_sc"], stride, 0), p["bn_sc"])
    else:
        sc = x
    out = jax.nn.relu(h + sc)
    return jnp.transpose(out, (0, 3, 1, 2))


# --------------------------------------------------------------------------

if __name__ == "__main__":
    key = jax.random.PRNGKey(0)
    kx1, kp1, kx2, kp2 = jax.random.split(key, 4)

    # Config 1: projection shortcut; Ho=16 with row_tile=8 -> 2 row tiles
    # (exercises the multi-tile halo path).
    N, Cin, H, W = 2, 4, 16, 16
    outchannel, stride = 4, 1
    x = jax.random.normal(kx1, (N, Cin, H, W), jnp.float32)
    params = init_bottleneck_params(kp1, Cin, outchannel, stride)
    out = jax.block_until_ready(bottleneck_forward(x, params, stride=stride))
    ref = reference_forward(x, params, stride=stride)
    assert out.shape == (N, outchannel * 4, H, W), out.shape
    err1 = float(jnp.max(jnp.abs(out.astype(jnp.float32) - ref)))
    assert err1 < 1e-1, err1  # bf16 matmul inputs + bf16 output, f32 accumulation

    # Config 2: identity shortcut (inchannel == expansion*outchannel, stride=1).
    N2, Cin2, H2, W2, out2 = 2, 16, 8, 8, 4
    x2 = jax.random.normal(kx2, (N2, Cin2, H2, W2), jnp.float32)
    params2 = init_bottleneck_params(kp2, Cin2, out2, 1)
    o2 = jax.block_until_ready(bottleneck_forward(x2, params2, stride=1))
    r2 = reference_forward(x2, params2, stride=1)
    assert o2.shape == (N2, out2 * 4, H2, W2), o2.shape
    err2 = float(jnp.max(jnp.abs(o2.astype(jnp.float32) - r2)))
    assert err2 < 1e-1, err2

    print("KERNEL_OK")
</pallas_src>

<mosaic_0001>
module attributes {stable_mosaic.version = 11 : i64} {
  func.func @_bottleneck_kernel(%arg0: i32, %arg1: i32, %arg2: memref<1x1x10x16x128xbf16, #tpu.memory_space<vmem>>, %arg3: memref<128x128xbf16, #tpu.memory_space<vmem>>, %arg4: memref<1x128xf32, #tpu.memory_space<vmem>>, %arg5: memref<9x128x128xbf16, #tpu.memory_space<vmem>>, %arg6: memref<1x128xf32, #tpu.memory_space<vmem>>, %arg7: memref<128x128xbf16, #tpu.memory_space<vmem>>, %arg8: memref<1x128xf32, #tpu.memory_space<vmem>>, %arg9: memref<128x128xbf16, #tpu.memory_space<vmem>>, %arg10: memref<1x128xf32, #tpu.memory_space<vmem>>, %arg11: memref<1x8x16x128xbf16, #tpu.memory_space<vmem>>, %arg12: memref<10x18x128xbf16, #tpu.memory_space<vmem>>) attributes {dimension_semantics = [#tpu.dimension_semantics<parallel>, #tpu.dimension_semantics<parallel>], iteration_bounds = array<i64: 2, 2>, scalar_prefetch = 0 : i64, scratch_operands = 1 : i64, tpu.core_type = #tpu.core_type<tc>, window_params = [{transform_indices = @transform_0, window_bounds = array<i64: 1, 1, 10, 16, 128>}, {pipeline_mode = #tpu.pipeline_mode<synchronous>, transform_indices = @transform_1, window_bounds = array<i64: 128, 128>}, {pipeline_mode = #tpu.pipeline_mode<synchronous>, transform_indices = @transform_2, window_bounds = array<i64: 1, 128>}, {pipeline_mode = #tpu.pipeline_mode<synchronous>, transform_indices = @transform_3, window_bounds = array<i64: 9, 128, 128>}, {pipeline_mode = #tpu.pipeline_mode<synchronous>, transform_indices = @transform_4, window_bounds = array<i64: 1, 128>}, {pipeline_mode = #tpu.pipeline_mode<synchronous>, transform_indices = @transform_5, window_bounds = array<i64: 128, 128>}, {pipeline_mode = #tpu.pipeline_mode<synchronous>, transform_indices = @transform_6, window_bounds = array<i64: 1, 128>}, {pipeline_mode = #tpu.pipeline_mode<synchronous>, transform_indices = @transform_7, window_bounds = array<i64: 128, 128>}, {pipeline_mode = #tpu.pipeline_mode<synchronous>, transform_indices = @transform_8, window_bounds = array<i64: 1, 128>}, {transform_indices = @transform_9, window_bounds = array<i64: 1, 8, 16, 128>}]} {
    %c0 = arith.constant 0 : index
    %c0_0 = arith.constant 0 : index
    %c0_1 = arith.constant 0 : index
    %c0_2 = arith.constant 0 : index
    %c0_3 = arith.constant 0 : index
    %0 = vector.load %arg2[%c0, %c0_0, %c0_1, %c0_2, %c0_3] : memref<1x1x10x16x128xbf16, #tpu.memory_space<vmem>>, vector<1x1x10x16x128xbf16>
    %1 = vector.shape_cast %0 : vector<1x1x10x16x128xbf16> to vector<10x16x128xbf16>
    %2 = vector.shape_cast %1 : vector<10x16x128xbf16> to vector<160x128xbf16>
    %c0_4 = arith.constant 0 : index
    %c0_5 = arith.constant 0 : index
    %3 = vector.load %arg3[%c0_4, %c0_5] : memref<128x128xbf16, #tpu.memory_space<vmem>>, vector<128x128xbf16>
    %cst = arith.constant dense<0.000000e+00> : vector<160x128xf32>
    %4 = tpu.matmul %2, %3, %cst {dimension_numbers = #tpu.dot_dimension_numbers<[1], [0], [0], [1], [0, 0, 1, 1], [], []>} : vector<160x128xbf16>, vector<128x128xbf16>, vector<160x128xf32> -> vector<160x128xf32>
    %c0_6 = arith.constant 0 : index
    %c0_7 = arith.constant 0 : index
    %5 = vector.load %arg4[%c0_6, %c0_7] : memref<1x128xf32, #tpu.memory_space<vmem>>, vector<1x128xf32>
    %6 = vector.broadcast %5 : vector<1x128xf32> to vector<160x128xf32>
    %7 = arith.addf %4, %6 : vector<160x128xf32>
    %cst_8 = arith.constant 0.000000e+00 : f32
    %8 = vector.broadcast %cst_8 : f32 to vector<160x128xf32>
    %9 = arith.maximumf %7, %8 : vector<160x128xf32>
    %cst_9 = arith.constant 0.000000e+00 : bf16
    %10 = vector.broadcast %cst_9 : bf16 to vector<10x1x128xbf16>
    %c0_10 = arith.constant 0 : index
    %c0_11 = arith.constant 0 : index
    %c0_12 = arith.constant 0 : index
    %11 = vector.load %arg12[%c0_10, %c0_11, %c0_12] : memref<10x18x128xbf16, #tpu.memory_space<vmem>>, vector<10x1x128xbf16>
    tpu.vector_store %arg12[%c0_10, %c0_11, %c0_12], %10 {strides = array<i32>} : memref<10x18x128xbf16, #tpu.memory_space<vmem>>, vector<10x1x128xbf16>,
    %c0_13 = arith.constant 0 : index
    %c17 = arith.constant 17 : index
    %c0_14 = arith.constant 0 : index
    %12 = vector.load %arg12[%c0_13, %c17, %c0_14] : memref<10x18x128xbf16, #tpu.memory_space<vmem>>, vector<10x1x128xbf16>
    tpu.vector_store %arg12[%c0_13, %c17, %c0_14], %10 {strides = array<i32>} : memref<10x18x128xbf16, #tpu.memory_space<vmem>>, vector<10x1x128xbf16>,
    %13 = vector.shape_cast %9 : vector<160x128xf32> to vector<10x16x128xf32>
    %14 = arith.truncf %13 : vector<10x16x128xf32> to vector<10x16x128xbf16>
    %c0_15 = arith.constant 0 : index
    %c1 = arith.constant 1 : index
    %c0_16 = arith.constant 0 : index
    %15 = vector.load %arg12[%c0_15, %c1, %c0_16] : memref<10x18x128xbf16, #tpu.memory_space<vmem>>, vector<10x16x128xbf16>
    tpu.vector_store %arg12[%c0_15, %c1, %c0_16], %14 {strides = array<i32>} : memref<10x18x128xbf16, #tpu.memory_space<vmem>>, vector<10x16x128xbf16>,
    %c0_17 = arith.constant 0 : index
    %c0_18 = arith.constant 0 : index
    %c0_19 = arith.constant 0 : index
    %16 = vector.load %arg12[%c0_17, %c0_18, %c0_19] : memref<10x18x128xbf16, #tpu.memory_space<vmem>>, vector<10x16x128xbf16>
    %c0_20 = arith.constant 0 : index
    %c1_21 = arith.constant 1 : index
    %c0_22 = arith.constant 0 : index
    %17 = vector.load %arg12[%c0_20, %c1_21, %c0_22] : memref<10x18x128xbf16, #tpu.memory_space<vmem>>, vector<10x16x128xbf16>
    %c0_23 = arith.constant 0 : index
    %c2 = arith.constant 2 : index
    %c0_24 = arith.constant 0 : index
    %18 = vector.load %arg12[%c0_23, %c2, %c0_24] : memref<10x18x128xbf16, #tpu.memory_space<vmem>>, vector<10x16x128xbf16>
    %19 = vector.extract_strided_slice %16 {offsets = [0, 0, 0], sizes = [8, 16, 128], strides = [1, 1, 1]} : vector<10x16x128xbf16> to vector<8x16x128xbf16>
    %20 = vector.shape_cast %19 : vector<8x16x128xbf16> to vector<128x128xbf16>
    %c0_25 = arith.constant 0 : index
    %c0_26 = arith.constant 0 : index
    %c0_27 = arith.constant 0 : index
    %21 = vector.load %arg5[%c0_25, %c0_26, %c0_27] : memref<9x128x128xbf16, #tpu.memory_space<vmem>>, vector<1x128x128xbf16>
    %22 = vector.shape_cast %21 : vector<1x128x128xbf16> to vector<128x128xbf16>
    %cst_28 = arith.constant dense<0.000000e+00> : vector<128x128xf32>
    %23 = tpu.matmul %20, %22, %cst_28 {dimension_numbers = #tpu.dot_dimension_numbers<[1], [0], [0], [1], [0, 0, 1, 1], [], []>} : vector<128x128xbf16>, vector<128x128xbf16>, vector<128x128xf32> -> vector<128x128xf32>
    %24 = vector.extract_strided_slice %17 {offsets = [0, 0, 0], sizes = [8, 16, 128], strides = [1, 1, 1]} : vector<10x16x128xbf16> to vector<8x16x128xbf16>
    %25 = vector.shape_cast %24 : vector<8x16x128xbf16> to vector<128x128xbf16>
    %c1_29 = arith.constant 1 : index
    %c0_30 = arith.constant 0 : index
    %c0_31 = arith.constant 0 : index
    %26 = vector.load %arg5[%c1_29, %c0_30, %c0_31] : memref<9x128x128xbf16, #tpu.memory_space<vmem>>, vector<1x128x128xbf16>
    %27 = vector.shape_cast %26 : vector<1x128x128xbf16> to vector<128x128xbf16>
    %cst_32 = arith.constant dense<0.000000e+00> : vector<128x128xf32>
    %28 = tpu.matmul %25, %27, %cst_32 {dimension_numbers = #tpu.dot_dimension_numbers<[1], [0], [0], [1], [0, 0, 1, 1], [], []>} : vector<128x128xbf16>, vector<128x128xbf16>, vector<128x128xf32> -> vector<128x128xf32>
    %29 = arith.addf %23, %28 : vector<128x128xf32>
    %30 = vector.extract_strided_slice %18 {offsets = [0, 0, 0], sizes = [8, 16, 128], strides = [1, 1, 1]} : vector<10x16x128xbf16> to vector<8x16x128xbf16>
    %31 = vector.shape_cast %30 : vector<8x16x128xbf16> to vector<128x128xbf16>
    %c2_33 = arith.constant 2 : index
    %c0_34 = arith.constant 0 : index
    %c0_35 = arith.constant 0 : index
    %32 = vector.load %arg5[%c2_33, %c0_34, %c0_35] : memref<9x128x128xbf16, #tpu.memory_space<vmem>>, vector<1x128x128xbf16>
    %33 = vector.shape_cast %32 : vector<1x128x128xbf16> to vector<128x128xbf16>
    %cst_36 = arith.constant dense<0.000000e+00> : vector<128x128xf32>
    %34 = tpu.matmul %31, %33, %cst_36 {dimension_numbers = #tpu.dot_dimension_numbers<[1], [0], [0], [1], [0, 0, 1, 1], [], []>} : vector<128x128xbf16>, vector<128x128xbf16>, vector<128x128xf32> -> vector<128x128xf32>
    %35 = arith.addf %29, %34 : vector<128x128xf32>
    %36 = vector.extract_strided_slice %16 {offsets = [1, 0, 0], sizes = [8, 16, 128], strides = [1, 1, 1]} : vector<10x16x128xbf16> to vector<8x16x128xbf16>
    %37 = vector.shape_cast %36 : vector<8x16x128xbf16> to vector<128x128xbf16>
    %c3 = arith.constant 3 : index
    %c0_37 = arith.constant 0 : index
    %c0_38 = arith.constant 0 : index
    %38 = vector.load %arg5[%c3, %c0_37, %c0_38] : memref<9x128x128xbf16, #tpu.memory_space<vmem>>, vector<1x128x128xbf16>
    %39 = vector.shape_cast %38 : vector<1x128x128xbf16> to vector<128x128xbf16>
    %cst_39 = arith.constant dense<0.000000e+00> : vector<128x128xf32>
    %40 = tpu.matmul %37, %39, %cst_39 {dimension_numbers = #tpu.dot_dimension_numbers<[1], [0], [0], [1], [0, 0, 1, 1], [], []>} : vector<128x128xbf16>, vector<128x128xbf16>, vector<128x128xf32> -> vector<128x128xf32>
    %41 = arith.addf %35, %40 : vector<128x128xf32>
    %42 = vector.extract_strided_slice %17 {offsets = [1, 0, 0], sizes = [8, 16, 128], strides = [1, 1, 1]} : vector<10x16x128xbf16> to vector<8x16x128xbf16>
    %43 = vector.shape_cast %42 : vector<8x16x128xbf16> to vector<128x128xbf16>
    %c4 = arith.constant 4 : index
    %c0_40 = arith.constant 0 : index
    %c0_41 = arith.constant 0 : index
    %44 = vector.load %arg5[%c4, %c0_40, %c0_41] : memref<9x128x128xbf16, #tpu.memory_space<vmem>>, vector<1x128x128xbf16>
    %45 = vector.shape_cast %44 : vector<1x128x128xbf16> to vector<128x128xbf16>
    %cst_42 = arith.constant dense<0.000000e+00> : vector<128x128xf32>
    %46 = tpu.matmul %43, %45, %cst_42 {dimension_numbers = #tpu.dot_dimension_numbers<[1], [0], [0], [1], [0, 0, 1, 1], [], []>} : vector<128x128xbf16>, vector<128x128xbf16>, vector<128x128xf32> -> vector<128x128xf32>
    %47 = arith.addf %41, %46 : vector<128x128xf32>
    %48 = vector.extract_strided_slice %18 {offsets = [1, 0, 0], sizes = [8, 16, 128], strides = [1, 1, 1]} : vector<10x16x128xbf16> to vector<8x16x128xbf16>
    %49 = vector.shape_cast %48 : vector<8x16x128xbf16> to vector<128x128xbf16>
    %c5 = arith.constant 5 : index
    %c0_43 = arith.constant 0 : index
    %c0_44 = arith.constant 0 : index
    %50 = vector.load %arg5[%c5, %c0_43, %c0_44] : memref<9x128x128xbf16, #tpu.memory_space<vmem>>, vector<1x128x128xbf16>
    %51 = vector.shape_cast %50 : vector<1x128x128xbf16> to vector<128x128xbf16>
    %cst_45 = arith.constant dense<0.000000e+00> : vector<128x128xf32>
    %52 = tpu.matmul %49, %51, %cst_45 {dimension_numbers = #tpu.dot_dimension_numbers<[1], [0], [0], [1], [0, 0, 1, 1], [], []>} : vector<128x128xbf16>, vector<128x128xbf16>, vector<128x128xf32> -> vector<128x128xf32>
    %53 = arith.addf %47, %52 : vector<128x128xf32>
    %54 = vector.extract_strided_slice %16 {offsets = [2, 0, 0], sizes = [8, 16, 128], strides = [1, 1, 1]} : vector<10x16x128xbf16> to vector<8x16x128xbf16>
    %55 = vector.shape_cast %54 : vector<8x16x128xbf16> to vector<128x128xbf16>
    %c6 = arith.constant 6 : index
    %c0_46 = arith.constant 0 : index
    %c0_47 = arith.constant 0 : index
    %56 = vector.load %arg5[%c6, %c0_46, %c0_47] : memref<9x128x128xbf16, #tpu.memory_space<vmem>>, vector<1x128x128xbf16>
    %57 = vector.shape_cast %56 : vector<1x128x128xbf16> to vector<128x128xbf16>
    %cst_48 = arith.constant dense<0.000000e+00> : vector<128x128xf32>
    %58 = tpu.matmul %55, %57, %cst_48 {dimension_numbers = #tpu.dot_dimension_numbers<[1], [0], [0], [1], [0, 0, 1, 1], [], []>} : vector<128x128xbf16>, vector<128x128xbf16>, vector<128x128xf32> -> vector<128x128xf32>
    %59 = arith.addf %53, %58 : vector<128x128xf32>
    %60 = vector.extract_strided_slice %17 {offsets = [2, 0, 0], sizes = [8, 16, 128], strides = [1, 1, 1]} : vector<10x16x128xbf16> to vector<8x16x128xbf16>
    %61 = vector.shape_cast %60 : vector<8x16x128xbf16> to vector<128x128xbf16>
    %c7 = arith.constant 7 : index
    %c0_49 = arith.constant 0 : index
    %c0_50 = arith.constant 0 : index
    %62 = vector.load %arg5[%c7, %c0_49, %c0_50] : memref<9x128x128xbf16, #tpu.memory_space<vmem>>, vector<1x128x128xbf16>
    %63 = vector.shape_cast %62 : vector<1x128x128xbf16> to vector<128x128xbf16>
    %cst_51 = arith.constant dense<0.000000e+00> : vector<128x128xf32>
    %64 = tpu.matmul %61, %63, %cst_51 {dimension_numbers = #tpu.dot_dimension_numbers<[1], [0], [0], [1], [0, 0, 1, 1], [], []>} : vector<128x128xbf16>, vector<128x128xbf16>, vector<128x128xf32> -> vector<128x128xf32>
    %65 = arith.addf %59, %64 : vector<128x128xf32>
    %66 = vector.extract_strided_slice %18 {offsets = [2, 0, 0], sizes = [8, 16, 128], strides = [1, 1, 1]} : vector<10x16x128xbf16> to vector<8x16x128xbf16>
    %67 = vector.shape_cast %66 : vector<8x16x128xbf16> to vector<128x128xbf16>
    %c8 = arith.constant 8 : index
    %c0_52 = arith.constant 0 : index
    %c0_53 = arith.constant 0 : index
    %68 = vector.load %arg5[%c8, %c0_52, %c0_53] : memref<9x128x128xbf16, #tpu.memory_space<vmem>>, vector<1x128x128xbf16>
    %69 = vector.shape_cast %68 : vector<1x128x128xbf16> to vector<128x128xbf16>
    %cst_54 = arith.constant dense<0.000000e+00> : vector<128x128xf32>
    %70 = tpu.matmul %67, %69, %cst_54 {dimension_numbers = #tpu.dot_dimension_numbers<[1], [0], [0], [1], [0, 0, 1, 1], [], []>} : vector<128x128xbf16>, vector<128x128xbf16>, vector<128x128xf32> -> vector<128x128xf32>
    %71 = arith.addf %65, %70 : vector<128x128xf32>
    %c0_55 = arith.constant 0 : index
    %c0_56 = arith.constant 0 : index
    %72 = vector.load %arg6[%c0_55, %c0_56] : memref<1x128xf32, #tpu.memory_space<vmem>>, vector<1x128xf32>
    %73 = vector.broadcast %72 : vector<1x128xf32> to vector<128x128xf32>
    %74 = arith.addf %71, %73 : vector<128x128xf32>
    %cst_57 = arith.constant 0.000000e+00 : f32
    %75 = vector.broadcast %cst_57 : f32 to vector<128x128xf32>
    %76 = arith.maximumf %74, %75 : vector<128x128xf32>
    %77 = arith.truncf %76 : vector<128x128xf32> to vector<128x128xbf16>
    %78 = vector.extract_strided_slice %1 {offsets = [1, 0, 0], sizes = [8, 16, 128], strides = [1, 1, 1]} : vector<10x16x128xbf16> to vector<8x16x128xbf16>
    %79 = vector.shape_cast %78 : vector<8x16x128xbf16> to vector<128x128xbf16>
    %c0_58 = arith.constant 0 : index
    %c0_59 = arith.constant 0 : index
    %80 = vector.load %arg9[%c0_58, %c0_59] : memref<128x128xbf16, #tpu.memory_space<vmem>>, vector<128x128xbf16>
    %cst_60 = arith.constant dense<0.000000e+00> : vector<128x128xf32>
    %81 = tpu.matmul %79, %80, %cst_60 {dimension_numbers = #tpu.dot_dimension_numbers<[1], [0], [0], [1], [0, 0, 1, 1], [], []>} : vector<128x128xbf16>, vector<128x128xbf16>, vector<128x128xf32> -> vector<128x128xf32>
    %c0_61 = arith.constant 0 : index
    %c0_62 = arith.constant 0 : index
    %82 = vector.load %arg10[%c0_61, %c0_62] : memref<1x128xf32, #tpu.memory_space<vmem>>, vector<1x128xf32>
    %83 = vector.broadcast %82 : vector<1x128xf32> to vector<128x128xf32>
    %84 = arith.addf %81, %83 : vector<128x128xf32>
    %c0_63 = arith.constant 0 : index
    %c0_64 = arith.constant 0 : index
    %85 = vector.load %arg7[%c0_63, %c0_64] : memref<128x128xbf16, #tpu.memory_space<vmem>>, vector<128x128xbf16>
    %cst_65 = arith.constant dense<0.000000e+00> : vector<128x128xf32>
    %86 = tpu.matmul %77, %85, %cst_65 {dimension_numbers = #tpu.dot_dimension_numbers<[1], [0], [0], [1], [0, 0, 1, 1], [], []>} : vector<128x128xbf16>, vector<128x128xbf16>, vector<128x128xf32> -> vector<128x128xf32>
    %c0_66 = arith.constant 0 : index
    %c0_67 = arith.constant 0 : index
    %87 = vector.load %arg8[%c0_66, %c0_67] : memref<1x128xf32, #tpu.memory_space<vmem>>, vector<1x128xf32>
    %88 = vector.broadcast %87 : vector<1x128xf32> to vector<128x128xf32>
    %89 = arith.addf %86, %88 : vector<128x128xf32>
    %90 = arith.addf %89, %84 : vector<128x128xf32>
    %cst_68 = arith.constant 0.000000e+00 : f32
    %91 = vector.broadcast %cst_68 : f32 to vector<128x128xf32>
    %92 = arith.maximumf %90, %91 : vector<128x128xf32>
    %93 = vector.shape_cast %92 : vector<128x128xf32> to vector<1x8x16x128xf32>
    %94 = arith.truncf %93 : vector<1x8x16x128xf32> to vector<1x8x16x128xbf16>
    %c0_69 = arith.constant 0 : index
    %c0_70 = arith.constant 0 : index
    %c0_71 = arith.constant 0 : index
    %c0_72 = arith.constant 0 : index
    %95 = vector.load %arg11[%c0_69, %c0_70, %c0_71, %c0_72] : memref<1x8x16x128xbf16, #tpu.memory_space<vmem>>, vector<1x8x16x128xbf16>
    tpu.vector_store %arg11[%c0_69, %c0_70, %c0_71, %c0_72], %94 {strides = array<i32>} : memref<1x8x16x128xbf16, #tpu.memory_space<vmem>>, vector<1x8x16x128xbf16>,
    return
  }
  func.func @transform_0(%arg0: i32, %arg1: i32) -> (i32, i32, i32, i32, i32) {
    %c0_i32 = arith.constant 0 : i32
    %c0_i32_0 = arith.constant 0 : i32
    %c0_i32_1 = arith.constant 0 : i32
    %c0_i32_2 = arith.constant 0 : i32
    return %arg0, %arg1, %c0_i32, %c0_i32_0, %c0_i32_1 : i32, i32, i32, i32, i32
  }
  func.func @transform_1(%arg0: i32, %arg1: i32) -> (i32, i32) {
    %c0_i32 = arith.constant 0 : i32
    %c0_i32_0 = arith.constant 0 : i32
    %c0_i32_1 = arith.constant 0 : i32
    return %c0_i32, %c0_i32_0 : i32, i32
  }
  func.func @transform_2(%arg0: i32, %arg1: i32) -> (i32, i32) {
    %c0_i32 = arith.constant 0 : i32
    %c0_i32_0 = arith.constant 0 : i32
    %c0_i32_1 = arith.constant 0 : i32
    return %c0_i32, %c0_i32_0 : i32, i32
  }
  func.func @transform_3(%arg0: i32, %arg1: i32) -> (i32, i32, i32) {
    %c0_i32 = arith.constant 0 : i32
    %c0_i32_0 = arith.constant 0 : i32
    %c0_i32_1 = arith.constant 0 : i32
    %c0_i32_2 = arith.constant 0 : i32
    return %c0_i32, %c0_i32_0, %c0_i32_1 : i32, i32, i32
  }
  func.func @transform_4(%arg0: i32, %arg1: i32) -> (i32, i32) {
    %c0_i32 = arith.constant 0 : i32
    %c0_i32_0 = arith.constant 0 : i32
    %c0_i32_1 = arith.constant 0 : i32
    return %c0_i32, %c0_i32_0 : i32, i32
  }
  func.func @transform_5(%arg0: i32, %arg1: i32) -> (i32, i32) {
    %c0_i32 = arith.constant 0 : i32
    %c0_i32_0 = arith.constant 0 : i32
    %c0_i32_1 = arith.constant 0 : i32
    return %c0_i32, %c0_i32_0 : i32, i32
  }
  func.func @transform_6(%arg0: i32, %arg1: i32) -> (i32, i32) {
    %c0_i32 = arith.constant 0 : i32
    %c0_i32_0 = arith.constant 0 : i32
    %c0_i32_1 = arith.constant 0 : i32
    return %c0_i32, %c0_i32_0 : i32, i32
  }
  func.func @transform_7(%arg0: i32, %arg1: i32) -> (i32, i32) {
    %c0_i32 = arith.constant 0 : i32
    %c0_i32_0 = arith.constant 0 : i32
    %c0_i32_1 = arith.constant 0 : i32
    return %c0_i32, %c0_i32_0 : i32, i32
  }
  func.func @transform_8(%arg0: i32, %arg1: i32) -> (i32, i32) {
    %c0_i32 = arith.constant 0 : i32
    %c0_i32_0 = arith.constant 0 : i32
    %c0_i32_1 = arith.constant 0 : i32
    return %c0_i32, %c0_i32_0 : i32, i32
  }
  func.func @transform_9(%arg0: i32, %arg1: i32) -> (i32, i32, i32, i32) {
    %c0_i32 = arith.constant 0 : i32
    %c0_i32_0 = arith.constant 0 : i32
    %c0_i32_1 = arith.constant 0 : i32
    return %arg0, %arg1, %c0_i32, %c0_i32_0 : i32, i32, i32, i32
  }
}

</mosaic_0001>

<llo_original>
// kernel: tpu_custom_call.1
$region0: #{tpu_custom_call.1}
  #allocation0 [shape = 'u32[]', space=smem, size = 0x4, offset = 0x4, fixed_abs, tag = 'smem constant byte address 0x4 - core index']
  #allocation1 [shape = 'u32[144,128]{1,0:T(1,128)}', space=vmem, size = 0x12000, scoped, tag = 'internal scratch']
  #allocation2 [shape = 'bf16[10,18,128]{2,1,0:T(8,128)(2,1)}', space=vmem, size = 0xf000, scoped, tag = 'scratch operand']
  %s0 = inlined_call_operand.hbm [shape: bf16[2,2,10,16,128], index: 0, kind: input, shape index: {}]
  %s1 = inlined_call_operand.hbm [shape: bf16[128,128], index: 1, kind: input, shape index: {}]
  %s2 = inlined_call_operand.vmem [shape: f32[1,128], index: 2, kind: input, shape index: {}]
  %s3 = inlined_call_operand.hbm [shape: bf16[9,128,128], index: 3, kind: input, shape index: {}]
  %s4 = inlined_call_operand.vmem [shape: f32[1,128], index: 4, kind: input, shape index: {}]
  %s5 = inlined_call_operand.hbm [shape: bf16[128,128], index: 5, kind: input, shape index: {}]
  %s6 = inlined_call_operand.vmem [shape: f32[1,128], index: 6, kind: input, shape index: {}]
  %s7 = inlined_call_operand.hbm [shape: bf16[128,128], index: 7, kind: input, shape index: {}]
  %s8 = inlined_call_operand.vmem [shape: f32[1,128], index: 8, kind: input, shape index: {}]
  %s9 = inlined_call_operand.hbm [shape: bf16[2,16,16,128], index: 9, kind: output, shape index: {}]
  %s10 = sld [smem:[#allocation0]]
  $region89: #{tpu_custom_call.1} parent=0
    _
  %s12 = ssub.s32 1, %s10
  %s13 = scalar_select 0, %s12, %s10
  $region1: #{tpu_custom_call.1} parent=0
    #allocation3 [shape = 'u8[81920]{0}', space=vmem, size = 0x14000, scoped, tag = 'input window, operand 0']
    #allocation4 [shape = 's32[2]{0}', space=sflag, size = 0x8, scoped, tag = 'scoped memory for tpu_custom_call.1']
    #allocation5 [shape = 's32[2]{0}', space=sflag, size = 0x8, scoped, tag = 'scoped memory for tpu_custom_call.1']
    #allocation6 [shape = 'u8[32768]{0}', space=vmem, size = 0x8000, scoped, tag = 'input window, operand 1, single buffered']
    #allocation7 [shape = 's32[1]{0}', space=sflag, size = 0x4, scoped, tag = 'scoped memory for tpu_custom_call.1']
    #allocation8 [shape = 'u8[294912]{0}', space=vmem, size = 0x48000, scoped, tag = 'input window, operand 3, single buffered']
    #allocation9 [shape = 'u8[32768]{0}', space=vmem, size = 0x8000, scoped, tag = 'input window, operand 5, single buffered']
    #allocation10 [shape = 's32[1]{0}', space=sflag, size = 0x4, scoped, tag = 'scoped memory for tpu_custom_call.1']
    #allocation11 [shape = 'u8[32768]{0}', space=vmem, size = 0x8000, scoped, tag = 'input window, operand 7, single buffered']
    #allocation12 [shape = 'u8[65536]{0}', space=vmem, size = 0x10000, scoped, tag = 'output window, operand 0']
    %14 = vsyncpa [#allocation4], 0
    %s15 = scalar_lea.sflag [#allocation4], 1
    %16 = vsyncpa %s15, 0
    %17 = vsyncpa [#allocation7], 0
    %18 = vsyncpa [#allocation10], 0
    %19 = vsyncpa [#allocation5], 0
    %s20 = scalar_lea.sflag [#allocation5], 1
    %21 = vsyncpa %s20, 0
    loop: start=0, step=1, limit=6
    $region2: #{tpu_custom_call.1} parent=1 // loop_pre_header
      _
    $region3: #{tpu_custom_call.1} parent=1 // loop_header
      %s23 = sphi 0, %s27
      %p24 = scmp.ge.s32.totalorder %s23, 6
      %s30 = sphi 0, %s42
      %s31 = sphi 0, %s38
      %s32 = sphi 0, %s30
      %s33 = sphi 0, %s31
      %s34 = sphi 0, %s32
      %s35 = sphi 0, %s33
      %s47 = sphi 0, %s49
      %s50 = sphi 0, %s47
      %s51 = sphi 0, %s50
      %s67 = sphi 0, %s51
      %s71 = sphi 0, %s71
      %s73 = sphi 0, %s71
      %s74 = sphi 0, %s73
      %s88 = sphi 0, %s74
      %s92 = sphi 0, %s92
      %s94 = sphi 0, %s92
      %s95 = sphi 0, %s94
      %s109 = sphi 0, %s95
      %s113 = sphi 0, %s113
      %s115 = sphi 0, %s113
      %s116 = sphi 0, %s115
      %s130 = sphi 0, %s116
      %s134 = sphi 0, %s134
      %s136 = sphi 0, %s134
      %s137 = sphi 0, %s136
      %s151 = sphi 0, %s137
      %s155 = sphi 0, %s155
      %s157 = sphi 0, %s155
      %s158 = sphi 0, %s157
      %s172 = sphi 0, %s158
      %s176 = sphi 0, %s176
      %s178 = sphi 0, %s176
      %s179 = sphi 0, %s178
      %s193 = sphi 0, %s179
      %s197 = sphi 0, %s197
      %s199 = sphi 0, %s197
      %s200 = sphi 0, %s199
      %s214 = sphi 0, %s200
      %s218 = sphi 0, %s218
      %s220 = sphi 0, %s218
      %s221 = sphi 0, %s220
      %s235 = sphi 0, %s221
      %s243 = sphi 0, %s245
      %s246 = sphi 0, %s243
      %s247 = sphi 0, %s246
      %s263 = sphi 0, %s247
    $region4: #{tpu_custom_call.1} parent=1 // loop_header_branch
      %26 = sbr.rel (%p24) target = $region8
    $region5: #{tpu_custom_call.1} parent=1 // loop_body
      %s28 = ssub.s32 %s23, 1
      %s29 = ssub.s32 %s23, 2
      %s36 = sadd.s32 1, %s31
      %p37 = scmp.ge.s32.totalorder %s36, 2
      %s38 = scalar_select %p37, 0, %s36
      %s39 = sadd.s32 1, %s30
      %s40 = scalar_select %p37, %s39, %s30
      %p41 = scmp.ge.s32.totalorder %s40, 2
      %s42 = scalar_select %p41, 0, %s40
      %s43 = ssub.s32 %s30, %s42
      %s44 = ssub.s32 %s31, %s38
      %s45 = sor.u32 %s43, %s44
      %p46 = scmp.eq.s32.totalorder %s45, 0
      %s48 = sadd.s32 %s47, 1
      %s49 = scalar_select %p46, %s47, %s48
      %p52 = pneg %p46
      %p53 = scmp.eq.s32.totalorder %s23, 3
      %p54 = por %p52, %p53
      %p55 = scmp.ne.s32.totalorder %s47, %s50
      %p56 = scmp.eq.s32.totalorder %s23, 0
      %p57 = por %p55, %p56
      %p58 = scmp.ne.s32.totalorder %s47, %s50
      %p59 = scmp.eq.s32.totalorder %s28, 3
      %p60 = por %p58, %p59
      %p61 = scmp.ne.s32.totalorder %s50, %s51
      %p62 = scmp.eq.s32.totalorder %s28, 0
      %p63 = por %p61, %p62
      %p64 = scmp.ne.s32.totalorder %s50, %s51
      %p65 = scmp.eq.s32.totalorder %s29, 3
      %p66 = por %p64, %p65
      %p68 = scmp.ne.s32.totalorder %s51, %s67
      %p69 = scmp.eq.s32.totalorder %s29, 0
      %p70 = por %p68, %p69
      %s72 = sadd.s32 %s71, 1
      %p75 = scmp.eq.s32.totalorder %s23, 3
      %p76 = scmp.ne.s32.totalorder %s71, %s73
      %p77 = scmp.eq.s32.totalorder %s23, 0
      %p78 = por %p76, %p77
      %p79 = scmp.ne.s32.totalorder %s71, %s73
      %p80 = scmp.eq.s32.totalorder %s28, 3
      %p81 = por %p79, %p80
      %p82 = scmp.ne.s32.totalorder %s73, %s74
      %p83 = scmp.eq.s32.totalorder %s28, 0
      %p84 = por %p82, %p83
      %p85 = scmp.ne.s32.totalorder %s73, %s74
      %p86 = scmp.eq.s32.totalorder %s29, 3
      %p87 = por %p85, %p86
      %p89 = scmp.ne.s32.totalorder %s74, %s88
      %p90 = scmp.eq.s32.totalorder %s29, 0
      %p91 = por %p89, %p90
      %s93 = sadd.s32 %s92, 1
      %p96 = scmp.eq.s32.totalorder %s23, 3
      %p97 = scmp.ne.s32.totalorder %s92, %s94
      %p98 = scmp.eq.s32.totalorder %s23, 0
      %p99 = por %p97, %p98
      %p100 = scmp.ne.s32.totalorder %s92, %s94
      %p101 = scmp.eq.s32.totalorder %s28, 3
      %p102 = por %p100, %p101
      %p103 = scmp.ne.s32.totalorder %s94, %s95
      %p104 = scmp.eq.s32.totalorder %s28, 0
      %p105 = por %p103, %p104
      %p106 = scmp.ne.s32.totalorder %s94, %s95
      %p107 = scmp.eq.s32.totalorder %s29, 3
      %p108 = por %p106, %p107
      %p110 = scmp.ne.s32.totalorder %s95, %s109
      %p111 = scmp.eq.s32.totalorder %s29, 0
      %p112 = por %p110, %p111
      %s114 = sadd.s32 %s113, 1
      %p117 = scmp.eq.s32.totalorder %s23, 3
      %p118 = scmp.ne.s32.totalorder %s113, %s115
      %p119 = scmp.eq.s32.totalorder %s23, 0
      %p120 = por %p118, %p119
      %p121 = scmp.ne.s32.totalorder %s113, %s115
      %p122 = scmp.eq.s32.totalorder %s28, 3
      %p123 = por %p121, %p122
      %p124 = scmp.ne.s32.totalorder %s115, %s116
      %p125 = scmp.eq.s32.totalorder %s28, 0
      %p126 = por %p124, %p125
      %p127 = scmp.ne.s32.totalorder %s115, %s116
      %p128 = scmp.eq.s32.totalorder %s29, 3
      %p129 = por %p127, %p128
      %p131 = scmp.ne.s32.totalorder %s116, %s130
      %p132 = scmp.eq.s32.totalorder %s29, 0
      %p133 = por %p131, %p132
      %s135 = sadd.s32 %s134, 1
      %p138 = scmp.eq.s32.totalorder %s23, 3
      %p139 = scmp.ne.s32.totalorder %s134, %s136
      %p140 = scmp.eq.s32.totalorder %s23, 0
      %p141 = por %p139, %p140
      %p142 = scmp.ne.s32.totalorder %s134, %s136
      %p143 = scmp.eq.s32.totalorder %s28, 3
      %p144 = por %p142, %p143
      %p145 = scmp.ne.s32.totalorder %s136, %s137
      %p146 = scmp.eq.s32.totalorder %s28, 0
      %p147 = por %p145, %p146
      %p148 = scmp.ne.s32.totalorder %s136, %s137
      %p149 = scmp.eq.s32.totalorder %s29, 3
      %p150 = por %p148, %p149
      %p152 = scmp.ne.s32.totalorder %s137, %s151
      %p153 = scmp.eq.s32.totalorder %s29, 0
      %p154 = por %p152, %p153
      %s156 = sadd.s32 %s155, 1
      %p159 = scmp.eq.s32.totalorder %s23, 3
      %p160 = scmp.ne.s32.totalorder %s155, %s157
      %p161 = scmp.eq.s32.totalorder %s23, 0
      %p162 = por %p160, %p161
      %p163 = scmp.ne.s32.totalorder %s155, %s157
      %p164 = scmp.eq.s32.totalorder %s28, 3
      %p165 = por %p163, %p164
      %p166 = scmp.ne.s32.totalorder %s157, %s158
      %p167 = scmp.eq.s32.totalorder %s28, 0
      %p168 = por %p166, %p167
      %p169 = scmp.ne.s32.totalorder %s157, %s158
      %p170 = scmp.eq.s32.totalorder %s29, 3
      %p171 = por %p169, %p170
      %p173 = scmp.ne.s32.totalorder %s158, %s172
      %p174 = scmp.eq.s32.totalorder %s29, 0
      %p175 = por %p173, %p174
      %s177 = sadd.s32 %s176, 1
      %p180 = scmp.eq.s32.totalorder %s23, 3
      %p181 = scmp.ne.s32.totalorder %s176, %s178
      %p182 = scmp.eq.s32.totalorder %s23, 0
      %p183 = por %p181, %p182
      %p184 = scmp.ne.s32.totalorder %s176, %s178
      %p185 = scmp.eq.s32.totalorder %s28, 3
      %p186 = por %p184, %p185
      %p187 = scmp.ne.s32.totalorder %s178, %s179
      %p188 = scmp.eq.s32.totalorder %s28, 0
      %p189 = por %p187, %p188
      %p190 = scmp.ne.s32.totalorder %s178, %s179
      %p191 = scmp.eq.s32.totalorder %s29, 3
      %p192 = por %p190, %p191
      %p194 = scmp.ne.s32.totalorder %s179, %s193
      %p195 = scmp.eq.s32.totalorder %s29, 0
      %p196 = por %p194, %p195
      %s198 = sadd.s32 %s197, 1
      %p201 = scmp.eq.s32.totalorder %s23, 3
      %p202 = scmp.ne.s32.totalorder %s197, %s199
      %p203 = scmp.eq.s32.totalorder %s23, 0
      %p204 = por %p202, %p203
      %p205 = scmp.ne.s32.totalorder %s197, %s199
      %p206 = scmp.eq.s32.totalorder %s28, 3
      %p207 = por %p205, %p206
      %p208 = scmp.ne.s32.totalorder %s199, %s200
      %p209 = scmp.eq.s32.totalorder %s28, 0
      %p210 = por %p208, %p209
      %p211 = scmp.ne.s32.totalorder %s199, %s200
      %p212 = scmp.eq.s32.totalorder %s29, 3
      %p213 = por %p211, %p212
      %p215 = scmp.ne.s32.totalorder %s200, %s214
      %p216 = scmp.eq.s32.totalorder %s29, 0
      %p217 = por %p215, %p216
      %s219 = sadd.s32 %s218, 1
      %p222 = scmp.eq.s32.totalorder %s23, 3
      %p223 = scmp.ne.s32.totalorder %s218, %s220
      %p224 = scmp.eq.s32.totalorder %s23, 0
      %p225 = por %p223, %p224
      %p226 = scmp.ne.s32.totalorder %s218, %s220
      %p227 = scmp.eq.s32.totalorder %s28, 3
      %p228 = por %p226, %p227
      %p229 = scmp.ne.s32.totalorder %s220, %s221
      %p230 = scmp.eq.s32.totalorder %s28, 0
      %p231 = por %p229, %p230
      %p232 = scmp.ne.s32.totalorder %s220, %s221
      %p233 = scmp.eq.s32.totalorder %s29, 3
      %p234 = por %p232, %p233
      %p236 = scmp.ne.s32.totalorder %s221, %s235
      %p237 = scmp.eq.s32.totalorder %s29, 0
      %p238 = por %p236, %p237
      %s239 = ssub.s32 %s30, %s42
      %s240 = ssub.s32 %s31, %s38
      %s241 = sor.u32 %s239, %s240
      %p242 = scmp.eq.s32.totalorder %s241, 0
      %s244 = sadd.s32 %s243, 1
      %s245 = scalar_select %p242, %s243, %s244
      %p248 = pneg %p242
      %p249 = scmp.eq.s32.totalorder %s23, 3
      %p250 = por %p248, %p249
      %p251 = scmp.ne.s32.totalorder %s243, %s246
      %p252 = scmp.eq.s32.totalorder %s23, 0
      %p253 = por %p251, %p252
      %p254 = scmp.ne.s32.totalorder %s243, %s246
      %p255 = scmp.eq.s32.totalorder %s28, 3
      %p256 = por %p254, %p255
      %p257 = scmp.ne.s32.totalorder %s246, %s247
      %p258 = scmp.eq.s32.totalorder %s28, 0
      %p259 = por %p257, %p258
      %p260 = scmp.ne.s32.totalorder %s246, %s247
      %p261 = scmp.eq.s32.totalorder %s29, 3
      %p262 = por %p260, %p261
      %p264 = scmp.ne.s32.totalorder %s247, %s263
      %p265 = scmp.eq.s32.totalorder %s29, 0
      %p266 = por %p264, %p265
      %p267 = scmp.le.s32.totalorder 1, %s23
      %p268 = scmp.lt.s32.totalorder %s23, 5
      %p269 = pnand %p267, %p268
      %p270 = pneg %p269
      // Predicated region
      $region9: #{tpu_custom_call.1} parent=5 // pred_check
        _
      $region10: #{tpu_custom_call.1} parent=5 // pred_check_branch
        %272 = sbr.rel (%p269) target = $region12
      $region11: #{tpu_custom_call.1} parent=5 // pred_region
        %s273 = ssub.s32 %s23, 1
        // Predicated region
        $region13: #{tpu_custom_call.1} parent=11 // pred_check
          %p274 = pneg %p84
        $region14: #{tpu_custom_call.1} parent=11 // pred_check_branch
          %276 = sbr.rel (%p274) target = $region16
        $region15: #{tpu_custom_call.1} parent=11 // pred_region
          %s278 = ssub.s32 1024, 1024
          %279 = vsyncadd [#allocation7], %s278
          %s280 = sshll.u32 [#allocation6], 4
          %s281 = int_to_ptr.vmem [resolvable:$true] %s280
          %286 = dma.hbm_to_vmem [thread:$0]  %s1, 1024, %s281, [#allocation7], 64, 64, 4
        $region16: #{tpu_custom_call.1} parent=11 // pred_fallthru
          _
        // Predicated region
        $region17: #{tpu_custom_call.1} parent=11 // pred_check
          %p287 = pneg %p105
        $region18: #{tpu_custom_call.1} parent=11 // pred_check_branch
          %289 = sbr.rel (%p287) target = $region20
        $region19: #{tpu_custom_call.1} parent=11 // pred_region
          _
        $region20: #{tpu_custom_call.1} parent=11 // pred_fallthru
          _
        // Predicated region
        $region21: #{tpu_custom_call.1} parent=11 // pred_check
          %p290 = pneg %p126
        $region22: #{tpu_custom_call.1} parent=11 // pred_check_branch
          %292 = sbr.rel (%p290) target = $region24
        $region23: #{tpu_custom_call.1} parent=11 // pred_region
          %s294 = ssub.s32 9216, 9216
          %295 = vsyncadd [#allocation7], %s294
          %s296 = sshll.u32 [#allocation8], 4
          %s297 = int_to_ptr.vmem [resolvable:$true] %s296
          %302 = dma.hbm_to_vmem [thread:$0]  %s3, 9216, %s297, [#allocation7], 64, 64, 4
        $region24: #{tpu_custom_call.1} parent=11 // pred_fallthru
          _
        // Predicated region
        $region25: #{tpu_custom_call.1} parent=11 // pred_check
          %p303 = pneg %p147
        $region26: #{tpu_custom_call.1} parent=11 // pred_check_branch
          %305 = sbr.rel (%p303) target = $region28
        $region27: #{tpu_custom_call.1} parent=11 // pred_region
          _
        $region28: #{tpu_custom_call.1} parent=11 // pred_fallthru
          _
        // Predicated region
        $region29: #{tpu_custom_call.1} parent=11 // pred_check
          %p306 = pneg %p168
        $region30: #{tpu_custom_call.1} parent=11 // pred_check_branch
          %308 = sbr.rel (%p306) target = $region32
        $region31: #{tpu_custom_call.1} parent=11 // pred_region
          %s310 = ssub.s32 1024, 1024
          %311 = vsyncadd [#allocation10], %s310
          %s312 = sshll.u32 [#allocation9], 4
          %s313 = int_to_ptr.vmem [resolvable:$true] %s312
          %318 = dma.hbm_to_vmem [thread:$0]  %s5, 1024, %s313, [#allocation10], 64, 64, 4
        $region32: #{tpu_custom_call.1} parent=11 // pred_fallthru
          _
        // Predicated region
        $region33: #{tpu_custom_call.1} parent=11 // pred_check
          %p319 = pneg %p189
        $region34: #{tpu_custom_call.1} parent=11 // pred_check_branch
          %321 = sbr.rel (%p319) target = $region36
        $region35: #{tpu_custom_call.1} parent=11 // pred_region
          _
        $region36: #{tpu_custom_call.1} parent=11 // pred_fallthru
          _
        // Predicated region
        $region37: #{tpu_custom_call.1} parent=11 // pred_check
          %p322 = pneg %p210
        $region38: #{tpu_custom_call.1} parent=11 // pred_check_branch
          %324 = sbr.rel (%p322) target = $region40
        $region39: #{tpu_custom_call.1} parent=11 // pred_region
          %s326 = ssub.s32 1024, 1024
          %327 = vsyncadd [#allocation10], %s326
          %s328 = sshll.u32 [#allocation11], 4
          %s329 = int_to_ptr.vmem [resolvable:$true] %s328
          %334 = dma.hbm_to_vmem [thread:$0]  %s7, 1024, %s329, [#allocation10], 64, 64, 4
        $region40: #{tpu_custom_call.1} parent=11 // pred_fallthru
          _
        // Predicated region
        $region41: #{tpu_custom_call.1} parent=11 // pred_check
          %p335 = pneg %p231
        $region42: #{tpu_custom_call.1} parent=11 // pred_check_branch
          %337 = sbr.rel (%p335) target = $region44
        $region43: #{tpu_custom_call.1} parent=11 // pred_region
          _
        $region44: #{tpu_custom_call.1} parent=11 // pred_fallthru
          _
      $region12: #{tpu_custom_call.1} parent=5 // pred_fallthru
        _
      %p338 = scmp.lt.s32.totalorder %s23, 4
      // Predicated region
      $region45: #{tpu_custom_call.1} parent=5 // pred_check
        %p339 = pneg %p338
      $region46: #{tpu_custom_call.1} parent=5 // pred_check_branch
        %341 = sbr.rel (%p339) target = $region48
      $region47: #{tpu_custom_call.1} parent=5 // pred_region
        // Predicated region
        $region49: #{tpu_custom_call.1} parent=47 // pred_check
          %p342 = pneg %p57
        $region50: #{tpu_custom_call.1} parent=47 // pred_check_branch
          %344 = sbr.rel (%p342) target = $region52
        $region51: #{tpu_custom_call.1} parent=47 // pred_region
          %s345 = sand.u32 %s47, 1
          %s346 = scalar_lea.sflag [#allocation4], %s345
          %s347 = sand.u32 %s47, 1
          %s348 = smul.addr %s347, 80
          %s349 = scalar_lea.vmem [#allocation3], %s348
          %s351 = ssub.s32 1280, 1280
          %352 = vsyncadd %s346, %s351
          %s353 = smul.addr %s31, 20
          %s354 = smul.addr %s30, 40
          %s355 = sadd.s32 %s353, %s354
          %s356 = smul.addr %s355, 64
          %s357 = scalar_lea.hbm %s0, %s356
          %s358 = sshll.u32 %s349, 4
          %s359 = int_to_ptr.vmem [resolvable:$true] %s358
          %364 = dma.hbm_to_vmem [thread:$0]  %s357, 1280, %s359, %s346, 64, 64, 4
        $region52: #{tpu_custom_call.1} parent=47 // pred_fallthru
          _
      $region48: #{tpu_custom_call.1} parent=5 // pred_fallthru
        _
      %p365 = scmp.le.s32.totalorder 1, %s23
      %p366 = scmp.lt.s32.totalorder %s23, 5
      %p367 = pnand %p365, %p366
      %p368 = pneg %p367
      // Predicated region
      $region53: #{tpu_custom_call.1} parent=5 // pred_check
        _
      $region54: #{tpu_custom_call.1} parent=5 // pred_check_branch
        %370 = sbr.rel (%p367) target = $region56
      $region55: #{tpu_custom_call.1} parent=5 // pred_region
        %s371 = ssub.s32 %s23, 1
        %s372 = sand.u32 %s50, 1
        %s373 = scalar_lea.sflag [#allocation4], %s372
        %s374 = sand.u32 %s50, 1
        %s375 = smul.addr %s374, 80
        %s376 = scalar_lea.vmem [#allocation3], %s375
        // Predicated region
        $region57: #{tpu_custom_call.1} parent=55 // pred_check
          %p377 = pneg %p63
        $region58: #{tpu_custom_call.1} parent=55 // pred_check_branch
          %379 = sbr.rel (%p377) target = $region60
        $region59: #{tpu_custom_call.1} parent=55 // pred_region
          %380 = dma.done %s373, 1280
        $region60: #{tpu_custom_call.1} parent=55 // pred_fallthru
          _
        // Predicated region
        $region61: #{tpu_custom_call.1} parent=55 // pred_check
          %p381 = pneg %p84
        $region62: #{tpu_custom_call.1} parent=55 // pred_check_branch
          %383 = sbr.rel (%p381) target = $region64
        $region63: #{tpu_custom_call.1} parent=55 // pred_region
          %384 = dma.done [#allocation7], 1024
        $region64: #{tpu_custom_call.1} parent=55 // pred_fallthru
          _
        // Predicated region
        $region65: #{tpu_custom_call.1} parent=55 // pred_check
          %p385 = pneg %p126
        $region66: #{tpu_custom_call.1} parent=55 // pred_check_branch
          %387 = sbr.rel (%p385) target = $region68
        $region67: #{tpu_custom_call.1} parent=55 // pred_region
          %388 = dma.done [#allocation7], 9216
        $region68: #{tpu_custom_call.1} parent=55 // pred_fallthru
          _
        // Predicated region
        $region69: #{tpu_custom_call.1} parent=55 // pred_check
          %p389 = pneg %p168
        $region70: #{tpu_custom_call.1} parent=55 // pred_check_branch
          %391 = sbr.rel (%p389) target = $region72
        $region71: #{tpu_custom_call.1} parent=55 // pred_region
          %392 = dma.done [#allocation10], 1024
        $region72: #{tpu_custom_call.1} parent=55 // pred_fallthru
          _
        // Predicated region
        $region73: #{tpu_custom_call.1} parent=55 // pred_check
          %p393 = pneg %p210
        $region74: #{tpu_custom_call.1} parent=55 // pred_check_branch
          %395 = sbr.rel (%p393) target = $region76
        $region75: #{tpu_custom_call.1} parent=55 // pred_region
          %396 = dma.done [#allocation10], 1024
        $region76: #{tpu_custom_call.1} parent=55 // pred_fallthru
          _
        %s397 = sand.u32 %s50, 1
        %s398 = scalar_lea.sflag [#allocation4], %s397
        %s399 = sand.u32 %s50, 1
        %s400 = smul.addr %s399, 80
        %s401 = scalar_lea.vmem [#allocation3], %s400
        %p402 = pneg %p63
        %p403 = pneg %p60
        %p404 = pneg %p84
        %p405 = pneg %p81
        %p406 = pneg %p105
        %p407 = pneg %p102
        %p408 = pneg %p126
        %p409 = pneg %p123
        %p410 = pneg %p147
        %p411 = pneg %p144
        %p412 = pneg %p168
        %p413 = pneg %p165
        %p414 = pneg %p189
        %p415 = pneg %p186
        %p416 = pneg %p210
        %p417 = pneg %p207
        %p418 = pneg %p231
        %p419 = pneg %p228
        %p420 = pneg %p259
        %p421 = pneg %p256
        %s422 = sand.u32 %s246, 1
        %s423 = scalar_lea.sflag [#allocation5], %s422
        %s424 = sand.u32 %s246, 1
        %s425 = smul.addr %s424, 64
        %s426 = scalar_lea.vmem [#allocation12], %s425
        %s427 = smul.u32 8, %s33
        %v429 = vld [vmem:[%s376] sm:$0xf]
        %v430 = vld [vmem:[%s376 + $0x4] sm:$0xf]
        %v431 = vld [vmem:[%s376 + $0x8] sm:$0xf]
        %v432 = vld [vmem:[%s376 + $0xc] sm:$0xf]
        %v433 = vld [vmem:[%s376 + $0x10] sm:$0xf]
        %v434 = vld [vmem:[%s376 + $0x14] sm:$0xf]
        %v435 = vld [vmem:[%s376 + $0x18] sm:$0xf]
        %v436 = vld [vmem:[%s376 + $0x1c] sm:$0xf]
        %v437 = vld [vmem:[%s376 + $0x20] sm:$0xf]
        %v438 = vld [vmem:[%s376 + $0x24] sm:$0xf]
        %v439 = vld [vmem:[%s376 + $0x28] sm:$0xf]
        %v440 = vld [vmem:[%s376 + $0x2c] sm:$0xf]
        %v441 = vld [vmem:[%s376 + $0x30] sm:$0xf]
        %v442 = vld [vmem:[%s376 + $0x34] sm:$0xf]
        %v443 = vld [vmem:[%s376 + $0x38] sm:$0xf]
        %v444 = vld [vmem:[%s376 + $0x3c] sm:$0xf]
        %v445 = vld [vmem:[%s376 + $0x40] sm:$0xf]
        %v446 = vld [vmem:[%s376 + $0x44] sm:$0xf]
        %v447 = vld [vmem:[%s376 + $0x48] sm:$0xf]
        %v448 = vld [vmem:[%s376 + $0x4c] sm:$0xf]
        %v449 = vld [vmem:[#allocation6] sm:$0xf]
        %v450 = vld [vmem:[#allocation6 + $0x4] sm:$0xf]
        %v451 = vld [vmem:[#allocation6 + $0x8] sm:$0xf]
        %v452 = vld [vmem:[#allocation6 + $0xc] sm:$0xf]
        %v453 = vld [vmem:[#allocation6 + $0x10] sm:$0xf]
        %v454 = vld [vmem:[#allocation6 + $0x14] sm:$0xf]
        %v455 = vld [vmem:[#allocation6 + $0x18] sm:$0xf]
        %v456 = vld [vmem:[#allocation6 + $0x1c] sm:$0xf]
        %v457 = vld [vmem:[#allocation6 + $0x20] sm:$0xf]
        %v458 = vld [vmem:[#allocation6 + $0x24] sm:$0xf]
        %v459 = vld [vmem:[#allocation6 + $0x28] sm:$0xf]
        %v460 = vld [vmem:[#allocation6 + $0x2c] sm:$0xf]
        %v461 = vld [vmem:[#allocation6 + $0x30] sm:$0xf]
        %v462 = vld [vmem:[#allocation6 + $0x34] sm:$0xf]
        %v463 = vld [vmem:[#allocation6 + $0x38] sm:$0xf]
        %v464 = vld [vmem:[#allocation6 + $0x3c] sm:$0xf]
        %v465 = vld [vmem:[%s2] sm:$0x1]
        %v467 = vlaneseq
        %v468 = vshrl.u32 %v467, 7
        %v469 = vsub.s32 0, %v468
        %v470 = vrot.slane %v465, %v469
        %v492 = vunpack.c.l.b16 %v429
        %v493 = vunpack.c.l.b16 %v430
        %v494 = vunpack.c.l.b16 %v431
        %v495 = vunpack.c.l.b16 %v432
        %v496 = vunpack.c.l.b16 %v433
        %v497 = vunpack.c.l.b16 %v434
        %v498 = vunpack.c.l.b16 %v435
        %v499 = vunpack.c.l.b16 %v436
        %v500 = vunpack.c.l.b16 %v437
        %v501 = vunpack.c.l.b16 %v438
        %v502 = vunpack.c.l.b16 %v439
        %v503 = vunpack.c.l.b16 %v440
        %v504 = vunpack.c.l.b16 %v441
        %v505 = vunpack.c.l.b16 %v442
        %v506 = vunpack.c.l.b16 %v443
        %v507 = vunpack.c.l.b16 %v444
        %v508 = vunpack.c.l.b16 %v445
        %v509 = vunpack.c.l.b16 %v446
        %v510 = vunpack.c.l.b16 %v447
        %v511 = vunpack.c.l.b16 %v448
        %v512 = vpack.c.b16 %v493, %v492
        %v513 = vpack.c.b16 %v495, %v494
        %v514 = vpack.c.b16 %v497, %v496
        %v515 = vpack.c.b16 %v499, %v498
        %v516 = vpack.c.b16 %v501, %v500
        %v517 = vpack.c.b16 %v503, %v502
        %v518 = vpack.c.b16 %v505, %v504
        %v519 = vpack.c.b16 %v507, %v506
        %v520 = vpack.c.b16 %v509, %v508
        %v521 = vpack.c.b16 %v511, %v510
        %v548 = vunpack.c.l.b16 %v449
        %v549 = vunpack.c.l.b16 %v450
        %v550 = vunpack.c.l.b16 %v451
        %v551 = vunpack.c.l.b16 %v452
        %v552 = vunpack.c.l.b16 %v453
        %v553 = vunpack.c.l.b16 %v454
        %v554 = vunpack.c.l.b16 %v455
        %v555 = vunpack.c.l.b16 %v456
        %v556 = vunpack.c.l.b16 %v457
        %v557 = vunpack.c.l.b16 %v458
        %v558 = vunpack.c.l.b16 %v459
        %v559 = vunpack.c.l.b16 %v460
        %v560 = vunpack.c.l.b16 %v461
        %v561 = vunpack.c.l.b16 %v462
        %v562 = vunpack.c.l.b16 %v463
        %v563 = vunpack.c.l.b16 %v464
        %v564 = vpack.c.b16 %v549, %v548
        %v565 = vpack.c.b16 %v551, %v550
        %v566 = vpack.c.b16 %v553, %v552
        %v567 = vpack.c.b16 %v555, %v554
        %v568 = vpack.c.b16 %v557, %v556
        %v569 = vpack.c.b16 %v559, %v558
        %v570 = vpack.c.b16 %v561, %v560
        %v571 = vpack.c.b16 %v563, %v562
        %580 = vmatprep.subr.bf16.mxu0 0
        %581 = vmatpush1.bf16.msra.mxu0 %v571
        %582 = vmatprep.subr.bf16.mxu0 0
        %583 = vmatpush1.bf16.msra.mxu0 %v570
        %584 = vmatprep.subr.bf16.mxu0 0
        %585 = vmatpush1.bf16.msra.mxu0 %v569
        %586 = vmatprep.subr.bf16.mxu0 0
        %587 = vmatpush1.bf16.msra.mxu0 %v568
        %588 = vmatprep.subr.bf16.mxu0 0
        %589 = vmatpush1.bf16.msra.mxu0 %v567
        %590 = vmatprep.subr.bf16.mxu0 0
        %591 = vmatpush1.bf16.msra.mxu0 %v566
        %592 = vmatprep.subr.bf16.mxu0 0
        %593 = vmatpush1.bf16.msra.mxu0 %v565
        %594 = vmatprep.subr.bf16.mxu0 0
        %595 = vmatpush1.bf16.msra.mxu0 %v564
        %596 = vmatprep.subr.bf16.mxu0 0
        %597 = vmatpush2.bf16.msra.mxu0 0
        %598 = vmatprep.subr.bf16.mxu0 0
        %599 = vmatpush2.bf16.msra.mxu0 0
        %600 = vmatprep.subr.bf16.mxu0 0
        %601 = vmatpush2.bf16.msra.mxu0 0
        %602 = vmatprep.subr.bf16.mxu0 0
        %603 = vmatpush2.bf16.msra.mxu0 0
        %604 = vmatprep.subr.bf16.mxu0 0
        %605 = vmatpush2.bf16.msra.mxu0 0
        %606 = vmatprep.subr.bf16.mxu0 0
        %607 = vmatpush2.bf16.msra.mxu0 0
        %608 = vmatprep.subr.bf16.mxu0 0
        %609 = vmatpush2.bf16.msra.mxu0 0
        %610 = vmatprep.subr.bf16.mxu0 0
        %611 = vmatpush2.bf16.msra.mxu0 0
        %612 = vmatprep.mubr.bf16.mxu0 0
        %613 = vmatmul.mubr.bf16.gmra.mxu0 %v512
        %v614 = vpop.f32.mrf.mxu0
        %v615 = vadd.f32 %v470, %v614
        %v616 = vpop.f32.mrf.mxu0
        %v617 = vpop.f32.mrf.mxu0
        %v618 = vadd.f32 %v470, %v617
        %v619 = vpop.f32.mrf.mxu0
        %620 = vmatprep.mubr.bf16.mxu0 0
        %621 = vmatmul.mubr.bf16.gmra.mxu0 %v513
        %v622 = vpop.f32.mrf.mxu0
        %v623 = vadd.f32 %v470, %v622
        %v624 = vpop.f32.mrf.mxu0
        %v625 = vpop.f32.mrf.mxu0
        %v626 = vadd.f32 %v470, %v625
        %v627 = vpop.f32.mrf.mxu0
        %628 = vmatprep.mubr.bf16.mxu0 0
        %629 = vmatmul.mubr.bf16.gmra.mxu0 %v514
        %v630 = vpop.f32.mrf.mxu0
        %v631 = vadd.f32 %v470, %v630
        %v632 = vpop.f32.mrf.mxu0
        %v633 = vpop.f32.mrf.mxu0
        %v634 = vadd.f32 %v470, %v633
        %v635 = vpop.f32.mrf.mxu0
        %636 = vmatprep.mubr.bf16.mxu0 0
        %637 = vmatmul.mubr.bf16.gmra.mxu0 %v515
        %v638 = vpop.f32.mrf.mxu0
        %v639 = vadd.f32 %v470, %v638
        %v640 = vpop.f32.mrf.mxu0
        %v641 = vpop.f32.mrf.mxu0
        %v642 = vadd.f32 %v470, %v641
        %v643 = vpop.f32.mrf.mxu0
        %644 = vmatprep.mubr.bf16.mxu0 0
        %645 = vmatmul.mubr.bf16.gmra.mxu0 %v516
        %v646 = vpop.f32.mrf.mxu0
        %v647 = vadd.f32 %v470, %v646
        %v648 = vpop.f32.mrf.mxu0
        %v649 = vpop.f32.mrf.mxu0
        %v650 = vadd.f32 %v470, %v649
        %v651 = vpop.f32.mrf.mxu0
        %652 = vmatprep.mubr.bf16.mxu0 0
        %653 = vmatmul.mubr.bf16.gmra.mxu0 %v517
        %v654 = vpop.f32.mrf.mxu0
        %v655 = vadd.f32 %v470, %v654
        %v656 = vpop.f32.mrf.mxu0
        %v657 = vpop.f32.mrf.mxu0
        %v658 = vadd.f32 %v470, %v657
        %v659 = vpop.f32.mrf.mxu0
        %660 = vmatprep.mubr.bf16.mxu0 0
        %661 = vmatmul.mubr.bf16.gmra.mxu0 %v518
        %v662 = vpop.f32.mrf.mxu0
        %v663 = vadd.f32 %v470, %v662
        %v664 = vpop.f32.mrf.mxu0
        %v665 = vpop.f32.mrf.mxu0
        %v666 = vadd.f32 %v470, %v665
        %v667 = vpop.f32.mrf.mxu0
        %668 = vmatprep.mubr.bf16.mxu0 0
        %669 = vmatmul.mubr.bf16.gmra.mxu0 %v519
        %v670 = vpop.f32.mrf.mxu0
        %v671 = vadd.f32 %v470, %v670
        %v672 = vpop.f32.mrf.mxu0
        %v673 = vpop.f32.mrf.mxu0
        %v674 = vadd.f32 %v470, %v673
        %v675 = vpop.f32.mrf.mxu0
        %676 = vmatprep.mubr.bf16.mxu0 0
        %677 = vmatmul.mubr.bf16.gmra.mxu0 %v520
        %v678 = vpop.f32.mrf.mxu0
        %v679 = vadd.f32 %v470, %v678
        %v680 = vpop.f32.mrf.mxu0
        %v681 = vpop.f32.mrf.mxu0
        %v682 = vadd.f32 %v470, %v681
        %v683 = vpop.f32.mrf.mxu0
        %684 = vmatprep.mubr.bf16.mxu0 0
        %685 = vmatmul.mubr.bf16.gmra.mxu0 %v521
        %v686 = vpop.f32.mrf.mxu0
        %v687 = vadd.f32 %v470, %v686
        %v688 = vpop.f32.mrf.mxu0
        %v689 = vpop.f32.mrf.mxu0
        %v690 = vadd.f32 %v470, %v689
        %v691 = vpop.f32.mrf.mxu0
        %692 = vdwg.mxu0
        %v693 = vmax.f32 %v615, 0.0
        %v694 = vmax.f32 %v618, 0.0
        %v695 = vmax.f32 %v623, 0.0
        %v696 = vmax.f32 %v626, 0.0
        %v697 = vmax.f32 %v631, 0.0
        %v698 = vmax.f32 %v634, 0.0
        %v699 = vmax.f32 %v639, 0.0
        %v700 = vmax.f32 %v642, 0.0
        %v701 = vmax.f32 %v647, 0.0
        %v702 = vmax.f32 %v650, 0.0
        %v703 = vmax.f32 %v655, 0.0
        %v704 = vmax.f32 %v658, 0.0
        %v705 = vmax.f32 %v663, 0.0
        %v706 = vmax.f32 %v666, 0.0
        %v707 = vmax.f32 %v671, 0.0
        %v708 = vmax.f32 %v674, 0.0
        %v709 = vmax.f32 %v679, 0.0
        %v710 = vmax.f32 %v682, 0.0
        %v711 = vmax.f32 %v687, 0.0
        %v712 = vmax.f32 %v690, 0.0
        %vm713 = vcmask 1040384
        %vm714 = vsmask.f32 256
        %vm715 = vmand %vm713, %vm714
        %v716 = vld [vmem:[#allocation2] sm:$0x1]
        %v717 = vsel %vm715, 0, %v716
        %718 = vst [vmem:[#allocation2] sm:$0x1] %v717
        %v719 = vld [vmem:[#allocation2 + $0xc] sm:$0x1]
        %v720 = vsel %vm715, 0, %v719
        %721 = vst [vmem:[#allocation2 + $0xc] sm:$0x1] %v720
        %v722 = vld [vmem:[#allocation2 + $0x18] sm:$0x1]
        %v723 = vsel %vm715, 0, %v722
        %724 = vst [vmem:[#allocation2 + $0x18] sm:$0x1] %v723
        %v725 = vld [vmem:[#allocation2 + $0x24] sm:$0x1]
        %v726 = vsel %vm715, 0, %v725
        %727 = vst [vmem:[#allocation2 + $0x24] sm:$0x1] %v726
        %v728 = vld [vmem:[#allocation2 + $0x30] sm:$0x1]
        %v729 = vsel %vm715, 0, %v728
        %730 = vst [vmem:[#allocation2 + $0x30] sm:$0x1] %v729
        %v731 = vld [vmem:[#allocation2 + $0x3c] sm:$0x1]
        %v732 = vsel %vm715, 0, %v731
        %733 = vst [vmem:[#allocation2 + $0x3c] sm:$0x1] %v732
        %v734 = vld [vmem:[#allocation2 + $0x48] sm:$0x1]
        %v735 = vsel %vm715, 0, %v734
        %736 = vst [vmem:[#allocation2 + $0x48] sm:$0x1] %v735
        %v737 = vld [vmem:[#allocation2 + $0x54] sm:$0x1]
        %v738 = vsel %vm715, 0, %v737
        %739 = vst [vmem:[#allocation2 + $0x54] sm:$0x1] %v738
        %v740 = vld [vmem:[#allocation2 + $0x60] sm:$0x1]
        %v741 = vsel %vm715, 0, %v740
        %742 = vst [vmem:[#allocation2 + $0x60] sm:$0x1] %v741
        %v743 = vld [vmem:[#allocation2 + $0x6c] sm:$0x1]
        %v744 = vsel %vm715, 0, %v743
        %745 = vst [vmem:[#allocation2 + $0x6c] sm:$0x1] %v744
        %vm746 = vsmask.f32 7938
        %vm747 = vmand %vm713, %vm746
        %v748 = vld [vmem:[#allocation2 + $0x8] sm:$0x1]
        %v749 = vsel %vm747, 0, %v748
        %750 = vst [vmem:[#allocation2 + $0x8] sm:$0x1] %v749
        %v751 = vld [vmem:[#allocation2 + $0x14] sm:$0x1]
        %v752 = vsel %vm747, 0, %v751
        %753 = vst [vmem:[#allocation2 + $0x14] sm:$0x1] %v752
        %v754 = vld [vmem:[#allocation2 + $0x20] sm:$0x1]
        %v755 = vsel %vm747, 0, %v754
        %756 = vst [vmem:[#allocation2 + $0x20] sm:$0x1] %v755
        %v757 = vld [vmem:[#allocation2 + $0x2c] sm:$0x1]
        %v758 = vsel %vm747, 0, %v757
        %759 = vst [vmem:[#allocation2 + $0x2c] sm:$0x1] %v758
        %v760 = vld [vmem:[#allocation2 + $0x38] sm:$0x1]
        %v761 = vsel %vm747, 0, %v760
        %762 = vst [vmem:[#allocation2 + $0x38] sm:$0x1] %v761
        %v763 = vld [vmem:[#allocation2 + $0x44] sm:$0x1]
        %v764 = vsel %vm747, 0, %v763
        %765 = vst [vmem:[#allocation2 + $0x44] sm:$0x1] %v764
        %v766 = vld [vmem:[#allocation2 + $0x50] sm:$0x1]
        %v767 = vsel %vm747, 0, %v766
        %768 = vst [vmem:[#allocation2 + $0x50] sm:$0x1] %v767
        %v769 = vld [vmem:[#allocation2 + $0x5c] sm:$0x1]
        %v770 = vsel %vm747, 0, %v769
        %771 = vst [vmem:[#allocation2 + $0x5c] sm:$0x1] %v770
        %v772 = vld [vmem:[#allocation2 + $0x68] sm:$0x1]
        %v773 = vsel %vm747, 0, %v772
        %774 = vst [vmem:[#allocation2 + $0x68] sm:$0x1] %v773
        %v775 = vld [vmem:[#allocation2 + $0x74] sm:$0x1]
        %v776 = vsel %vm747, 0, %v775
        %777 = vst [vmem:[#allocation2 + $0x74] sm:$0x1] %v776
        %v778 = vpack.c.bf16 %v694, %v693
        %v779 = vpack.c.bf16 %v696, %v695
        %v780 = vpack.c.bf16 %v698, %v697
        %v781 = vpack.c.bf16 %v700, %v699
        %v782 = vpack.c.bf16 %v702, %v701
        %v783 = vpack.c.bf16 %v704, %v703
        %v784 = vpack.c.bf16 %v706, %v705
        %v785 = vpack.c.bf16 %v708, %v707
        %v786 = vpack.c.bf16 %v710, %v709
        %v787 = vpack.c.bf16 %v712, %v711
        %v798 = vunpack.c.l.b16 %v778
        %v799 = vunpack.c.h.b16 %v778
        %v800 = vunpack.c.l.b16 %v779
        %v801 = vunpack.c.h.b16 %v779
        %v802 = vunpack.c.l.b16 %v780
        %v803 = vunpack.c.h.b16 %v780
        %v804 = vunpack.c.l.b16 %v781
        %v805 = vunpack.c.h.b16 %v781
        %v806 = vunpack.c.l.b16 %v782
        %v807 = vunpack.c.h.b16 %v782
        %v808 = vunpack.c.l.b16 %v783
        %v809 = vunpack.c.h.b16 %v783
        %v810 = vunpack.c.l.b16 %v784
        %v811 = vunpack.c.h.b16 %v784
        %v812 = vunpack.c.l.b16 %v785
        %v813 = vunpack.c.h.b16 %v785
        %v814 = vunpack.c.l.b16 %v786
        %v815 = vunpack.c.h.b16 %v786
        %v816 = vunpack.c.l.b16 %v787
        %v817 = vunpack.c.h.b16 %v787
        %v818 = vpack.c.b16 %v798, %v798
        %v819 = vpack.c.b16 %v799, %v799
        %v820 = vpack.c.b16 %v800, %v800
        %v821 = vpack.c.b16 %v801, %v801
        %v822 = vpack.c.b16 %v802, %v802
        %v823 = vpack.c.b16 %v803, %v803
        %v824 = vpack.c.b16 %v804, %v804
        %v825 = vpack.c.b16 %v805, %v805
        %v826 = vpack.c.b16 %v806, %v806
        %v827 = vpack.c.b16 %v807, %v807
        %v828 = vpack.c.b16 %v808, %v808
        %v829 = vpack.c.b16 %v809, %v809
        %v830 = vpack.c.b16 %v810, %v810
        %v831 = vpack.c.b16 %v811, %v811
        %v832 = vpack.c.b16 %v812, %v812
        %v833 = vpack.c.b16 %v813, %v813
        %v834 = vpack.c.b16 %v814, %v814
        %v835 = vpack.c.b16 %v815, %v815
        %v836 = vpack.c.b16 %v816, %v816
        %v837 = vpack.c.b16 %v817, %v817
        %vm838 = vsmask.f32 4368
        %vm839 = vmor %vm714, %vm838
        %v841 = vshrl.u32 %v818, 16
        %v843 = vrot.slane %v841, 7
        %v844 = vshll.u32 %v818, 16
        %v846 = vor.u32 %v843, %v844
        %v847 = vrot.slane %v843, 4
        %v849 = vshrl.u32 %v819, 16
        %v851 = vrot.slane %v849, 7
        %v852 = vshll.u32 %v819, 16
        %v854 = vor.u32 %v851, %v852
        %v855 = vsel %vm839, %v847, %v854
        %v856 = vrot.slane %v851, 4
        %v858 = vshrl.u32 %v820, 16
        %v860 = vrot.slane %v858, 7
        %v861 = vshll.u32 %v820, 16
        %v863 = vor.u32 %v860, %v861
        %v864 = vrot.slane %v860, 4
        %v866 = vshrl.u32 %v821, 16
        %v868 = vrot.slane %v866, 7
        %v869 = vshll.u32 %v821, 16
        %v871 = vor.u32 %v868, %v869
        %v872 = vsel %vm839, %v864, %v871
        %v873 = vrot.slane %v868, 4
        %v875 = vshrl.u32 %v822, 16
        %v877 = vrot.slane %v875, 7
        %v878 = vshll.u32 %v822, 16
        %v880 = vor.u32 %v877, %v878
        %v881 = vrot.slane %v877, 4
        %v883 = vshrl.u32 %v823, 16
        %v885 = vrot.slane %v883, 7
        %v886 = vshll.u32 %v823, 16
        %v888 = vor.u32 %v885, %v886
        %v889 = vsel %vm839, %v881, %v888
        %v890 = vrot.slane %v885, 4
        %v892 = vshrl.u32 %v824, 16
        %v894 = vrot.slane %v892, 7
        %v895 = vshll.u32 %v824, 16
        %v897 = vor.u32 %v894, %v895
        %v898 = vrot.slane %v894, 4
        %v900 = vshrl.u32 %v825, 16
        %v902 = vrot.slane %v900, 7
        %v903 = vshll.u32 %v825, 16
        %v905 = vor.u32 %v902, %v903
        %v906 = vsel %vm839, %v898, %v905
        %v907 = vrot.slane %v902, 4
        %v909 = vshrl.u32 %v826, 16
        %v911 = vrot.slane %v909, 7
        %v912 = vshll.u32 %v826, 16
        %v914 = vor.u32 %v911, %v912
        %v915 = vrot.slane %v911, 4
        %v917 = vshrl.u32 %v827, 16
        %v919 = vrot.slane %v917, 7
        %v920 = vshll.u32 %v827, 16
        %v922 = vor.u32 %v919, %v920
        %v923 = vsel %vm839, %v915, %v922
        %v924 = vrot.slane %v919, 4
        %v926 = vshrl.u32 %v828, 16
        %v928 = vrot.slane %v926, 7
        %v929 = vshll.u32 %v828, 16
        %v931 = vor.u32 %v928, %v929
        %v932 = vrot.slane %v928, 4
        %v934 = vshrl.u32 %v829, 16
        %v936 = vrot.slane %v934, 7
        %v937 = vshll.u32 %v829, 16
        %v939 = vor.u32 %v936, %v937
        %v940 = vsel %vm839, %v932, %v939
        %v941 = vrot.slane %v936, 4
        %v943 = vshrl.u32 %v830, 16
        %v945 = vrot.slane %v943, 7
        %v946 = vshll.u32 %v830, 16
        %v948 = vor.u32 %v945, %v946
        %v949 = vrot.slane %v945, 4
        %v951 = vshrl.u32 %v831, 16
        %v953 = vrot.slane %v951, 7
        %v954 = vshll.u32 %v831, 16
        %v956 = vor.u32 %v953, %v954
        %v957 = vsel %vm839, %v949, %v956
        %v958 = vrot.slane %v953, 4
        %v960 = vshrl.u32 %v832, 16
        %v962 = vrot.slane %v960, 7
        %v963 = vshll.u32 %v832, 16
        %v965 = vor.u32 %v962, %v963
        %v966 = vrot.slane %v962, 4
        %v968 = vshrl.u32 %v833, 16
        %v970 = vrot.slane %v968, 7
        %v971 = vshll.u32 %v833, 16
        %v973 = vor.u32 %v970, %v971
        %v974 = vsel %vm839, %v966, %v973
        %v975 = vrot.slane %v970, 4
        %v977 = vshrl.u32 %v834, 16
        %v979 = vrot.slane %v977, 7
        %v980 = vshll.u32 %v834, 16
        %v982 = vor.u32 %v979, %v980
        %v983 = vrot.slane %v979, 4
        %v985 = vshrl.u32 %v835, 16
        %v987 = vrot.slane %v985, 7
        %v988 = vshll.u32 %v835, 16
        %v990 = vor.u32 %v987, %v988
        %v991 = vsel %vm839, %v983, %v990
        %v992 = vrot.slane %v987, 4
        %v994 = vshrl.u32 %v836, 16
        %v996 = vrot.slane %v994, 7
        %v997 = vshll.u32 %v836, 16
        %v999 = vor.u32 %v996, %v997
        %v1000 = vrot.slane %v996, 4
        %v1002 = vshrl.u32 %v837, 16
        %v1004 = vrot.slane %v1002, 7
        %v1005 = vshll.u32 %v837, 16
        %v1007 = vor.u32 %v1004, %v1005
        %v1008 = vsel %vm839, %v1000, %v1007
        %v1009 = vrot.slane %v1004, 4
        %vm1040 = vcmask 1043456
        %vm1041 = vmand %vm1040, %vm746
        %v1042 = vld [vmem:[#allocation2] sm:$0xf]
        %v1043 = vsel %vm1041, %v846, %v1042
        %1044 = vst [vmem:[#allocation2] sm:$0xf] %v1043
        %1045 = vst [vmem:[#allocation2 + $0x4] sm:$0xf] %v855
        %v1046 = vld [vmem:[#allocation2 + $0x8] sm:$0x1]
        %v1047 = vsel %vm715, %v856, %v1046
        %1048 = vst [vmem:[#allocation2 + $0x8] sm:$0x1] %v1047
        %v1049 = vld [vmem:[#allocation2 + $0xc] sm:$0xf]
        %v1050 = vsel %vm1041, %v863, %v1049
        %1051 = vst [vmem:[#allocation2 + $0xc] sm:$0xf] %v1050
        %1052 = vst [vmem:[#allocation2 + $0x10] sm:$0xf] %v872
        %v1053 = vld [vmem:[#allocation2 + $0x14] sm:$0x1]
        %v1054 = vsel %vm715, %v873, %v1053
        %1055 = vst [vmem:[#allocation2 + $0x14] sm:$0x1] %v1054
        %v1056 = vld [vmem:[#allocation2 + $0x18] sm:$0xf]
        %v1057 = vsel %vm1041, %v880, %v1056
        %1058 = vst [vmem:[#allocation2 + $0x18] sm:$0xf] %v1057
        %1059 = vst [vmem:[#allocation2 + $0x1c] sm:$0xf] %v889
        %v1060 = vld [vmem:[#allocation2 + $0x20] sm:$0x1]
        %v1061 = vsel %vm715, %v890, %v1060
        %1062 = vst [vmem:[#allocation2 + $0x20] sm:$0x1] %v1061
        %v1063 = vld [vmem:[#allocation2 + $0x24] sm:$0xf]
        %v1064 = vsel %vm1041, %v897, %v1063
        %1065 = vst [vmem:[#allocation2 + $0x24] sm:$0xf] %v1064
        %1066 = vst [vmem:[#allocation2 + $0x28] sm:$0xf] %v906
        %v1067 = vld [vmem:[#allocation2 + $0x2c] sm:$0x1]
        %v1068 = vsel %vm715, %v907, %v1067
        %1069 = vst [vmem:[#allocation2 + $0x2c] sm:$0x1] %v1068
        %v1070 = vld [vmem:[#allocation2 + $0x30] sm:$0xf]
        %v1071 = vsel %vm1041, %v914, %v1070
        %1072 = vst [vmem:[#allocation2 + $0x30] sm:$0xf] %v1071
        %1073 = vst [vmem:[#allocation2 + $0x34] sm:$0xf] %v923
        %v1074 = vld [vmem:[#allocation2 + $0x38] sm:$0x1]
        %v1075 = vsel %vm715, %v924, %v1074
        %1076 = vst [vmem:[#allocation2 + $0x38] sm:$0x1] %v1075
        %v1077 = vld [vmem:[#allocation2 + $0x3c] sm:$0xf]
        %v1078 = vsel %vm1041, %v931, %v1077
        %1079 = vst [vmem:[#allocation2 + $0x3c] sm:$0xf] %v1078
        %1080 = vst [vmem:[#allocation2 + $0x40] sm:$0xf] %v940
        %v1081 = vld [vmem:[#allocation2 + $0x44] sm:$0x1]
        %v1082 = vsel %vm715, %v941, %v1081
        %1083 = vst [vmem:[#allocation2 + $0x44] sm:$0x1] %v1082
        %v1084 = vld [vmem:[#allocation2 + $0x48] sm:$0xf]
        %v1085 = vsel %vm1041, %v948, %v1084
        %1086 = vst [vmem:[#allocation2 + $0x48] sm:$0xf] %v1085
        %1087 = vst [vmem:[#allocation2 + $0x4c] sm:$0xf] %v957
        %v1088 = vld [vmem:[#allocation2 + $0x50] sm:$0x1]
        %v1089 = vsel %vm715, %v958, %v1088
        %1090 = vst [vmem:[#allocation2 + $0x50] sm:$0x1] %v1089
        %v1091 = vld [vmem:[#allocation2 + $0x54] sm:$0xf]
        %v1092 = vsel %vm1041, %v965, %v1091
        %1093 = vst [vmem:[#allocation2 + $0x54] sm:$0xf] %v1092
        %1094 = vst [vmem:[#allocation2 + $0x58] sm:$0xf] %v974
        %v1095 = vld [vmem:[#allocation2 + $0x5c] sm:$0x1]
        %v1096 = vsel %vm715, %v975, %v1095
        %1097 = vst [vmem:[#allocation2 + $0x5c] sm:$0x1] %v1096
        %v1098 = vld [vmem:[#allocation2 + $0x60] sm:$0xf]
        %v1099 = vsel %vm1041, %v982, %v1098
        %1100 = vst [vmem:[#allocation2 + $0x60] sm:$0xf] %v1099
        %1101 = vst [vmem:[#allocation2 + $0x64] sm:$0xf] %v991
        %v1102 = vld [vmem:[#allocation2 + $0x68] sm:$0x1]
        %v1103 = vsel %vm715, %v992, %v1102
        %1104 = vst [vmem:[#allocation2 + $0x68] sm:$0x1] %v1103
        %v1105 = vld [vmem:[#allocation2 + $0x6c] sm:$0xf]
        %v1106 = vsel %vm1041, %v999, %v1105
        %1107 = vst [vmem:[#allocation2 + $0x6c] sm:$0xf] %v1106
        %1108 = vst [vmem:[#allocation2 + $0x70] sm:$0xf] %v1008
        %v1109 = vld [vmem:[#allocation2 + $0x74] sm:$0x1]
        %v1110 = vsel %vm715, %v1009, %v1109
        %1111 = vst [vmem:[#allocation2 + $0x74] sm:$0x1] %v1110
        %v1112 = vld [vmem:[#allocation2] sm:$0xf]
        %v1113 = vld [vmem:[#allocation2 + $0x4] sm:$0xf]
        %v1114 = vld [vmem:[#allocation2 + $0xc] sm:$0xf]
        %v1115 = vld [vmem:[#allocation2 + $0x10] sm:$0xf]
        %v1116 = vld [vmem:[#allocation2 + $0x18] sm:$0xf]
        %v1117 = vld [vmem:[#allocation2 + $0x1c] sm:$0xf]
        %v1118 = vld [vmem:[#allocation2 + $0x24] sm:$0xf]
        %v1119 = vld [vmem:[#allocation2 + $0x28] sm:$0xf]
        %v1120 = vld [vmem:[#allocation2 + $0x30] sm:$0xf]
        %v1121 = vld [vmem:[#allocation2 + $0x34] sm:$0xf]
        %v1122 = vld [vmem:[#allocation2 + $0x3c] sm:$0xf]
        %v1123 = vld [vmem:[#allocation2 + $0x40] sm:$0xf]
        %v1124 = vld [vmem:[#allocation2 + $0x48] sm:$0xf]
        %v1125 = vld [vmem:[#allocation2 + $0x4c] sm:$0xf]
        %v1126 = vld [vmem:[#allocation2 + $0x54] sm:$0xf]
        %v1127 = vld [vmem:[#allocation2 + $0x58] sm:$0xf]
        %v1128 = vld [vmem:[#allocation2 + $0x60] sm:$0xf]
        %v1129 = vld [vmem:[#allocation2 + $0x64] sm:$0xf]
        %v1130 = vld [vmem:[#allocation2 + $0x6c] sm:$0xf]
        %v1131 = vld [vmem:[#allocation2 + $0x70] sm:$0xf]
        %v1132 = vld [vmem:[#allocation2 + $0x8] sm:$0x1]
        %v1133 = vld [vmem:[#allocation2 + $0x14] sm:$0x1]
        %v1134 = vld [vmem:[#allocation2 + $0x20] sm:$0x1]
        %v1135 = vld [vmem:[#allocation2 + $0x2c] sm:$0x1]
        %v1136 = vld [vmem:[#allocation2 + $0x38] sm:$0x1]
        %v1137 = vld [vmem:[#allocation2 + $0x44] sm:$0x1]
        %v1138 = vld [vmem:[#allocation2 + $0x50] sm:$0x1]
        %v1139 = vld [vmem:[#allocation2 + $0x5c] sm:$0x1]
        %v1140 = vld [vmem:[#allocation2 + $0x68] sm:$0x1]
        %v1141 = vld [vmem:[#allocation2 + $0x74] sm:$0x1]
        %v1142 = vld [vmem:[#allocation2] sm:$0xe]
        %v1143 = vld [vmem:[#allocation2 + $0xc] sm:$0xe]
        %v1144 = vld [vmem:[#allocation2 + $0x18] sm:$0xe]
        %v1145 = vld [vmem:[#allocation2 + $0x24] sm:$0xe]
        %v1146 = vld [vmem:[#allocation2 + $0x30] sm:$0xe]
        %v1147 = vld [vmem:[#allocation2 + $0x3c] sm:$0xe]
        %v1148 = vld [vmem:[#allocation2 + $0x48] sm:$0xe]
        %v1149 = vld [vmem:[#allocation2 + $0x54] sm:$0xe]
        %v1150 = vld [vmem:[#allocation2 + $0x60] sm:$0xe]
        %v1151 = vld [vmem:[#allocation2 + $0x6c] sm:$0xe]
        %v1152 = vld [vmem:[#allocation8] sm:$0xf]
        %v1153 = vld [vmem:[#allocation8 + $0x4] sm:$0xf]
        %v1154 = vld [vmem:[#allocation8 + $0x8] sm:$0xf]
        %v1155 = vld [vmem:[#allocation8 + $0xc] sm:$0xf]
        %v1156 = vld [vmem:[#allocation8 + $0x10] sm:$0xf]
        %v1157 = vld [vmem:[#allocation8 + $0x14] sm:$0xf]
        %v1158 = vld [vmem:[#allocation8 + $0x18] sm:$0xf]
        %v1159 = vld [vmem:[#allocation8 + $0x1c] sm:$0xf]
        %v1160 = vld [vmem:[#allocation8 + $0x20] sm:$0xf]
        %v1161 = vld [vmem:[#allocation8 + $0x24] sm:$0xf]
        %v1162 = vld [vmem:[#allocation8 + $0x28] sm:$0xf]
        %v1163 = vld [vmem:[#allocation8 + $0x2c] sm:$0xf]
        %v1164 = vld [vmem:[#allocation8 + $0x30] sm:$0xf]
        %v1165 = vld [vmem:[#allocation8 + $0x34] sm:$0xf]
        %v1166 = vld [vmem:[#allocation8 + $0x38] sm:$0xf]
        %v1167 = vld [vmem:[#allocation8 + $0x3c] sm:$0xf]
        %vm1168 = vsmask.f32 3328
        %vm1169 = vsmask.f32 7440
        %vm1170 = vmor %vm1168, %vm1169
        %v1172 = vshrl.u32 %v1112, 16
        %v1174 = vrot.slane %v1172, 4
        %v1175 = vshll.u32 %v1112, 16
        %v1177 = vrot.slane %v1175, 5
        %v1178 = vor.u32 %v1174, %v1177
        %v1179 = vrot.slane %v1178, 4
        %v1181 = vshll.u32 %v1113, 16
        %v1183 = vrot.slane %v1181, 5
        %v1184 = vsel %vm1170, %v1179, %v1183
        %v1185 = vshrl.u32 %v1113, 16
        %v1187 = vrot.slane %v1185, 4
        %v1188 = vor.u32 %v1187, %v1183
        %v1189 = vrot.slane %v1188, 4
        %v1191 = vshll.u32 %v1132, 16
        %v1193 = vrot.slane %v1191, 5
        %v1194 = vsel %vm1170, %v1189, %v1193
        %v1196 = vshrl.u32 %v1114, 16
        %v1198 = vrot.slane %v1196, 4
        %v1199 = vshll.u32 %v1114, 16
        %v1201 = vrot.slane %v1199, 5
        %v1202 = vor.u32 %v1198, %v1201
        %v1203 = vrot.slane %v1202, 4
        %v1205 = vshll.u32 %v1115, 16
        %v1207 = vrot.slane %v1205, 5
        %v1208 = vsel %vm1170, %v1203, %v1207
        %v1209 = vshrl.u32 %v1115, 16
        %v1211 = vrot.slane %v1209, 4
        %v1212 = vor.u32 %v1211, %v1207
        %v1213 = vrot.slane %v1212, 4
        %v1215 = vshll.u32 %v1133, 16
        %v1217 = vrot.slane %v1215, 5
        %v1218 = vsel %vm1170, %v1213, %v1217
        %v1220 = vshrl.u32 %v1116, 16
        %v1222 = vrot.slane %v1220, 4
        %v1223 = vshll.u32 %v1116, 16
        %v1225 = vrot.slane %v1223, 5
        %v1226 = vor.u32 %v1222, %v1225
        %v1227 = vrot.slane %v1226, 4
        %v1229 = vshll.u32 %v1117, 16
        %v1231 = vrot.slane %v1229, 5
        %v1232 = vsel %vm1170, %v1227, %v1231
        %v1233 = vshrl.u32 %v1117, 16
        %v1235 = vrot.slane %v1233, 4
        %v1236 = vor.u32 %v1235, %v1231
        %v1237 = vrot.slane %v1236, 4
        %v1239 = vshll.u32 %v1134, 16
        %v1241 = vrot.slane %v1239, 5
        %v1242 = vsel %vm1170, %v1237, %v1241
        %v1244 = vshrl.u32 %v1118, 16
        %v1246 = vrot.slane %v1244, 4
        %v1247 = vshll.u32 %v1118, 16
        %v1249 = vrot.slane %v1247, 5
        %v1250 = vor.u32 %v1246, %v1249
        %v1251 = vrot.slane %v1250, 4
        %v1253 = vshll.u32 %v1119, 16
        %v1255 = vrot.slane %v1253, 5
        %v1256 = vsel %vm1170, %v1251, %v1255
        %v1257 = vshrl.u32 %v1119, 16
        %v1259 = vrot.slane %v1257, 4
        %v1260 = vor.u32 %v1259, %v1255
        %v1261 = vrot.slane %v1260, 4
        %v1263 = vshll.u32 %v1135, 16
        %v1265 = vrot.slane %v1263, 5
        %v1266 = vsel %vm1170, %v1261, %v1265
        %v1268 = vshrl.u32 %v1120, 16
        %v1270 = vrot.slane %v1268, 4
        %v1271 = vshll.u32 %v1120, 16
        %v1273 = vrot.slane %v1271, 5
        %v1274 = vor.u32 %v1270, %v1273
        %v1275 = vrot.slane %v1274, 4
        %v1277 = vshll.u32 %v1121, 16
        %v1279 = vrot.slane %v1277, 5
        %v1280 = vsel %vm1170, %v1275, %v1279
        %v1281 = vshrl.u32 %v1121, 16
        %v1283 = vrot.slane %v1281, 4
        %v1284 = vor.u32 %v1283, %v1279
        %v1285 = vrot.slane %v1284, 4
        %v1287 = vshll.u32 %v1136, 16
        %v1289 = vrot.slane %v1287, 5
        %v1290 = vsel %vm1170, %v1285, %v1289
        %v1292 = vshrl.u32 %v1122, 16
        %v1294 = vrot.slane %v1292, 4
        %v1295 = vshll.u32 %v1122, 16
        %v1297 = vrot.slane %v1295, 5
        %v1298 = vor.u32 %v1294, %v1297
        %v1299 = vrot.slane %v1298, 4
        %v1301 = vshll.u32 %v1123, 16
        %v1303 = vrot.slane %v1301, 5
        %v1304 = vsel %vm1170, %v1299, %v1303
        %v1305 = vshrl.u32 %v1123, 16
        %v1307 = vrot.slane %v1305, 4
        %v1308 = vor.u32 %v1307, %v1303
        %v1309 = vrot.slane %v1308, 4
        %v1311 = vshll.u32 %v1137, 16
        %v1313 = vrot.slane %v1311, 5
        %v1314 = vsel %vm1170, %v1309, %v1313
        %v1316 = vshrl.u32 %v1124, 16
        %v1318 = vrot.slane %v1316, 4
        %v1319 = vshll.u32 %v1124, 16
        %v1321 = vrot.slane %v1319, 5
        %v1322 = vor.u32 %v1318, %v1321
        %v1323 = vrot.slane %v1322, 4
        %v1325 = vshll.u32 %v1125, 16
        %v1327 = vrot.slane %v1325, 5
        %v1328 = vsel %vm1170, %v1323, %v1327
        %v1329 = vshrl.u32 %v1125, 16
        %v1331 = vrot.slane %v1329, 4
        %v1332 = vor.u32 %v1331, %v1327
        %v1333 = vrot.slane %v1332, 4
        %v1335 = vshll.u32 %v1138, 16
        %v1337 = vrot.slane %v1335, 5
        %v1338 = vsel %vm1170, %v1333, %v1337
        %v1340 = vshrl.u32 %v1126, 16
        %v1342 = vrot.slane %v1340, 4
        %v1343 = vshll.u32 %v1126, 16
        %v1345 = vrot.slane %v1343, 5
        %v1346 = vor.u32 %v1342, %v1345
        %v1347 = vrot.slane %v1346, 4
        %v1349 = vshll.u32 %v1127, 16
        %v1351 = vrot.slane %v1349, 5
        %v1352 = vsel %vm1170, %v1347, %v1351
        %v1353 = vshrl.u32 %v1127, 16
        %v1355 = vrot.slane %v1353, 4
        %v1356 = vor.u32 %v1355, %v1351
        %v1357 = vrot.slane %v1356, 4
        %v1359 = vshll.u32 %v1139, 16
        %v1361 = vrot.slane %v1359, 5
        %v1362 = vsel %vm1170, %v1357, %v1361
        %s1363 = scalar_lea.vmem [#allocation8], 64
        %v1364 = vld [vmem:[%s1363] sm:$0xf]
        %v1365 = vld [vmem:[%s1363 + $0x4] sm:$0xf]
        %v1366 = vld [vmem:[%s1363 + $0x8] sm:$0xf]
        %v1367 = vld [vmem:[%s1363 + $0xc] sm:$0xf]
        %v1368 = vld [vmem:[%s1363 + $0x10] sm:$0xf]
        %v1369 = vld [vmem:[%s1363 + $0x14] sm:$0xf]
        %v1370 = vld [vmem:[%s1363 + $0x18] sm:$0xf]
        %v1371 = vld [vmem:[%s1363 + $0x1c] sm:$0xf]
        %v1372 = vld [vmem:[%s1363 + $0x20] sm:$0xf]
        %v1373 = vld [vmem:[%s1363 + $0x24] sm:$0xf]
        %v1374 = vld [vmem:[%s1363 + $0x28] sm:$0xf]
        %v1375 = vld [vmem:[%s1363 + $0x2c] sm:$0xf]
        %v1376 = vld [vmem:[%s1363 + $0x30] sm:$0xf]
        %v1377 = vld [vmem:[%s1363 + $0x34] sm:$0xf]
        %v1378 = vld [vmem:[%s1363 + $0x38] sm:$0xf]
        %v1379 = vld [vmem:[%s1363 + $0x3c] sm:$0xf]
        %v1380 = vunpack.c.l.b16 %v1184
        %v1381 = vunpack.c.l.b16 %v1194
        %v1382 = vunpack.c.l.b16 %v1208
        %v1383 = vunpack.c.l.b16 %v1218
        %v1384 = vunpack.c.l.b16 %v1232
        %v1385 = vunpack.c.l.b16 %v1242
        %v1386 = vunpack.c.l.b16 %v1256
        %v1387 = vunpack.c.l.b16 %v1266
        %v1388 = vunpack.c.l.b16 %v1280
        %v1389 = vunpack.c.l.b16 %v1290
        %v1390 = vunpack.c.l.b16 %v1304
        %v1391 = vunpack.c.l.b16 %v1314
        %v1392 = vunpack.c.l.b16 %v1328
        %v1393 = vunpack.c.l.b16 %v1338
        %v1394 = vunpack.c.l.b16 %v1352
        %v1395 = vunpack.c.l.b16 %v1362
        %v1396 = vpack.c.b16 %v1381, %v1380
        %v1397 = vpack.c.b16 %v1383, %v1382
        %v1398 = vpack.c.b16 %v1385, %v1384
        %v1399 = vpack.c.b16 %v1387, %v1386
        %v1400 = vpack.c.b16 %v1389, %v1388
        %v1401 = vpack.c.b16 %v1391, %v1390
        %v1402 = vpack.c.b16 %v1393, %v1392
        %v1403 = vpack.c.b16 %v1395, %v1394
        %v1428 = vunpack.c.l.b16 %v1364
        %v1429 = vunpack.c.l.b16 %v1365
        %v1430 = vunpack.c.l.b16 %v1366
        %v1431 = vunpack.c.l.b16 %v1367
        %v1432 = vunpack.c.l.b16 %v1368
        %v1433 = vunpack.c.l.b16 %v1369
        %v1434 = vunpack.c.l.b16 %v1370
        %v1435 = vunpack.c.l.b16 %v1371
        %v1436 = vunpack.c.l.b16 %v1372
        %v1437 = vunpack.c.l.b16 %v1373
        %v1438 = vunpack.c.l.b16 %v1374
        %v1439 = vunpack.c.l.b16 %v1375
        %v1440 = vunpack.c.l.b16 %v1376
        %v1441 = vunpack.c.l.b16 %v1377
        %v1442 = vunpack.c.l.b16 %v1378
        %v1443 = vunpack.c.l.b16 %v1379
        %v1444 = vpack.c.b16 %v1429, %v1428
        %v1445 = vpack.c.b16 %v1431, %v1430
        %v1446 = vpack.c.b16 %v1433, %v1432
        %v1447 = vpack.c.b16 %v1435, %v1434
        %v1448 = vpack.c.b16 %v1437, %v1436
        %v1449 = vpack.c.b16 %v1439, %v1438
        %v1450 = vpack.c.b16 %v1441, %v1440
        %v1451 = vpack.c.b16 %v1443, %v1442
        %1460 = vmatprep.subr.bf16.mxu0 0
        %1461 = vmatpush1.bf16.msra.mxu0 %v1451
        %1462 = vmatprep.subr.bf16.mxu0 0
        %1463 = vmatpush1.bf16.msra.mxu0 %v1450
        %1464 = vmatprep.subr.bf16.mxu0 0
        %1465 = vmatpush1.bf16.msra.mxu0 %v1449
        %1466 = vmatprep.subr.bf16.mxu0 0
        %1467 = vmatpush1.bf16.msra.mxu0 %v1448
        %1468 = vmatprep.subr.bf16.mxu0 0
        %1469 = vmatpush1.bf16.msra.mxu0 %v1447
        %1470 = vmatprep.subr.bf16.mxu0 0
        %1471 = vmatpush1.bf16.msra.mxu0 %v1446
        %1472 = vmatprep.subr.bf16.mxu0 0
        %1473 = vmatpush1.bf16.msra.mxu0 %v1445
        %1474 = vmatprep.subr.bf16.mxu0 0
        %1475 = vmatpush1.bf16.msra.mxu0 %v1444
        %1476 = vmatprep.subr.bf16.mxu0 0
        %1477 = vmatpush2.bf16.msra.mxu0 0
        %1478 = vmatprep.subr.bf16.mxu0 0
        %1479 = vmatpush2.bf16.msra.mxu0 0
        %1480 = vmatprep.subr.bf16.mxu0 0
        %1481 = vmatpush2.bf16.msra.mxu0 0
        %1482 = vmatprep.subr.bf16.mxu0 0
        %1483 = vmatpush2.bf16.msra.mxu0 0
        %1484 = vmatprep.subr.bf16.mxu0 0
        %1485 = vmatpush2.bf16.msra.mxu0 0
        %1486 = vmatprep.subr.bf16.mxu0 0
        %1487 = vmatpush2.bf16.msra.mxu0 0
        %1488 = vmatprep.subr.bf16.mxu0 0
        %1489 = vmatpush2.bf16.msra.mxu0 0
        %1490 = vmatprep.subr.bf16.mxu0 0
        %1491 = vmatpush2.bf16.msra.mxu0 0
        %1492 = vmatprep.mubr.bf16.mxu0 0
        %1493 = vmatmul.mubr.bf16.gmra.mxu0 %v1396
        %v1494 = vpop.f32.mrf.mxu0
        %v1495 = vadd.f32 0.0, %v1494
        %v1496 = vpop.f32.mrf.mxu0
        %v1497 = vpop.f32.mrf.mxu0
        %v1498 = vadd.f32 0.0, %v1497
        %v1499 = vpop.f32.mrf.mxu0
        %1500 = vmatprep.mubr.bf16.mxu0 0
        %1501 = vmatmul.mubr.bf16.gmra.mxu0 %v1397
        %v1502 = vpop.f32.mrf.mxu0
        %v1503 = vadd.f32 0.0, %v1502
        %v1504 = vpop.f32.mrf.mxu0
        %v1505 = vpop.f32.mrf.mxu0
        %v1506 = vadd.f32 0.0, %v1505
        %v1507 = vpop.f32.mrf.mxu0
        %1508 = vmatprep.mubr.bf16.mxu0 0
        %1509 = vmatmul.mubr.bf16.gmra.mxu0 %v1398
        %v1510 = vpop.f32.mrf.mxu0
        %v1511 = vadd.f32 0.0, %v1510
        %v1512 = vpop.f32.mrf.mxu0
        %v1513 = vpop.f32.mrf.mxu0
        %v1514 = vadd.f32 0.0, %v1513
        %v1515 = vpop.f32.mrf.mxu0
        %1516 = vmatprep.mubr.bf16.mxu0 0
        %1517 = vmatmul.mubr.bf16.gmra.mxu0 %v1399
        %v1518 = vpop.f32.mrf.mxu0
        %v1519 = vadd.f32 0.0, %v1518
        %v1520 = vpop.f32.mrf.mxu0
        %v1521 = vpop.f32.mrf.mxu0
        %v1522 = vadd.f32 0.0, %v1521
        %v1523 = vpop.f32.mrf.mxu0
        %1524 = vmatprep.mubr.bf16.mxu0 0
        %1525 = vmatmul.mubr.bf16.gmra.mxu0 %v1400
        %v1526 = vpop.f32.mrf.mxu0
        %v1527 = vadd.f32 0.0, %v1526
        %v1528 = vpop.f32.mrf.mxu0
        %v1529 = vpop.f32.mrf.mxu0
        %v1530 = vadd.f32 0.0, %v1529
        %v1531 = vpop.f32.mrf.mxu0
        %1532 = vmatprep.mubr.bf16.mxu0 0
        %1533 = vmatmul.mubr.bf16.gmra.mxu0 %v1401
        %v1534 = vpop.f32.mrf.mxu0
        %v1535 = vadd.f32 0.0, %v1534
        %v1536 = vpop.f32.mrf.mxu0
        %v1537 = vpop.f32.mrf.mxu0
        %v1538 = vadd.f32 0.0, %v1537
        %v1539 = vpop.f32.mrf.mxu0
        %1540 = vmatprep.mubr.bf16.mxu0 0
        %1541 = vmatmul.mubr.bf16.gmra.mxu0 %v1402
        %v1542 = vpop.f32.mrf.mxu0
        %v1543 = vadd.f32 0.0, %v1542
        %v1544 = vpop.f32.mrf.mxu0
        %v1545 = vpop.f32.mrf.mxu0
        %v1546 = vadd.f32 0.0, %v1545
        %v1547 = vpop.f32.mrf.mxu0
        %1548 = vmatprep.mubr.bf16.mxu0 0
        %1549 = vmatmul.mubr.bf16.gmra.mxu0 %v1403
        %v1550 = vpop.f32.mrf.mxu0
        %v1551 = vadd.f32 0.0, %v1550
        %v1552 = vpop.f32.mrf.mxu0
        %v1553 = vpop.f32.mrf.mxu0
        %v1554 = vadd.f32 0.0, %v1553
        %v1555 = vpop.f32.mrf.mxu0
        %1556 = vdwg.mxu0
        %v1573 = vunpack.c.l.b16 %v1112
        %v1574 = vunpack.c.l.b16 %v1113
        %v1575 = vunpack.c.l.b16 %v1114
        %v1576 = vunpack.c.l.b16 %v1115
        %v1577 = vunpack.c.l.b16 %v1116
        %v1578 = vunpack.c.l.b16 %v1117
        %v1579 = vunpack.c.l.b16 %v1118
        %v1580 = vunpack.c.l.b16 %v1119
        %v1581 = vunpack.c.l.b16 %v1120
        %v1582 = vunpack.c.l.b16 %v1121
        %v1583 = vunpack.c.l.b16 %v1122
        %v1584 = vunpack.c.l.b16 %v1123
        %v1585 = vunpack.c.l.b16 %v1124
        %v1586 = vunpack.c.l.b16 %v1125
        %v1587 = vunpack.c.l.b16 %v1126
        %v1588 = vunpack.c.l.b16 %v1127
        %v1589 = vpack.c.b16 %v1574, %v1573
        %v1590 = vpack.c.b16 %v1576, %v1575
        %v1591 = vpack.c.b16 %v1578, %v1577
        %v1592 = vpack.c.b16 %v1580, %v1579
        %v1593 = vpack.c.b16 %v1582, %v1581
        %v1594 = vpack.c.b16 %v1584, %v1583
        %v1595 = vpack.c.b16 %v1586, %v1585
        %v1596 = vpack.c.b16 %v1588, %v1587
        %v1621 = vunpack.c.l.b16 %v1152
        %v1622 = vunpack.c.l.b16 %v1153
        %v1623 = vunpack.c.l.b16 %v1154
        %v1624 = vunpack.c.l.b16 %v1155
        %v1625 = vunpack.c.l.b16 %v1156
        %v1626 = vunpack.c.l.b16 %v1157
        %v1627 = vunpack.c.l.b16 %v1158
        %v1628 = vunpack.c.l.b16 %v1159
        %v1629 = vunpack.c.l.b16 %v1160
        %v1630 = vunpack.c.l.b16 %v1161
        %v1631 = vunpack.c.l.b16 %v1162
        %v1632 = vunpack.c.l.b16 %v1163
        %v1633 = vunpack.c.l.b16 %v1164
        %v1634 = vunpack.c.l.b16 %v1165
        %v1635 = vunpack.c.l.b16 %v1166
        %v1636 = vunpack.c.l.b16 %v1167
        %v1637 = vpack.c.b16 %v1622, %v1621
        %v1638 = vpack.c.b16 %v1624, %v1623
        %v1639 = vpack.c.b16 %v1626, %v1625
        %v1640 = vpack.c.b16 %v1628, %v1627
        %v1641 = vpack.c.b16 %v1630, %v1629
        %v1642 = vpack.c.b16 %v1632, %v1631
        %v1643 = vpack.c.b16 %v1634, %v1633
        %v1644 = vpack.c.b16 %v1636, %v1635
        %1653 = vmatprep.subr.bf16.mxu0 0
        %1654 = vmatpush1.bf16.msra.mxu0 %v1644
        %1655 = vmatprep.subr.bf16.mxu0 0
        %1656 = vmatpush1.bf16.msra.mxu0 %v1643
        %1657 = vmatprep.subr.bf16.mxu0 0
        %1658 = vmatpush1.bf16.msra.mxu0 %v1642
        %1659 = vmatprep.subr.bf16.mxu0 0
        %1660 = vmatpush1.bf16.msra.mxu0 %v1641
        %1661 = vmatprep.subr.bf16.mxu0 0
        %1662 = vmatpush1.bf16.msra.mxu0 %v1640
        %1663 = vmatprep.subr.bf16.mxu0 0
        %1664 = vmatpush1.bf16.msra.mxu0 %v1639
        %1665 = vmatprep.subr.bf16.mxu0 0
        %1666 = vmatpush1.bf16.msra.mxu0 %v1638
        %1667 = vmatprep.subr.bf16.mxu0 0
        %1668 = vmatpush1.bf16.msra.mxu0 %v1637
        %1669 = vmatprep.subr.bf16.mxu0 0
        %1670 = vmatpush2.bf16.msra.mxu0 0
        %1671 = vmatprep.subr.bf16.mxu0 0
        %1672 = vmatpush2.bf16.msra.mxu0 0
        %1673 = vmatprep.subr.bf16.mxu0 0
        %1674 = vmatpush2.bf16.msra.mxu0 0
        %1675 = vmatprep.subr.bf16.mxu0 0
        %1676 = vmatpush2.bf16.msra.mxu0 0
        %1677 = vmatprep.subr.bf16.mxu0 0
        %1678 = vmatpush2.bf16.msra.mxu0 0
        %1679 = vmatprep.subr.bf16.mxu0 0
        %1680 = vmatpush2.bf16.msra.mxu0 0
        %1681 = vmatprep.subr.bf16.mxu0 0
        %1682 = vmatpush2.bf16.msra.mxu0 0
        %1683 = vmatprep.subr.bf16.mxu0 0
        %1684 = vmatpush2.bf16.msra.mxu0 0
        %1685 = vmatprep.mubr.bf16.mxu0 0
        %1686 = vmatmul.mubr.bf16.gmra.mxu0 %v1589
        %v1687 = vpop.f32.mrf.mxu0
        %v1688 = vadd.f32 %v1495, %v1687
        %v1689 = vpop.f32.mrf.mxu0
        %v1690 = vpop.f32.mrf.mxu0
        %v1691 = vadd.f32 %v1498, %v1690
        %v1692 = vpop.f32.mrf.mxu0
        %1693 = vmatprep.mubr.bf16.mxu0 0
        %1694 = vmatmul.mubr.bf16.gmra.mxu0 %v1590
        %v1695 = vpop.f32.mrf.mxu0
        %v1696 = vadd.f32 %v1503, %v1695
        %v1697 = vpop.f32.mrf.mxu0
        %v1698 = vpop.f32.mrf.mxu0
        %v1699 = vadd.f32 %v1506, %v1698
        %v1700 = vpop.f32.mrf.mxu0
        %1701 = vmatprep.mubr.bf16.mxu0 0
        %1702 = vmatmul.mubr.bf16.gmra.mxu0 %v1591
        %v1703 = vpop.f32.mrf.mxu0
        %v1704 = vadd.f32 %v1511, %v1703
        %v1705 = vpop.f32.mrf.mxu0
        %v1706 = vpop.f32.mrf.mxu0
        %v1707 = vadd.f32 %v1514, %v1706
        %v1708 = vpop.f32.mrf.mxu0
        %1709 = vmatprep.mubr.bf16.mxu0 0
        %1710 = vmatmul.mubr.bf16.gmra.mxu0 %v1592
        %v1711 = vpop.f32.mrf.mxu0
        %v1712 = vadd.f32 %v1519, %v1711
        %v1713 = vpop.f32.mrf.mxu0
        %v1714 = vpop.f32.mrf.mxu0
        %v1715 = vadd.f32 %v1522, %v1714
        %v1716 = vpop.f32.mrf.mxu0
        %1717 = vmatprep.mubr.bf16.mxu0 0
        %1718 = vmatmul.mubr.bf16.gmra.mxu0 %v1593
        %v1719 = vpop.f32.mrf.mxu0
        %v1720 = vadd.f32 %v1527, %v1719
        %v1721 = vpop.f32.mrf.mxu0
        %v1722 = vpop.f32.mrf.mxu0
        %v1723 = vadd.f32 %v1530, %v1722
        %v1724 = vpop.f32.mrf.mxu0
        %1725 = vmatprep.mubr.bf16.mxu0 0
        %1726 = vmatmul.mubr.bf16.gmra.mxu0 %v1594
        %v1727 = vpop.f32.mrf.mxu0
        %v1728 = vadd.f32 %v1535, %v1727
        %v1729 = vpop.f32.mrf.mxu0
        %v1730 = vpop.f32.mrf.mxu0
        %v1731 = vadd.f32 %v1538, %v1730
        %v1732 = vpop.f32.mrf.mxu0
        %1733 = vmatprep.mubr.bf16.mxu0 0
        %1734 = vmatmul.mubr.bf16.gmra.mxu0 %v1595
        %v1735 = vpop.f32.mrf.mxu0
        %v1736 = vadd.f32 %v1543, %v1735
        %v1737 = vpop.f32.mrf.mxu0
        %v1738 = vpop.f32.mrf.mxu0
        %v1739 = vadd.f32 %v1546, %v1738
        %v1740 = vpop.f32.mrf.mxu0
        %1741 = vmatprep.mubr.bf16.mxu0 0
        %1742 = vmatmul.mubr.bf16.gmra.mxu0 %v1596
        %v1743 = vpop.f32.mrf.mxu0
        %v1744 = vadd.f32 %v1551, %v1743
        %v1745 = vpop.f32.mrf.mxu0
        %v1746 = vpop.f32.mrf.mxu0
        %v1747 = vadd.f32 %v1554, %v1746
        %v1748 = vpop.f32.mrf.mxu0
        %1749 = vdwg.mxu0
        %vm1766 = vcmask 1042432
        %vm1767 = vcmask 1046532
        %vm1768 = vmor %vm1766, %vm1767
        %v1769 = vrot.slane %v1142, 5
        %v1770 = vrot.slane %v1769, 4
        %v1771 = vrot.slane %v1113, 5
        %v1772 = vsel %vm1768, %v1770, %v1771
        %v1773 = vrot.slane %v1771, 4
        %v1774 = vrot.slane %v1132, 5
        %v1775 = vsel %vm1768, %v1773, %v1774
        %v1776 = vrot.slane %v1143, 5
        %v1777 = vrot.slane %v1776, 4
        %v1778 = vrot.slane %v1115, 5
        %v1779 = vsel %vm1768, %v1777, %v1778
        %v1780 = vrot.slane %v1778, 4
        %v1781 = vrot.slane %v1133, 5
        %v1782 = vsel %vm1768, %v1780, %v1781
        %v1783 = vrot.slane %v1144, 5
        %v1784 = vrot.slane %v1783, 4
        %v1785 = vrot.slane %v1117, 5
        %v1786 = vsel %vm1768, %v1784, %v1785
        %v1787 = vrot.slane %v1785, 4
        %v1788 = vrot.slane %v1134, 5
        %v1789 = vsel %vm1768, %v1787, %v1788
        %v1790 = vrot.slane %v1145, 5
        %v1791 = vrot.slane %v1790, 4
        %v1792 = vrot.slane %v1119, 5
        %v1793 = vsel %vm1768, %v1791, %v1792
        %v1794 = vrot.slane %v1792, 4
        %v1795 = vrot.slane %v1135, 5
        %v1796 = vsel %vm1768, %v1794, %v1795
        %v1797 = vrot.slane %v1146, 5
        %v1798 = vrot.slane %v1797, 4
        %v1799 = vrot.slane %v1121, 5
        %v1800 = vsel %vm1768, %v1798, %v1799
        %v1801 = vrot.slane %v1799, 4
        %v1802 = vrot.slane %v1136, 5
        %v1803 = vsel %vm1768, %v1801, %v1802
        %v1804 = vrot.slane %v1147, 5
        %v1805 = vrot.slane %v1804, 4
        %v1806 = vrot.slane %v1123, 5
        %v1807 = vsel %vm1768, %v1805, %v1806
        %v1808 = vrot.slane %v1806, 4
        %v1809 = vrot.slane %v1137, 5
        %v1810 = vsel %vm1768, %v1808, %v1809
        %v1811 = vrot.slane %v1148, 5
        %v1812 = vrot.slane %v1811, 4
        %v1813 = vrot.slane %v1125, 5
        %v1814 = vsel %vm1768, %v1812, %v1813
        %v1815 = vrot.slane %v1813, 4
        %v1816 = vrot.slane %v1138, 5
        %v1817 = vsel %vm1768, %v1815, %v1816
        %v1818 = vrot.slane %v1149, 5
        %v1819 = vrot.slane %v1818, 4
        %v1820 = vrot.slane %v1127, 5
        %v1821 = vsel %vm1768, %v1819, %v1820
        %v1822 = vrot.slane %v1820, 4
        %v1823 = vrot.slane %v1139, 5
        %v1824 = vsel %vm1768, %v1822, %v1823
        %s1825 = scalar_lea.vmem [#allocation8], 128
        %v1826 = vld [vmem:[%s1825] sm:$0xf]
        %v1827 = vld [vmem:[%s1825 + $0x4] sm:$0xf]
        %v1828 = vld [vmem:[%s1825 + $0x8] sm:$0xf]
        %v1829 = vld [vmem:[%s1825 + $0xc] sm:$0xf]
        %v1830 = vld [vmem:[%s1825 + $0x10] sm:$0xf]
        %v1831 = vld [vmem:[%s1825 + $0x14] sm:$0xf]
        %v1832 = vld [vmem:[%s1825 + $0x18] sm:$0xf]
        %v1833 = vld [vmem:[%s1825 + $0x1c] sm:$0xf]
        %v1834 = vld [vmem:[%s1825 + $0x20] sm:$0xf]
        %v1835 = vld [vmem:[%s1825 + $0x24] sm:$0xf]
        %v1836 = vld [vmem:[%s1825 + $0x28] sm:$0xf]
        %v1837 = vld [vmem:[%s1825 + $0x2c] sm:$0xf]
        %v1838 = vld [vmem:[%s1825 + $0x30] sm:$0xf]
        %v1839 = vld [vmem:[%s1825 + $0x34] sm:$0xf]
        %v1840 = vld [vmem:[%s1825 + $0x38] sm:$0xf]
        %v1841 = vld [vmem:[%s1825 + $0x3c] sm:$0xf]
        %v1842 = vunpack.c.l.b16 %v1772
        %v1843 = vunpack.c.l.b16 %v1775
        %v1844 = vunpack.c.l.b16 %v1779
        %v1845 = vunpack.c.l.b16 %v1782
        %v1846 = vunpack.c.l.b16 %v1786
        %v1847 = vunpack.c.l.b16 %v1789
        %v1848 = vunpack.c.l.b16 %v1793
        %v1849 = vunpack.c.l.b16 %v1796
        %v1850 = vunpack.c.l.b16 %v1800
        %v1851 = vunpack.c.l.b16 %v1803
        %v1852 = vunpack.c.l.b16 %v1807
        %v1853 = vunpack.c.l.b16 %v1810
        %v1854 = vunpack.c.l.b16 %v1814
        %v1855 = vunpack.c.l.b16 %v1817
        %v1856 = vunpack.c.l.b16 %v1821
        %v1857 = vunpack.c.l.b16 %v1824
        %v1858 = vpack.c.b16 %v1843, %v1842
        %v1859 = vpack.c.b16 %v1845, %v1844
        %v1860 = vpack.c.b16 %v1847, %v1846
        %v1861 = vpack.c.b16 %v1849, %v1848
        %v1862 = vpack.c.b16 %v1851, %v1850
        %v1863 = vpack.c.b16 %v1853, %v1852
        %v1864 = vpack.c.b16 %v1855, %v1854
        %v1865 = vpack.c.b16 %v1857, %v1856
        %v1890 = vunpack.c.l.b16 %v1826
        %v1891 = vunpack.c.l.b16 %v1827
        %v1892 = vunpack.c.l.b16 %v1828
        %v1893 = vunpack.c.l.b16 %v1829
        %v1894 = vunpack.c.l.b16 %v1830
        %v1895 = vunpack.c.l.b16 %v1831
        %v1896 = vunpack.c.l.b16 %v1832
        %v1897 = vunpack.c.l.b16 %v1833
        %v1898 = vunpack.c.l.b16 %v1834
        %v1899 = vunpack.c.l.b16 %v1835
        %v1900 = vunpack.c.l.b16 %v1836
        %v1901 = vunpack.c.l.b16 %v1837
        %v1902 = vunpack.c.l.b16 %v1838
        %v1903 = vunpack.c.l.b16 %v1839
        %v1904 = vunpack.c.l.b16 %v1840
        %v1905 = vunpack.c.l.b16 %v1841
        %v1906 = vpack.c.b16 %v1891, %v1890
        %v1907 = vpack.c.b16 %v1893, %v1892
        %v1908 = vpack.c.b16 %v1895, %v1894
        %v1909 = vpack.c.b16 %v1897, %v1896
        %v1910 = vpack.c.b16 %v1899, %v1898
        %v1911 = vpack.c.b16 %v1901, %v1900
        %v1912 = vpack.c.b16 %v1903, %v1902
        %v1913 = vpack.c.b16 %v1905, %v1904
        %1922 = vmatprep.subr.bf16.mxu0 0
        %1923 = vmatpush1.bf16.msra.mxu0 %v1913
        %1924 = vmatprep.subr.bf16.mxu0 0
        %1925 = vmatpush1.bf16.msra.mxu0 %v1912
        %1926 = vmatprep.subr.bf16.mxu0 0
        %1927 = vmatpush1.bf16.msra.mxu0 %v1911
        %1928 = vmatprep.subr.bf16.mxu0 0
        %1929 = vmatpush1.bf16.msra.mxu0 %v1910
        %1930 = vmatprep.subr.bf16.mxu0 0
        %1931 = vmatpush1.bf16.msra.mxu0 %v1909
        %1932 = vmatprep.subr.bf16.mxu0 0
        %1933 = vmatpush1.bf16.msra.mxu0 %v1908
        %1934 = vmatprep.subr.bf16.mxu0 0
        %1935 = vmatpush1.bf16.msra.mxu0 %v1907
        %1936 = vmatprep.subr.bf16.mxu0 0
        %1937 = vmatpush1.bf16.msra.mxu0 %v1906
        %1938 = vmatprep.subr.bf16.mxu0 0
        %1939 = vmatpush2.bf16.msra.mxu0 0
        %1940 = vmatprep.subr.bf16.mxu0 0
        %1941 = vmatpush2.bf16.msra.mxu0 0
        %1942 = vmatprep.subr.bf16.mxu0 0
        %1943 = vmatpush2.bf16.msra.mxu0 0
        %1944 = vmatprep.subr.bf16.mxu0 0
        %1945 = vmatpush2.bf16.msra.mxu0 0
        %1946 = vmatprep.subr.bf16.mxu0 0
        %1947 = vmatpush2.bf16.msra.mxu0 0
        %1948 = vmatprep.subr.bf16.mxu0 0
        %1949 = vmatpush2.bf16.msra.mxu0 0
        %1950 = vmatprep.subr.bf16.mxu0 0
        %1951 = vmatpush2.bf16.msra.mxu0 0
        %1952 = vmatprep.subr.bf16.mxu0 0
        %1953 = vmatpush2.bf16.msra.mxu0 0
        %1954 = vmatprep.mubr.bf16.mxu0 0
        %1955 = vmatmul.mubr.bf16.gmra.mxu0 %v1858
        %v1956 = vpop.f32.mrf.mxu0
        %v1957 = vadd.f32 0.0, %v1956
        %v1958 = vpop.f32.mrf.mxu0
        %v1959 = vpop.f32.mrf.mxu0
        %v1960 = vadd.f32 0.0, %v1959
        %v1961 = vpop.f32.mrf.mxu0
        %1962 = vmatprep.mubr.bf16.mxu0 0
        %1963 = vmatmul.mubr.bf16.gmra.mxu0 %v1859
        %v1964 = vpop.f32.mrf.mxu0
        %v1965 = vadd.f32 0.0, %v1964
        %v1966 = vpop.f32.mrf.mxu0
        %v1967 = vpop.f32.mrf.mxu0
        %v1968 = vadd.f32 0.0, %v1967
        %v1969 = vpop.f32.mrf.mxu0
        %1970 = vmatprep.mubr.bf16.mxu0 0
        %1971 = vmatmul.mubr.bf16.gmra.mxu0 %v1860
        %v1972 = vpop.f32.mrf.mxu0
        %v1973 = vadd.f32 0.0, %v1972
        %v1974 = vpop.f32.mrf.mxu0
        %v1975 = vpop.f32.mrf.mxu0
        %v1976 = vadd.f32 0.0, %v1975
        %v1977 = vpop.f32.mrf.mxu0
        %1978 = vmatprep.mubr.bf16.mxu0 0
        %1979 = vmatmul.mubr.bf16.gmra.mxu0 %v1861
        %v1980 = vpop.f32.mrf.mxu0
        %v1981 = vadd.f32 0.0, %v1980
        %v1982 = vpop.f32.mrf.mxu0
        %v1983 = vpop.f32.mrf.mxu0
        %v1984 = vadd.f32 0.0, %v1983
        %v1985 = vpop.f32.mrf.mxu0
        %1986 = vmatprep.mubr.bf16.mxu0 0
        %1987 = vmatmul.mubr.bf16.gmra.mxu0 %v1862
        %v1988 = vpop.f32.mrf.mxu0
        %v1989 = vadd.f32 0.0, %v1988
        %v1990 = vpop.f32.mrf.mxu0
        %v1991 = vpop.f32.mrf.mxu0
        %v1992 = vadd.f32 0.0, %v1991
        %v1993 = vpop.f32.mrf.mxu0
        %1994 = vmatprep.mubr.bf16.mxu0 0
        %1995 = vmatmul.mubr.bf16.gmra.mxu0 %v1863
        %v1996 = vpop.f32.mrf.mxu0
        %v1997 = vadd.f32 0.0, %v1996
        %v1998 = vpop.f32.mrf.mxu0
        %v1999 = vpop.f32.mrf.mxu0
        %v2000 = vadd.f32 0.0, %v1999
        %v2001 = vpop.f32.mrf.mxu0
        %2002 = vmatprep.mubr.bf16.mxu0 0
        %2003 = vmatmul.mubr.bf16.gmra.mxu0 %v1864
        %v2004 = vpop.f32.mrf.mxu0
        %v2005 = vadd.f32 0.0, %v2004
        %v2006 = vpop.f32.mrf.mxu0
        %v2007 = vpop.f32.mrf.mxu0
        %v2008 = vadd.f32 0.0, %v2007
        %v2009 = vpop.f32.mrf.mxu0
        %2010 = vmatprep.mubr.bf16.mxu0 0
        %2011 = vmatmul.mubr.bf16.gmra.mxu0 %v1865
        %v2012 = vpop.f32.mrf.mxu0
        %v2013 = vadd.f32 0.0, %v2012
        %v2014 = vpop.f32.mrf.mxu0
        %v2015 = vpop.f32.mrf.mxu0
        %v2016 = vadd.f32 0.0, %v2015
        %v2017 = vpop.f32.mrf.mxu0
        %2018 = vdwg.mxu0
        %v2019 = vadd.f32 %v1688, %v1957
        %v2020 = vadd.f32 %v1691, %v1960
        %v2021 = vadd.f32 %v1696, %v1965
        %v2022 = vadd.f32 %v1699, %v1968
        %v2023 = vadd.f32 %v1704, %v1973
        %v2024 = vadd.f32 %v1707, %v1976
        %v2025 = vadd.f32 %v1712, %v1981
        %v2026 = vadd.f32 %v1715, %v1984
        %v2027 = vadd.f32 %v1720, %v1989
        %v2028 = vadd.f32 %v1723, %v1992
        %v2029 = vadd.f32 %v1728, %v1997
        %v2030 = vadd.f32 %v1731, %v2000
        %v2031 = vadd.f32 %v1736, %v2005
        %v2032 = vadd.f32 %v1739, %v2008
        %v2033 = vadd.f32 %v1744, %v2013
        %v2034 = vadd.f32 %v1747, %v2016
        %s2035 = scalar_lea.vmem [#allocation8], 192
        %v2036 = vld [vmem:[%s2035] sm:$0xf]
        %v2037 = vld [vmem:[%s2035 + $0x4] sm:$0xf]
        %v2038 = vld [vmem:[%s2035 + $0x8] sm:$0xf]
        %v2039 = vld [vmem:[%s2035 + $0xc] sm:$0xf]
        %v2040 = vld [vmem:[%s2035 + $0x10] sm:$0xf]
        %v2041 = vld [vmem:[%s2035 + $0x14] sm:$0xf]
        %v2042 = vld [vmem:[%s2035 + $0x18] sm:$0xf]
        %v2043 = vld [vmem:[%s2035 + $0x1c] sm:$0xf]
        %v2044 = vld [vmem:[%s2035 + $0x20] sm:$0xf]
        %v2045 = vld [vmem:[%s2035 + $0x24] sm:$0xf]
        %v2046 = vld [vmem:[%s2035 + $0x28] sm:$0xf]
        %v2047 = vld [vmem:[%s2035 + $0x2c] sm:$0xf]
        %v2048 = vld [vmem:[%s2035 + $0x30] sm:$0xf]
        %v2049 = vld [vmem:[%s2035 + $0x34] sm:$0xf]
        %v2050 = vld [vmem:[%s2035 + $0x38] sm:$0xf]
        %v2051 = vld [vmem:[%s2035 + $0x3c] sm:$0xf]
        %v2054 = vunpack.c.l.b16 %v1128
        %v2055 = vunpack.c.l.b16 %v1129
        %v2056 = vpack.c.b16 %v2055, %v2054
        %v2074 = vunpack.c.l.b16 %v2036
        %v2075 = vunpack.c.l.b16 %v2037
        %v2076 = vunpack.c.l.b16 %v2038
        %v2077 = vunpack.c.l.b16 %v2039
        %v2078 = vunpack.c.l.b16 %v2040
        %v2079 = vunpack.c.l.b16 %v2041
        %v2080 = vunpack.c.l.b16 %v2042
        %v2081 = vunpack.c.l.b16 %v2043
        %v2082 = vunpack.c.l.b16 %v2044
        %v2083 = vunpack.c.l.b16 %v2045
        %v2084 = vunpack.c.l.b16 %v2046
        %v2085 = vunpack.c.l.b16 %v2047
        %v2086 = vunpack.c.l.b16 %v2048
        %v2087 = vunpack.c.l.b16 %v2049
        %v2088 = vunpack.c.l.b16 %v2050
        %v2089 = vunpack.c.l.b16 %v2051
        %v2090 = vpack.c.b16 %v2075, %v2074
        %v2091 = vpack.c.b16 %v2077, %v2076
        %v2092 = vpack.c.b16 %v2079, %v2078
        %v2093 = vpack.c.b16 %v2081, %v2080
        %v2094 = vpack.c.b16 %v2083, %v2082
        %v2095 = vpack.c.b16 %v2085, %v2084
        %v2096 = vpack.c.b16 %v2087, %v2086
        %v2097 = vpack.c.b16 %v2089, %v2088
        %2106 = vmatprep.subr.bf16.mxu0 0
        %2107 = vmatpush1.bf16.msra.mxu0 %v2097
        %2108 = vmatprep.subr.bf16.mxu0 0
        %2109 = vmatpush1.bf16.msra.mxu0 %v2096
        %2110 = vmatprep.subr.bf16.mxu0 0
        %2111 = vmatpush1.bf16.msra.mxu0 %v2095
        %2112 = vmatprep.subr.bf16.mxu0 0
        %2113 = vmatpush1.bf16.msra.mxu0 %v2094
        %2114 = vmatprep.subr.bf16.mxu0 0
        %2115 = vmatpush1.bf16.msra.mxu0 %v2093
        %2116 = vmatprep.subr.bf16.mxu0 0
        %2117 = vmatpush1.bf16.msra.mxu0 %v2092
        %2118 = vmatprep.subr.bf16.mxu0 0
        %2119 = vmatpush1.bf16.msra.mxu0 %v2091
        %2120 = vmatprep.subr.bf16.mxu0 0
        %2121 = vmatpush1.bf16.msra.mxu0 %v2090
        %2122 = vmatprep.subr.bf16.mxu0 0
        %2123 = vmatpush2.bf16.msra.mxu0 0
        %2124 = vmatprep.subr.bf16.mxu0 0
        %2125 = vmatpush2.bf16.msra.mxu0 0
        %2126 = vmatprep.subr.bf16.mxu0 0
        %2127 = vmatpush2.bf16.msra.mxu0 0
        %2128 = vmatprep.subr.bf16.mxu0 0
        %2129 = vmatpush2.bf16.msra.mxu0 0
        %2130 = vmatprep.subr.bf16.mxu0 0
        %2131 = vmatpush2.bf16.msra.mxu0 0
        %2132 = vmatprep.subr.bf16.mxu0 0
        %2133 = vmatpush2.bf16.msra.mxu0 0
        %2134 = vmatprep.subr.bf16.mxu0 0
        %2135 = vmatpush2.bf16.msra.mxu0 0
        %2136 = vmatprep.subr.bf16.mxu0 0
        %2137 = vmatpush2.bf16.msra.mxu0 0
        %2138 = vmatprep.mubr.bf16.mxu0 0
        %2139 = vmatmul.mubr.bf16.gmra.mxu0 %v1590
        %v2140 = vpop.f32.mrf.mxu0
        %v2141 = vadd.f32 0.0, %v2140
        %v2142 = vpop.f32.mrf.mxu0
        %v2143 = vpop.f32.mrf.mxu0
        %v2144 = vadd.f32 0.0, %v2143
        %v2145 = vpop.f32.mrf.mxu0
        %2146 = vmatprep.mubr.bf16.mxu0 0
        %2147 = vmatmul.mubr.bf16.gmra.mxu0 %v1591
        %v2148 = vpop.f32.mrf.mxu0
        %v2149 = vadd.f32 0.0, %v2148
        %v2150 = vpop.f32.mrf.mxu0
        %v2151 = vpop.f32.mrf.mxu0
        %v2152 = vadd.f32 0.0, %v2151
        %v2153 = vpop.f32.mrf.mxu0
        %2154 = vmatprep.mubr.bf16.mxu0 0
        %2155 = vmatmul.mubr.bf16.gmra.mxu0 %v1592
        %v2156 = vpop.f32.mrf.mxu0
        %v2157 = vadd.f32 0.0, %v2156
        %v2158 = vpop.f32.mrf.mxu0
        %v2159 = vpop.f32.mrf.mxu0
        %v2160 = vadd.f32 0.0, %v2159
        %v2161 = vpop.f32.mrf.mxu0
        %2162 = vmatprep.mubr.bf16.mxu0 0
        %2163 = vmatmul.mubr.bf16.gmra.mxu0 %v1593
        %v2164 = vpop.f32.mrf.mxu0
        %v2165 = vadd.f32 0.0, %v2164
        %v2166 = vpop.f32.mrf.mxu0
        %v2167 = vpop.f32.mrf.mxu0
        %v2168 = vadd.f32 0.0, %v2167
        %v2169 = vpop.f32.mrf.mxu0
        %2170 = vmatprep.mubr.bf16.mxu0 0
        %2171 = vmatmul.mubr.bf16.gmra.mxu0 %v1594
        %v2172 = vpop.f32.mrf.mxu0
        %v2173 = vadd.f32 0.0, %v2172
        %v2174 = vpop.f32.mrf.mxu0
        %v2175 = vpop.f32.mrf.mxu0
        %v2176 = vadd.f32 0.0, %v2175
        %v2177 = vpop.f32.mrf.mxu0
        %2178 = vmatprep.mubr.bf16.mxu0 0
        %2179 = vmatmul.mubr.bf16.gmra.mxu0 %v1595
        %v2180 = vpop.f32.mrf.mxu0
        %v2181 = vadd.f32 0.0, %v2180
        %v2182 = vpop.f32.mrf.mxu0
        %v2183 = vpop.f32.mrf.mxu0
        %v2184 = vadd.f32 0.0, %v2183
        %v2185 = vpop.f32.mrf.mxu0
        %2186 = vmatprep.mubr.bf16.mxu0 0
        %2187 = vmatmul.mubr.bf16.gmra.mxu0 %v1596
        %v2188 = vpop.f32.mrf.mxu0
        %v2189 = vadd.f32 0.0, %v2188
        %v2190 = vpop.f32.mrf.mxu0
        %v2191 = vpop.f32.mrf.mxu0
        %v2192 = vadd.f32 0.0, %v2191
        %v2193 = vpop.f32.mrf.mxu0
        %2194 = vmatprep.mubr.bf16.mxu0 0
        %2195 = vmatmul.mubr.bf16.gmra.mxu0 %v2056
        %v2196 = vpop.f32.mrf.mxu0
        %v2197 = vadd.f32 0.0, %v2196
        %v2198 = vpop.f32.mrf.mxu0
        %v2199 = vpop.f32.mrf.mxu0
        %v2200 = vadd.f32 0.0, %v2199
        %v2201 = vpop.f32.mrf.mxu0
        %2202 = vdwg.mxu0
        %v2203 = vadd.f32 %v2019, %v2141
        %v2204 = vadd.f32 %v2020, %v2144
        %v2205 = vadd.f32 %v2021, %v2149
        %v2206 = vadd.f32 %v2022, %v2152
        %v2207 = vadd.f32 %v2023, %v2157
        %v2208 = vadd.f32 %v2024, %v2160
        %v2209 = vadd.f32 %v2025, %v2165
        %v2210 = vadd.f32 %v2026, %v2168
        %v2211 = vadd.f32 %v2027, %v2173
        %v2212 = vadd.f32 %v2028, %v2176
        %v2213 = vadd.f32 %v2029, %v2181
        %v2214 = vadd.f32 %v2030, %v2184
        %v2215 = vadd.f32 %v2031, %v2189
        %v2216 = vadd.f32 %v2032, %v2192
        %v2217 = vadd.f32 %v2033, %v2197
        %v2218 = vadd.f32 %v2034, %v2200
        %v2220 = vshrl.u32 %v1128, 16
        %v2222 = vrot.slane %v2220, 4
        %v2223 = vshll.u32 %v1128, 16
        %v2225 = vrot.slane %v2223, 5
        %v2226 = vor.u32 %v2222, %v2225
        %v2227 = vrot.slane %v2226, 4
        %v2229 = vshll.u32 %v1129, 16
        %v2231 = vrot.slane %v2229, 5
        %v2232 = vsel %vm1170, %v2227, %v2231
        %v2233 = vshrl.u32 %v1129, 16
        %v2235 = vrot.slane %v2233, 4
        %v2236 = vor.u32 %v2235, %v2231
        %v2237 = vrot.slane %v2236, 4
        %v2239 = vshll.u32 %v1140, 16
        %v2241 = vrot.slane %v2239, 5
        %v2242 = vsel %vm1170, %v2237, %v2241
        %s2243 = scalar_lea.vmem [#allocation8], 256
        %v2244 = vld [vmem:[%s2243] sm:$0xf]
        %v2245 = vld [vmem:[%s2243 + $0x4] sm:$0xf]
        %v2246 = vld [vmem:[%s2243 + $0x8] sm:$0xf]
        %v2247 = vld [vmem:[%s2243 + $0xc] sm:$0xf]
        %v2248 = vld [vmem:[%s2243 + $0x10] sm:$0xf]
        %v2249 = vld [vmem:[%s2243 + $0x14] sm:$0xf]
        %v2250 = vld [vmem:[%s2243 + $0x18] sm:$0xf]
        %v2251 = vld [vmem:[%s2243 + $0x1c] sm:$0xf]
        %v2252 = vld [vmem:[%s2243 + $0x20] sm:$0xf]
        %v2253 = vld [vmem:[%s2243 + $0x24] sm:$0xf]
        %v2254 = vld [vmem:[%s2243 + $0x28] sm:$0xf]
        %v2255 = vld [vmem:[%s2243 + $0x2c] sm:$0xf]
        %v2256 = vld [vmem:[%s2243 + $0x30] sm:$0xf]
        %v2257 = vld [vmem:[%s2243 + $0x34] sm:$0xf]
        %v2258 = vld [vmem:[%s2243 + $0x38] sm:$0xf]
        %v2259 = vld [vmem:[%s2243 + $0x3c] sm:$0xf]
        %v2260 = vunpack.c.l.b16 %v2232
        %v2261 = vunpack.c.l.b16 %v2242
        %v2262 = vpack.c.b16 %v2261, %v2260
        %v2280 = vunpack.c.l.b16 %v2244
        %v2281 = vunpack.c.l.b16 %v2245
        %v2282 = vunpack.c.l.b16 %v2246
        %v2283 = vunpack.c.l.b16 %v2247
        %v2284 = vunpack.c.l.b16 %v2248
        %v2285 = vunpack.c.l.b16 %v2249
        %v2286 = vunpack.c.l.b16 %v2250
        %v2287 = vunpack.c.l.b16 %v2251
        %v2288 = vunpack.c.l.b16 %v2252
        %v2289 = vunpack.c.l.b16 %v2253
        %v2290 = vunpack.c.l.b16 %v2254
        %v2291 = vunpack.c.l.b16 %v2255
        %v2292 = vunpack.c.l.b16 %v2256
        %v2293 = vunpack.c.l.b16 %v2257
        %v2294 = vunpack.c.l.b16 %v2258
        %v2295 = vunpack.c.l.b16 %v2259
        %v2296 = vpack.c.b16 %v2281, %v2280
        %v2297 = vpack.c.b16 %v2283, %v2282
        %v2298 = vpack.c.b16 %v2285, %v2284
        %v2299 = vpack.c.b16 %v2287, %v2286
        %v2300 = vpack.c.b16 %v2289, %v2288
        %v2301 = vpack.c.b16 %v2291, %v2290
        %v2302 = vpack.c.b16 %v2293, %v2292
        %v2303 = vpack.c.b16 %v2295, %v2294
        %2312 = vmatprep.subr.bf16.mxu0 0
        %2313 = vmatpush1.bf16.msra.mxu0 %v2303
        %2314 = vmatprep.subr.bf16.mxu0 0
        %2315 = vmatpush1.bf16.msra.mxu0 %v2302
        %2316 = vmatprep.subr.bf16.mxu0 0
        %2317 = vmatpush1.bf16.msra.mxu0 %v2301
        %2318 = vmatprep.subr.bf16.mxu0 0
        %2319 = vmatpush1.bf16.msra.mxu0 %v2300
        %2320 = vmatprep.subr.bf16.mxu0 0
        %2321 = vmatpush1.bf16.msra.mxu0 %v2299
        %2322 = vmatprep.subr.bf16.mxu0 0
        %2323 = vmatpush1.bf16.msra.mxu0 %v2298
        %2324 = vmatprep.subr.bf16.mxu0 0
        %2325 = vmatpush1.bf16.msra.mxu0 %v2297
        %2326 = vmatprep.subr.bf16.mxu0 0
        %2327 = vmatpush1.bf16.msra.mxu0 %v2296
        %2328 = vmatprep.subr.bf16.mxu0 0
        %2329 = vmatpush2.bf16.msra.mxu0 0
        %2330 = vmatprep.subr.bf16.mxu0 0
        %2331 = vmatpush2.bf16.msra.mxu0 0
        %2332 = vmatprep.subr.bf16.mxu0 0
        %2333 = vmatpush2.bf16.msra.mxu0 0
        %2334 = vmatprep.subr.bf16.mxu0 0
        %2335 = vmatpush2.bf16.msra.mxu0 0
        %2336 = vmatprep.subr.bf16.mxu0 0
        %2337 = vmatpush2.bf16.msra.mxu0 0
        %2338 = vmatprep.subr.bf16.mxu0 0
        %2339 = vmatpush2.bf16.msra.mxu0 0
        %2340 = vmatprep.subr.bf16.mxu0 0
        %2341 = vmatpush2.bf16.msra.mxu0 0
        %2342 = vmatprep.subr.bf16.mxu0 0
        %2343 = vmatpush2.bf16.msra.mxu0 0
        %2344 = vmatprep.mubr.bf16.mxu0 0
        %2345 = vmatmul.mubr.bf16.gmra.mxu0 %v1397
        %v2346 = vpop.f32.mrf.mxu0
        %v2347 = vadd.f32 0.0, %v2346
        %v2348 = vpop.f32.mrf.mxu0
        %v2349 = vpop.f32.mrf.mxu0
        %v2350 = vadd.f32 0.0, %v2349
        %v2351 = vpop.f32.mrf.mxu0
        %2352 = vmatprep.mubr.bf16.mxu0 0
        %2353 = vmatmul.mubr.bf16.gmra.mxu0 %v1398
        %v2354 = vpop.f32.mrf.mxu0
        %v2355 = vadd.f32 0.0, %v2354
        %v2356 = vpop.f32.mrf.mxu0
        %v2357 = vpop.f32.mrf.mxu0
        %v2358 = vadd.f32 0.0, %v2357
        %v2359 = vpop.f32.mrf.mxu0
        %2360 = vmatprep.mubr.bf16.mxu0 0
        %2361 = vmatmul.mubr.bf16.gmra.mxu0 %v1399
        %v2362 = vpop.f32.mrf.mxu0
        %v2363 = vadd.f32 0.0, %v2362
        %v2364 = vpop.f32.mrf.mxu0
        %v2365 = vpop.f32.mrf.mxu0
        %v2366 = vadd.f32 0.0, %v2365
        %v2367 = vpop.f32.mrf.mxu0
        %2368 = vmatprep.mubr.bf16.mxu0 0
        %2369 = vmatmul.mubr.bf16.gmra.mxu0 %v1400
        %v2370 = vpop.f32.mrf.mxu0
        %v2371 = vadd.f32 0.0, %v2370
        %v2372 = vpop.f32.mrf.mxu0
        %v2373 = vpop.f32.mrf.mxu0
        %v2374 = vadd.f32 0.0, %v2373
        %v2375 = vpop.f32.mrf.mxu0
        %2376 = vmatprep.mubr.bf16.mxu0 0
        %2377 = vmatmul.mubr.bf16.gmra.mxu0 %v1401
        %v2378 = vpop.f32.mrf.mxu0
        %v2379 = vadd.f32 0.0, %v2378
        %v2380 = vpop.f32.mrf.mxu0
        %v2381 = vpop.f32.mrf.mxu0
        %v2382 = vadd.f32 0.0, %v2381
        %v2383 = vpop.f32.mrf.mxu0
        %2384 = vmatprep.mubr.bf16.mxu0 0
        %2385 = vmatmul.mubr.bf16.gmra.mxu0 %v1402
        %v2386 = vpop.f32.mrf.mxu0
        %v2387 = vadd.f32 0.0, %v2386
        %v2388 = vpop.f32.mrf.mxu0
        %v2389 = vpop.f32.mrf.mxu0
        %v2390 = vadd.f32 0.0, %v2389
        %v2391 = vpop.f32.mrf.mxu0
        %2392 = vmatprep.mubr.bf16.mxu0 0
        %2393 = vmatmul.mubr.bf16.gmra.mxu0 %v1403
        %v2394 = vpop.f32.mrf.mxu0
        %v2395 = vadd.f32 0.0, %v2394
        %v2396 = vpop.f32.mrf.mxu0
        %v2397 = vpop.f32.mrf.mxu0
        %v2398 = vadd.f32 0.0, %v2397
        %v2399 = vpop.f32.mrf.mxu0
        %2400 = vmatprep.mubr.bf16.mxu0 0
        %2401 = vmatmul.mubr.bf16.gmra.mxu0 %v2262
        %v2402 = vpop.f32.mrf.mxu0
        %v2403 = vadd.f32 0.0, %v2402
        %v2404 = vpop.f32.mrf.mxu0
        %v2405 = vpop.f32.mrf.mxu0
        %v2406 = vadd.f32 0.0, %v2405
        %v2407 = vpop.f32.mrf.mxu0
        %2408 = vdwg.mxu0
        %v2409 = vadd.f32 %v2203, %v2347
        %v2410 = vadd.f32 %v2204, %v2350
        %v2411 = vadd.f32 %v2205, %v2355
        %v2412 = vadd.f32 %v2206, %v2358
        %v2413 = vadd.f32 %v2207, %v2363
        %v2414 = vadd.f32 %v2208, %v2366
        %v2415 = vadd.f32 %v2209, %v2371
        %v2416 = vadd.f32 %v2210, %v2374
        %v2417 = vadd.f32 %v2211, %v2379
        %v2418 = vadd.f32 %v2212, %v2382
        %v2419 = vadd.f32 %v2213, %v2387
        %v2420 = vadd.f32 %v2214, %v2390
        %v2421 = vadd.f32 %v2215, %v2395
        %v2422 = vadd.f32 %v2216, %v2398
        %v2423 = vadd.f32 %v2217, %v2403
        %v2424 = vadd.f32 %v2218, %v2406
        %v2427 = vrot.slane %v1150, 5
        %v2428 = vrot.slane %v2427, 4
        %v2429 = vrot.slane %v1129, 5
        %v2430 = vsel %vm1768, %v2428, %v2429
        %v2431 = vrot.slane %v2429, 4
        %v2432 = vrot.slane %v1140, 5
        %v2433 = vsel %vm1768, %v2431, %v2432
        %s2434 = scalar_lea.vmem [#allocation8], 320
        %v2435 = vld [vmem:[%s2434] sm:$0xf]
        %v2436 = vld [vmem:[%s2434 + $0x4] sm:$0xf]
        %v2437 = vld [vmem:[%s2434 + $0x8] sm:$0xf]
        %v2438 = vld [vmem:[%s2434 + $0xc] sm:$0xf]
        %v2439 = vld [vmem:[%s2434 + $0x10] sm:$0xf]
        %v2440 = vld [vmem:[%s2434 + $0x14] sm:$0xf]
        %v2441 = vld [vmem:[%s2434 + $0x18] sm:$0xf]
        %v2442 = vld [vmem:[%s2434 + $0x1c] sm:$0xf]
        %v2443 = vld [vmem:[%s2434 + $0x20] sm:$0xf]
        %v2444 = vld [vmem:[%s2434 + $0x24] sm:$0xf]
        %v2445 = vld [vmem:[%s2434 + $0x28] sm:$0xf]
        %v2446 = vld [vmem:[%s2434 + $0x2c] sm:$0xf]
        %v2447 = vld [vmem:[%s2434 + $0x30] sm:$0xf]
        %v2448 = vld [vmem:[%s2434 + $0x34] sm:$0xf]
        %v2449 = vld [vmem:[%s2434 + $0x38] sm:$0xf]
        %v2450 = vld [vmem:[%s2434 + $0x3c] sm:$0xf]
        %v2451 = vunpack.c.l.b16 %v2430
        %v2452 = vunpack.c.l.b16 %v2433
        %v2453 = vpack.c.b16 %v2452, %v2451
        %v2471 = vunpack.c.l.b16 %v2435
        %v2472 = vunpack.c.l.b16 %v2436
        %v2473 = vunpack.c.l.b16 %v2437
        %v2474 = vunpack.c.l.b16 %v2438
        %v2475 = vunpack.c.l.b16 %v2439
        %v2476 = vunpack.c.l.b16 %v2440
        %v2477 = vunpack.c.l.b16 %v2441
        %v2478 = vunpack.c.l.b16 %v2442
        %v2479 = vunpack.c.l.b16 %v2443
        %v2480 = vunpack.c.l.b16 %v2444
        %v2481 = vunpack.c.l.b16 %v2445
        %v2482 = vunpack.c.l.b16 %v2446
        %v2483 = vunpack.c.l.b16 %v2447
        %v2484 = vunpack.c.l.b16 %v2448
        %v2485 = vunpack.c.l.b16 %v2449
        %v2486 = vunpack.c.l.b16 %v2450
        %v2487 = vpack.c.b16 %v2472, %v2471
        %v2488 = vpack.c.b16 %v2474, %v2473
        %v2489 = vpack.c.b16 %v2476, %v2475
        %v2490 = vpack.c.b16 %v2478, %v2477
        %v2491 = vpack.c.b16 %v2480, %v2479
        %v2492 = vpack.c.b16 %v2482, %v2481
        %v2493 = vpack.c.b16 %v2484, %v2483
        %v2494 = vpack.c.b16 %v2486, %v2485
        %2503 = vmatprep.subr.bf16.mxu0 0
        %2504 = vmatpush1.bf16.msra.mxu0 %v2494
        %2505 = vmatprep.subr.bf16.mxu0 0
        %2506 = vmatpush1.bf16.msra.mxu0 %v2493
        %2507 = vmatprep.subr.bf16.mxu0 0
        %2508 = vmatpush1.bf16.msra.mxu0 %v2492
        %2509 = vmatprep.subr.bf16.mxu0 0
        %2510 = vmatpush1.bf16.msra.mxu0 %v2491
        %2511 = vmatprep.subr.bf16.mxu0 0
        %2512 = vmatpush1.bf16.msra.mxu0 %v2490
        %2513 = vmatprep.subr.bf16.mxu0 0
        %2514 = vmatpush1.bf16.msra.mxu0 %v2489
        %2515 = vmatprep.subr.bf16.mxu0 0
        %2516 = vmatpush1.bf16.msra.mxu0 %v2488
        %2517 = vmatprep.subr.bf16.mxu0 0
        %2518 = vmatpush1.bf16.msra.mxu0 %v2487
        %2519 = vmatprep.subr.bf16.mxu0 0
        %2520 = vmatpush2.bf16.msra.mxu0 0
        %2521 = vmatprep.subr.bf16.mxu0 0
        %2522 = vmatpush2.bf16.msra.mxu0 0
        %2523 = vmatprep.subr.bf16.mxu0 0
        %2524 = vmatpush2.bf16.msra.mxu0 0
        %2525 = vmatprep.subr.bf16.mxu0 0
        %2526 = vmatpush2.bf16.msra.mxu0 0
        %2527 = vmatprep.subr.bf16.mxu0 0
        %2528 = vmatpush2.bf16.msra.mxu0 0
        %2529 = vmatprep.subr.bf16.mxu0 0
        %2530 = vmatpush2.bf16.msra.mxu0 0
        %2531 = vmatprep.subr.bf16.mxu0 0
        %2532 = vmatpush2.bf16.msra.mxu0 0
        %2533 = vmatprep.subr.bf16.mxu0 0
        %2534 = vmatpush2.bf16.msra.mxu0 0
        %2535 = vmatprep.mubr.bf16.mxu0 0
        %2536 = vmatmul.mubr.bf16.gmra.mxu0 %v1859
        %v2537 = vpop.f32.mrf.mxu0
        %v2538 = vadd.f32 0.0, %v2537
        %v2539 = vpop.f32.mrf.mxu0
        %v2540 = vpop.f32.mrf.mxu0
        %v2541 = vadd.f32 0.0, %v2540
        %v2542 = vpop.f32.mrf.mxu0
        %2543 = vmatprep.mubr.bf16.mxu0 0
        %2544 = vmatmul.mubr.bf16.gmra.mxu0 %v1860
        %v2545 = vpop.f32.mrf.mxu0
        %v2546 = vadd.f32 0.0, %v2545
        %v2547 = vpop.f32.mrf.mxu0
        %v2548 = vpop.f32.mrf.mxu0
        %v2549 = vadd.f32 0.0, %v2548
        %v2550 = vpop.f32.mrf.mxu0
        %2551 = vmatprep.mubr.bf16.mxu0 0
        %2552 = vmatmul.mubr.bf16.gmra.mxu0 %v1861
        %v2553 = vpop.f32.mrf.mxu0
        %v2554 = vadd.f32 0.0, %v2553
        %v2555 = vpop.f32.mrf.mxu0
        %v2556 = vpop.f32.mrf.mxu0
        %v2557 = vadd.f32 0.0, %v2556
        %v2558 = vpop.f32.mrf.mxu0
        %2559 = vmatprep.mubr.bf16.mxu0 0
        %2560 = vmatmul.mubr.bf16.gmra.mxu0 %v1862
        %v2561 = vpop.f32.mrf.mxu0
        %v2562 = vadd.f32 0.0, %v2561
        %v2563 = vpop.f32.mrf.mxu0
        %v2564 = vpop.f32.mrf.mxu0
        %v2565 = vadd.f32 0.0, %v2564
        %v2566 = vpop.f32.mrf.mxu0
        %2567 = vmatprep.mubr.bf16.mxu0 0
        %2568 = vmatmul.mubr.bf16.gmra.mxu0 %v1863
        %v2569 = vpop.f32.mrf.mxu0
        %v2570 = vadd.f32 0.0, %v2569
        %v2571 = vpop.f32.mrf.mxu0
        %v2572 = vpop.f32.mrf.mxu0
        %v2573 = vadd.f32 0.0, %v2572
        %v2574 = vpop.f32.mrf.mxu0
        %2575 = vmatprep.mubr.bf16.mxu0 0
        %2576 = vmatmul.mubr.bf16.gmra.mxu0 %v1864
        %v2577 = vpop.f32.mrf.mxu0
        %v2578 = vadd.f32 0.0, %v2577
        %v2579 = vpop.f32.mrf.mxu0
        %v2580 = vpop.f32.mrf.mxu0
        %v2581 = vadd.f32 0.0, %v2580
        %v2582 = vpop.f32.mrf.mxu0
        %2583 = vmatprep.mubr.bf16.mxu0 0
        %2584 = vmatmul.mubr.bf16.gmra.mxu0 %v1865
        %v2585 = vpop.f32.mrf.mxu0
        %v2586 = vadd.f32 0.0, %v2585
        %v2587 = vpop.f32.mrf.mxu0
        %v2588 = vpop.f32.mrf.mxu0
        %v2589 = vadd.f32 0.0, %v2588
        %v2590 = vpop.f32.mrf.mxu0
        %2591 = vmatprep.mubr.bf16.mxu0 0
        %2592 = vmatmul.mubr.bf16.gmra.mxu0 %v2453
        %v2593 = vpop.f32.mrf.mxu0
        %v2594 = vadd.f32 0.0, %v2593
        %v2595 = vpop.f32.mrf.mxu0
        %v2596 = vpop.f32.mrf.mxu0
        %v2597 = vadd.f32 0.0, %v2596
        %v2598 = vpop.f32.mrf.mxu0
        %2599 = vdwg.mxu0
        %v2600 = vadd.f32 %v2409, %v2538
        %v2601 = vadd.f32 %v2410, %v2541
        %v2602 = vadd.f32 %v2411, %v2546
        %v2603 = vadd.f32 %v2412, %v2549
        %v2604 = vadd.f32 %v2413, %v2554
        %v2605 = vadd.f32 %v2414, %v2557
        %v2606 = vadd.f32 %v2415, %v2562
        %v2607 = vadd.f32 %v2416, %v2565
        %v2608 = vadd.f32 %v2417, %v2570
        %v2609 = vadd.f32 %v2418, %v2573
        %v2610 = vadd.f32 %v2419, %v2578
        %v2611 = vadd.f32 %v2420, %v2581
        %v2612 = vadd.f32 %v2421, %v2586
        %v2613 = vadd.f32 %v2422, %v2589
        %v2614 = vadd.f32 %v2423, %v2594
        %v2615 = vadd.f32 %v2424, %v2597
        %s2616 = scalar_lea.vmem [#allocation8], 384
        %v2617 = vld [vmem:[%s2616] sm:$0xf]
        %v2618 = vld [vmem:[%s2616 + $0x4] sm:$0xf]
        %v2619 = vld [vmem:[%s2616 + $0x8] sm:$0xf]
        %v2620 = vld [vmem:[%s2616 + $0xc] sm:$0xf]
        %v2621 = vld [vmem:[%s2616 + $0x10] sm:$0xf]
        %v2622 = vld [vmem:[%s2616 + $0x14] sm:$0xf]
        %v2623 = vld [vmem:[%s2616 + $0x18] sm:$0xf]
        %v2624 = vld [vmem:[%s2616 + $0x1c] sm:$0xf]
        %v2625 = vld [vmem:[%s2616 + $0x20] sm:$0xf]
        %v2626 = vld [vmem:[%s2616 + $0x24] sm:$0xf]
        %v2627 = vld [vmem:[%s2616 + $0x28] sm:$0xf]
        %v2628 = vld [vmem:[%s2616 + $0x2c] sm:$0xf]
        %v2629 = vld [vmem:[%s2616 + $0x30] sm:$0xf]
        %v2630 = vld [vmem:[%s2616 + $0x34] sm:$0xf]
        %v2631 = vld [vmem:[%s2616 + $0x38] sm:$0xf]
        %v2632 = vld [vmem:[%s2616 + $0x3c] sm:$0xf]
        %v2635 = vunpack.c.l.b16 %v1130
        %v2636 = vunpack.c.l.b16 %v1131
        %v2637 = vpack.c.b16 %v2636, %v2635
        %v2655 = vunpack.c.l.b16 %v2617
        %v2656 = vunpack.c.l.b16 %v2618
        %v2657 = vunpack.c.l.b16 %v2619
        %v2658 = vunpack.c.l.b16 %v2620
        %v2659 = vunpack.c.l.b16 %v2621
        %v2660 = vunpack.c.l.b16 %v2622
        %v2661 = vunpack.c.l.b16 %v2623
        %v2662 = vunpack.c.l.b16 %v2624
        %v2663 = vunpack.c.l.b16 %v2625
        %v2664 = vunpack.c.l.b16 %v2626
        %v2665 = vunpack.c.l.b16 %v2627
        %v2666 = vunpack.c.l.b16 %v2628
        %v2667 = vunpack.c.l.b16 %v2629
        %v2668 = vunpack.c.l.b16 %v2630
        %v2669 = vunpack.c.l.b16 %v2631
        %v2670 = vunpack.c.l.b16 %v2632
        %v2671 = vpack.c.b16 %v2656, %v2655
        %v2672 = vpack.c.b16 %v2658, %v2657
        %v2673 = vpack.c.b16 %v2660, %v2659
        %v2674 = vpack.c.b16 %v2662, %v2661
        %v2675 = vpack.c.b16 %v2664, %v2663
        %v2676 = vpack.c.b16 %v2666, %v2665
        %v2677 = vpack.c.b16 %v2668, %v2667
        %v2678 = vpack.c.b16 %v2670, %v2669
        %2687 = vmatprep.subr.bf16.mxu0 0
        %2688 = vmatpush1.bf16.msra.mxu0 %v2678
        %2689 = vmatprep.subr.bf16.mxu0 0
        %2690 = vmatpush1.bf16.msra.mxu0 %v2677
        %2691 = vmatprep.subr.bf16.mxu0 0
        %2692 = vmatpush1.bf16.msra.mxu0 %v2676
        %2693 = vmatprep.subr.bf16.mxu0 0
        %2694 = vmatpush1.bf16.msra.mxu0 %v2675
        %2695 = vmatprep.subr.bf16.mxu0 0
        %2696 = vmatpush1.bf16.msra.mxu0 %v2674
        %2697 = vmatprep.subr.bf16.mxu0 0
        %2698 = vmatpush1.bf16.msra.mxu0 %v2673
        %2699 = vmatprep.subr.bf16.mxu0 0
        %2700 = vmatpush1.bf16.msra.mxu0 %v2672
        %2701 = vmatprep.subr.bf16.mxu0 0
        %2702 = vmatpush1.bf16.msra.mxu0 %v2671
        %2703 = vmatprep.subr.bf16.mxu0 0
        %2704 = vmatpush2.bf16.msra.mxu0 0
        %2705 = vmatprep.subr.bf16.mxu0 0
        %2706 = vmatpush2.bf16.msra.mxu0 0
        %2707 = vmatprep.subr.bf16.mxu0 0
        %2708 = vmatpush2.bf16.msra.mxu0 0
        %2709 = vmatprep.subr.bf16.mxu0 0
        %2710 = vmatpush2.bf16.msra.mxu0 0
        %2711 = vmatprep.subr.bf16.mxu0 0
        %2712 = vmatpush2.bf16.msra.mxu0 0
        %2713 = vmatprep.subr.bf16.mxu0 0
        %2714 = vmatpush2.bf16.msra.mxu0 0
        %2715 = vmatprep.subr.bf16.mxu0 0
        %2716 = vmatpush2.bf16.msra.mxu0 0
        %2717 = vmatprep.subr.bf16.mxu0 0
        %2718 = vmatpush2.bf16.msra.mxu0 0
        %2719 = vmatprep.mubr.bf16.mxu0 0
        %2720 = vmatmul.mubr.bf16.gmra.mxu0 %v1591
        %v2721 = vpop.f32.mrf.mxu0
        %v2722 = vadd.f32 0.0, %v2721
        %v2723 = vpop.f32.mrf.mxu0
        %v2724 = vpop.f32.mrf.mxu0
        %v2725 = vadd.f32 0.0, %v2724
        %v2726 = vpop.f32.mrf.mxu0
        %2727 = vmatprep.mubr.bf16.mxu0 0
        %2728 = vmatmul.mubr.bf16.gmra.mxu0 %v1592
        %v2729 = vpop.f32.mrf.mxu0
        %v2730 = vadd.f32 0.0, %v2729
        %v2731 = vpop.f32.mrf.mxu0
        %v2732 = vpop.f32.mrf.mxu0
        %v2733 = vadd.f32 0.0, %v2732
        %v2734 = vpop.f32.mrf.mxu0
        %2735 = vmatprep.mubr.bf16.mxu0 0
        %2736 = vmatmul.mubr.bf16.gmra.mxu0 %v1593
        %v2737 = vpop.f32.mrf.mxu0
        %v2738 = vadd.f32 0.0, %v2737
        %v2739 = vpop.f32.mrf.mxu0
        %v2740 = vpop.f32.mrf.mxu0
        %v2741 = vadd.f32 0.0, %v2740
        %v2742 = vpop.f32.mrf.mxu0
        %2743 = vmatprep.mubr.bf16.mxu0 0
        %2744 = vmatmul.mubr.bf16.gmra.mxu0 %v1594
        %v2745 = vpop.f32.mrf.mxu0
        %v2746 = vadd.f32 0.0, %v2745
        %v2747 = vpop.f32.mrf.mxu0
        %v2748 = vpop.f32.mrf.mxu0
        %v2749 = vadd.f32 0.0, %v2748
        %v2750 = vpop.f32.mrf.mxu0
        %2751 = vmatprep.mubr.bf16.mxu0 0
        %2752 = vmatmul.mubr.bf16.gmra.mxu0 %v1595
        %v2753 = vpop.f32.mrf.mxu0
        %v2754 = vadd.f32 0.0, %v2753
        %v2755 = vpop.f32.mrf.mxu0
        %v2756 = vpop.f32.mrf.mxu0
        %v2757 = vadd.f32 0.0, %v2756
        %v2758 = vpop.f32.mrf.mxu0
        %2759 = vmatprep.mubr.bf16.mxu0 0
        %2760 = vmatmul.mubr.bf16.gmra.mxu0 %v1596
        %v2761 = vpop.f32.mrf.mxu0
        %v2762 = vadd.f32 0.0, %v2761
        %v2763 = vpop.f32.mrf.mxu0
        %v2764 = vpop.f32.mrf.mxu0
        %v2765 = vadd.f32 0.0, %v2764
        %v2766 = vpop.f32.mrf.mxu0
        %2767 = vmatprep.mubr.bf16.mxu0 0
        %2768 = vmatmul.mubr.bf16.gmra.mxu0 %v2056
        %v2769 = vpop.f32.mrf.mxu0
        %v2770 = vadd.f32 0.0, %v2769
        %v2771 = vpop.f32.mrf.mxu0
        %v2772 = vpop.f32.mrf.mxu0
        %v2773 = vadd.f32 0.0, %v2772
        %v2774 = vpop.f32.mrf.mxu0
        %2775 = vmatprep.mubr.bf16.mxu0 0
        %2776 = vmatmul.mubr.bf16.gmra.mxu0 %v2637
        %v2777 = vpop.f32.mrf.mxu0
        %v2778 = vadd.f32 0.0, %v2777
        %v2779 = vpop.f32.mrf.mxu0
        %v2780 = vpop.f32.mrf.mxu0
        %v2781 = vadd.f32 0.0, %v2780
        %v2782 = vpop.f32.mrf.mxu0
        %2783 = vdwg.mxu0
        %v2784 = vadd.f32 %v2600, %v2722
        %v2785 = vadd.f32 %v2601, %v2725
        %v2786 = vadd.f32 %v2602, %v2730
        %v2787 = vadd.f32 %v2603, %v2733
        %v2788 = vadd.f32 %v2604, %v2738
        %v2789 = vadd.f32 %v2605, %v2741
        %v2790 = vadd.f32 %v2606, %v2746
        %v2791 = vadd.f32 %v2607, %v2749
        %v2792 = vadd.f32 %v2608, %v2754
        %v2793 = vadd.f32 %v2609, %v2757
        %v2794 = vadd.f32 %v2610, %v2762
        %v2795 = vadd.f32 %v2611, %v2765
        %v2796 = vadd.f32 %v2612, %v2770
        %v2797 = vadd.f32 %v2613, %v2773
        %v2798 = vadd.f32 %v2614, %v2778
        %v2799 = vadd.f32 %v2615, %v2781
        %v2801 = vshrl.u32 %v1130, 16
        %v2803 = vrot.slane %v2801, 4
        %v2804 = vshll.u32 %v1130, 16
        %v2806 = vrot.slane %v2804, 5
        %v2807 = vor.u32 %v2803, %v2806
        %v2808 = vrot.slane %v2807, 4
        %v2810 = vshll.u32 %v1131, 16
        %v2812 = vrot.slane %v2810, 5
        %v2813 = vsel %vm1170, %v2808, %v2812
        %v2814 = vshrl.u32 %v1131, 16
        %v2816 = vrot.slane %v2814, 4
        %v2817 = vor.u32 %v2816, %v2812
        %v2818 = vrot.slane %v2817, 4
        %v2820 = vshll.u32 %v1141, 16
        %v2822 = vrot.slane %v2820, 5
        %v2823 = vsel %vm1170, %v2818, %v2822
        %s2824 = scalar_lea.vmem [#allocation8], 448
        %v2825 = vld [vmem:[%s2824] sm:$0xf]
        %v2826 = vld [vmem:[%s2824 + $0x4] sm:$0xf]
        %v2827 = vld [vmem:[%s2824 + $0x8] sm:$0xf]
        %v2828 = vld [vmem:[%s2824 + $0xc] sm:$0xf]
        %v2829 = vld [vmem:[%s2824 + $0x10] sm:$0xf]
        %v2830 = vld [vmem:[%s2824 + $0x14] sm:$0xf]
        %v2831 = vld [vmem:[%s2824 + $0x18] sm:$0xf]
        %v2832 = vld [vmem:[%s2824 + $0x1c] sm:$0xf]
        %v2833 = vld [vmem:[%s2824 + $0x20] sm:$0xf]
        %v2834 = vld [vmem:[%s2824 + $0x24] sm:$0xf]
        %v2835 = vld [vmem:[%s2824 + $0x28] sm:$0xf]
        %v2836 = vld [vmem:[%s2824 + $0x2c] sm:$0xf]
        %v2837 = vld [vmem:[%s2824 + $0x30] sm:$0xf]
        %v2838 = vld [vmem:[%s2824 + $0x34] sm:$0xf]
        %v2839 = vld [vmem:[%s2824 + $0x38] sm:$0xf]
        %v2840 = vld [vmem:[%s2824 + $0x3c] sm:$0xf]
        %v2841 = vunpack.c.l.b16 %v2813
        %v2842 = vunpack.c.l.b16 %v2823
        %v2843 = vpack.c.b16 %v2842, %v2841
        %v2861 = vunpack.c.l.b16 %v2825
        %v2862 = vunpack.c.l.b16 %v2826
        %v2863 = vunpack.c.l.b16 %v2827
        %v2864 = vunpack.c.l.b16 %v2828
        %v2865 = vunpack.c.l.b16 %v2829
        %v2866 = vunpack.c.l.b16 %v2830
        %v2867 = vunpack.c.l.b16 %v2831
        %v2868 = vunpack.c.l.b16 %v2832
        %v2869 = vunpack.c.l.b16 %v2833
        %v2870 = vunpack.c.l.b16 %v2834
        %v2871 = vunpack.c.l.b16 %v2835
        %v2872 = vunpack.c.l.b16 %v2836
        %v2873 = vunpack.c.l.b16 %v2837
        %v2874 = vunpack.c.l.b16 %v2838
        %v2875 = vunpack.c.l.b16 %v2839
        %v2876 = vunpack.c.l.b16 %v2840
        %v2877 = vpack.c.b16 %v2862, %v2861
        %v2878 = vpack.c.b16 %v2864, %v2863
        %v2879 = vpack.c.b16 %v2866, %v2865
        %v2880 = vpack.c.b16 %v2868, %v2867
        %v2881 = vpack.c.b16 %v2870, %v2869
        %v2882 = vpack.c.b16 %v2872, %v2871
        %v2883 = vpack.c.b16 %v2874, %v2873
        %v2884 = vpack.c.b16 %v2876, %v2875
        %2893 = vmatprep.subr.bf16.mxu0 0
        %2894 = vmatpush1.bf16.msra.mxu0 %v2884
        %2895 = vmatprep.subr.bf16.mxu0 0
        %2896 = vmatpush1.bf16.msra.mxu0 %v2883
        %2897 = vmatprep.subr.bf16.mxu0 0
        %2898 = vmatpush1.bf16.msra.mxu0 %v2882
        %2899 = vmatprep.subr.bf16.mxu0 0
        %2900 = vmatpush1.bf16.msra.mxu0 %v2881
        %2901 = vmatprep.subr.bf16.mxu0 0
        %2902 = vmatpush1.bf16.msra.mxu0 %v2880
        %2903 = vmatprep.subr.bf16.mxu0 0
        %2904 = vmatpush1.bf16.msra.mxu0 %v2879
        %2905 = vmatprep.subr.bf16.mxu0 0
        %2906 = vmatpush1.bf16.msra.mxu0 %v2878
        %2907 = vmatprep.subr.bf16.mxu0 0
        %2908 = vmatpush1.bf16.msra.mxu0 %v2877
        %2909 = vmatprep.subr.bf16.mxu0 0
        %2910 = vmatpush2.bf16.msra.mxu0 0
        %2911 = vmatprep.subr.bf16.mxu0 0
        %2912 = vmatpush2.bf16.msra.mxu0 0
        %2913 = vmatprep.subr.bf16.mxu0 0
        %2914 = vmatpush2.bf16.msra.mxu0 0
        %2915 = vmatprep.subr.bf16.mxu0 0
        %2916 = vmatpush2.bf16.msra.mxu0 0
        %2917 = vmatprep.subr.bf16.mxu0 0
        %2918 = vmatpush2.bf16.msra.mxu0 0
        %2919 = vmatprep.subr.bf16.mxu0 0
        %2920 = vmatpush2.bf16.msra.mxu0 0
        %2921 = vmatprep.subr.bf16.mxu0 0
        %2922 = vmatpush2.bf16.msra.mxu0 0
        %2923 = vmatprep.subr.bf16.mxu0 0
        %2924 = vmatpush2.bf16.msra.mxu0 0
        %2925 = vmatprep.mubr.bf16.mxu0 0
        %2926 = vmatmul.mubr.bf16.gmra.mxu0 %v1398
        %v2927 = vpop.f32.mrf.mxu0
        %v2928 = vadd.f32 0.0, %v2927
        %v2929 = vpop.f32.mrf.mxu0
        %v2930 = vpop.f32.mrf.mxu0
        %v2931 = vadd.f32 0.0, %v2930
        %v2932 = vpop.f32.mrf.mxu0
        %2933 = vmatprep.mubr.bf16.mxu0 0
        %2934 = vmatmul.mubr.bf16.gmra.mxu0 %v1399
        %v2935 = vpop.f32.mrf.mxu0
        %v2936 = vadd.f32 0.0, %v2935
        %v2937 = vpop.f32.mrf.mxu0
        %v2938 = vpop.f32.mrf.mxu0
        %v2939 = vadd.f32 0.0, %v2938
        %v2940 = vpop.f32.mrf.mxu0
        %2941 = vmatprep.mubr.bf16.mxu0 0
        %2942 = vmatmul.mubr.bf16.gmra.mxu0 %v1400
        %v2943 = vpop.f32.mrf.mxu0
        %v2944 = vadd.f32 0.0, %v2943
        %v2945 = vpop.f32.mrf.mxu0
        %v2946 = vpop.f32.mrf.mxu0
        %v2947 = vadd.f32 0.0, %v2946
        %v2948 = vpop.f32.mrf.mxu0
        %2949 = vmatprep.mubr.bf16.mxu0 0
        %2950 = vmatmul.mubr.bf16.gmra.mxu0 %v1401
        %v2951 = vpop.f32.mrf.mxu0
        %v2952 = vadd.f32 0.0, %v2951
        %v2953 = vpop.f32.mrf.mxu0
        %v2954 = vpop.f32.mrf.mxu0
        %v2955 = vadd.f32 0.0, %v2954
        %v2956 = vpop.f32.mrf.mxu0
        %2957 = vmatprep.mubr.bf16.mxu0 0
        %2958 = vmatmul.mubr.bf16.gmra.mxu0 %v1402
        %v2959 = vpop.f32.mrf.mxu0
        %v2960 = vadd.f32 0.0, %v2959
        %v2961 = vpop.f32.mrf.mxu0
        %v2962 = vpop.f32.mrf.mxu0
        %v2963 = vadd.f32 0.0, %v2962
        %v2964 = vpop.f32.mrf.mxu0
        %2965 = vmatprep.mubr.bf16.mxu0 0
        %2966 = vmatmul.mubr.bf16.gmra.mxu0 %v1403
        %v2967 = vpop.f32.mrf.mxu0
        %v2968 = vadd.f32 0.0, %v2967
        %v2969 = vpop.f32.mrf.mxu0
        %v2970 = vpop.f32.mrf.mxu0
        %v2971 = vadd.f32 0.0, %v2970
        %v2972 = vpop.f32.mrf.mxu0
        %2973 = vmatprep.mubr.bf16.mxu0 0
        %2974 = vmatmul.mubr.bf16.gmra.mxu0 %v2262
        %v2975 = vpop.f32.mrf.mxu0
        %v2976 = vadd.f32 0.0, %v2975
        %v2977 = vpop.f32.mrf.mxu0
        %v2978 = vpop.f32.mrf.mxu0
        %v2979 = vadd.f32 0.0, %v2978
        %v2980 = vpop.f32.mrf.mxu0
        %2981 = vmatprep.mubr.bf16.mxu0 0
        %2982 = vmatmul.mubr.bf16.gmra.mxu0 %v2843
        %v2983 = vpop.f32.mrf.mxu0
        %v2984 = vadd.f32 0.0, %v2983
        %v2985 = vpop.f32.mrf.mxu0
        %v2986 = vpop.f32.mrf.mxu0
        %v2987 = vadd.f32 0.0, %v2986
        %v2988 = vpop.f32.mrf.mxu0
        %2989 = vdwg.mxu0
        %v2990 = vadd.f32 %v2784, %v2928
        %v2991 = vadd.f32 %v2785, %v2931
        %v2992 = vadd.f32 %v2786, %v2936
        %v2993 = vadd.f32 %v2787, %v2939
        %v2994 = vadd.f32 %v2788, %v2944
        %v2995 = vadd.f32 %v2789, %v2947
        %v2996 = vadd.f32 %v2790, %v2952
        %v2997 = vadd.f32 %v2791, %v2955
        %v2998 = vadd.f32 %v2792, %v2960
        %v2999 = vadd.f32 %v2793, %v2963
        %v3000 = vadd.f32 %v2794, %v2968
        %v3001 = vadd.f32 %v2795, %v2971
        %v3002 = vadd.f32 %v2796, %v2976
        %v3003 = vadd.f32 %v2797, %v2979
        %v3004 = vadd.f32 %v2798, %v2984
        %v3005 = vadd.f32 %v2799, %v2987
        %v3008 = vrot.slane %v1151, 5
        %v3009 = vrot.slane %v3008, 4
        %v3010 = vrot.slane %v1131, 5
        %v3011 = vsel %vm1768, %v3009, %v3010
        %v3012 = vrot.slane %v3010, 4
        %v3013 = vrot.slane %v1141, 5
        %v3014 = vsel %vm1768, %v3012, %v3013
        %s3015 = scalar_lea.vmem [#allocation8], 512
        %v3016 = vld [vmem:[%s3015] sm:$0xf]
        %v3017 = vld [vmem:[%s3015 + $0x4] sm:$0xf]
        %v3018 = vld [vmem:[%s3015 + $0x8] sm:$0xf]
        %v3019 = vld [vmem:[%s3015 + $0xc] sm:$0xf]
        %v3020 = vld [vmem:[%s3015 + $0x10] sm:$0xf]
        %v3021 = vld [vmem:[%s3015 + $0x14] sm:$0xf]
        %v3022 = vld [vmem:[%s3015 + $0x18] sm:$0xf]
        %v3023 = vld [vmem:[%s3015 + $0x1c] sm:$0xf]
        %v3024 = vld [vmem:[%s3015 + $0x20] sm:$0xf]
        %v3025 = vld [vmem:[%s3015 + $0x24] sm:$0xf]
        %v3026 = vld [vmem:[%s3015 + $0x28] sm:$0xf]
        %v3027 = vld [vmem:[%s3015 + $0x2c] sm:$0xf]
        %v3028 = vld [vmem:[%s3015 + $0x30] sm:$0xf]
        %v3029 = vld [vmem:[%s3015 + $0x34] sm:$0xf]
        %v3030 = vld [vmem:[%s3015 + $0x38] sm:$0xf]
        %v3031 = vld [vmem:[%s3015 + $0x3c] sm:$0xf]
        %v3032 = vunpack.c.l.b16 %v3011
        %v3033 = vunpack.c.l.b16 %v3014
        %v3034 = vpack.c.b16 %v3033, %v3032
        %v3052 = vunpack.c.l.b16 %v3016
        %v3053 = vunpack.c.l.b16 %v3017
        %v3054 = vunpack.c.l.b16 %v3018
        %v3055 = vunpack.c.l.b16 %v3019
        %v3056 = vunpack.c.l.b16 %v3020
        %v3057 = vunpack.c.l.b16 %v3021
        %v3058 = vunpack.c.l.b16 %v3022
        %v3059 = vunpack.c.l.b16 %v3023
        %v3060 = vunpack.c.l.b16 %v3024
        %v3061 = vunpack.c.l.b16 %v3025
        %v3062 = vunpack.c.l.b16 %v3026
        %v3063 = vunpack.c.l.b16 %v3027
        %v3064 = vunpack.c.l.b16 %v3028
        %v3065 = vunpack.c.l.b16 %v3029
        %v3066 = vunpack.c.l.b16 %v3030
        %v3067 = vunpack.c.l.b16 %v3031
        %v3068 = vpack.c.b16 %v3053, %v3052
        %v3069 = vpack.c.b16 %v3055, %v3054
        %v3070 = vpack.c.b16 %v3057, %v3056
        %v3071 = vpack.c.b16 %v3059, %v3058
        %v3072 = vpack.c.b16 %v3061, %v3060
        %v3073 = vpack.c.b16 %v3063, %v3062
        %v3074 = vpack.c.b16 %v3065, %v3064
        %v3075 = vpack.c.b16 %v3067, %v3066
        %3084 = vmatprep.subr.bf16.mxu0 0
        %3085 = vmatpush1.bf16.msra.mxu0 %v3075
        %3086 = vmatprep.subr.bf16.mxu0 0
        %3087 = vmatpush1.bf16.msra.mxu0 %v3074
        %3088 = vmatprep.subr.bf16.mxu0 0
        %3089 = vmatpush1.bf16.msra.mxu0 %v3073
        %3090 = vmatprep.subr.bf16.mxu0 0
        %3091 = vmatpush1.bf16.msra.mxu0 %v3072
        %3092 = vmatprep.subr.bf16.mxu0 0
        %3093 = vmatpush1.bf16.msra.mxu0 %v3071
        %3094 = vmatprep.subr.bf16.mxu0 0
        %3095 = vmatpush1.bf16.msra.mxu0 %v3070
        %3096 = vmatprep.subr.bf16.mxu0 0
        %3097 = vmatpush1.bf16.msra.mxu0 %v3069
        %3098 = vmatprep.subr.bf16.mxu0 0
        %3099 = vmatpush1.bf16.msra.mxu0 %v3068
        %3100 = vmatprep.subr.bf16.mxu0 0
        %3101 = vmatpush2.bf16.msra.mxu0 0
        %3102 = vmatprep.subr.bf16.mxu0 0
        %3103 = vmatpush2.bf16.msra.mxu0 0
        %3104 = vmatprep.subr.bf16.mxu0 0
        %3105 = vmatpush2.bf16.msra.mxu0 0
        %3106 = vmatprep.subr.bf16.mxu0 0
        %3107 = vmatpush2.bf16.msra.mxu0 0
        %3108 = vmatprep.subr.bf16.mxu0 0
        %3109 = vmatpush2.bf16.msra.mxu0 0
        %3110 = vmatprep.subr.bf16.mxu0 0
        %3111 = vmatpush2.bf16.msra.mxu0 0
        %3112 = vmatprep.subr.bf16.mxu0 0
        %3113 = vmatpush2.bf16.msra.mxu0 0
        %3114 = vmatprep.subr.bf16.mxu0 0
        %3115 = vmatpush2.bf16.msra.mxu0 0
        %3116 = vmatprep.mubr.bf16.mxu0 0
        %3117 = vmatmul.mubr.bf16.gmra.mxu0 %v1860
        %v3118 = vpop.f32.mrf.mxu0
        %v3119 = vadd.f32 0.0, %v3118
        %v3120 = vpop.f32.mrf.mxu0
        %v3121 = vpop.f32.mrf.mxu0
        %v3122 = vadd.f32 0.0, %v3121
        %v3123 = vpop.f32.mrf.mxu0
        %3124 = vmatprep.mubr.bf16.mxu0 0
        %3125 = vmatmul.mubr.bf16.gmra.mxu0 %v1861
        %v3126 = vpop.f32.mrf.mxu0
        %v3127 = vadd.f32 0.0, %v3126
        %v3128 = vpop.f32.mrf.mxu0
        %v3129 = vpop.f32.mrf.mxu0
        %v3130 = vadd.f32 0.0, %v3129
        %v3131 = vpop.f32.mrf.mxu0
        %3132 = vmatprep.mubr.bf16.mxu0 0
        %3133 = vmatmul.mubr.bf16.gmra.mxu0 %v1862
        %v3134 = vpop.f32.mrf.mxu0
        %v3135 = vadd.f32 0.0, %v3134
        %v3136 = vpop.f32.mrf.mxu0
        %v3137 = vpop.f32.mrf.mxu0
        %v3138 = vadd.f32 0.0, %v3137
        %v3139 = vpop.f32.mrf.mxu0
        %3140 = vmatprep.mubr.bf16.mxu0 0
        %3141 = vmatmul.mubr.bf16.gmra.mxu0 %v1863
        %v3142 = vpop.f32.mrf.mxu0
        %v3143 = vadd.f32 0.0, %v3142
        %v3144 = vpop.f32.mrf.mxu0
        %v3145 = vpop.f32.mrf.mxu0
        %v3146 = vadd.f32 0.0, %v3145
        %v3147 = vpop.f32.mrf.mxu0
        %3148 = vmatprep.mubr.bf16.mxu0 0
        %3149 = vmatmul.mubr.bf16.gmra.mxu0 %v1864
        %v3150 = vpop.f32.mrf.mxu0
        %v3151 = vadd.f32 0.0, %v3150
        %v3152 = vpop.f32.mrf.mxu0
        %v3153 = vpop.f32.mrf.mxu0
        %v3154 = vadd.f32 0.0, %v3153
        %v3155 = vpop.f32.mrf.mxu0
        %3156 = vmatprep.mubr.bf16.mxu0 0
        %3157 = vmatmul.mubr.bf16.gmra.mxu0 %v1865
        %v3158 = vpop.f32.mrf.mxu0
        %v3159 = vadd.f32 0.0, %v3158
        %v3160 = vpop.f32.mrf.mxu0
        %v3161 = vpop.f32.mrf.mxu0
        %v3162 = vadd.f32 0.0, %v3161
        %v3163 = vpop.f32.mrf.mxu0
        %3164 = vmatprep.mubr.bf16.mxu0 0
        %3165 = vmatmul.mubr.bf16.gmra.mxu0 %v2453
        %v3166 = vpop.f32.mrf.mxu0
        %v3167 = vadd.f32 0.0, %v3166
        %v3168 = vpop.f32.mrf.mxu0
        %v3169 = vpop.f32.mrf.mxu0
        %v3170 = vadd.f32 0.0, %v3169
        %v3171 = vpop.f32.mrf.mxu0
        %3172 = vmatprep.mubr.bf16.mxu0 0
        %3173 = vmatmul.mubr.bf16.gmra.mxu0 %v3034
        %v3174 = vpop.f32.mrf.mxu0
        %v3175 = vadd.f32 0.0, %v3174
        %v3176 = vpop.f32.mrf.mxu0
        %v3177 = vpop.f32.mrf.mxu0
        %v3178 = vadd.f32 0.0, %v3177
        %v3179 = vpop.f32.mrf.mxu0
        %3180 = vdwg.mxu0
        %v3181 = vadd.f32 %v2990, %v3119
        %v3182 = vadd.f32 %v2991, %v3122
        %v3183 = vadd.f32 %v2992, %v3127
        %v3184 = vadd.f32 %v2993, %v3130
        %v3185 = vadd.f32 %v2994, %v3135
        %v3186 = vadd.f32 %v2995, %v3138
        %v3187 = vadd.f32 %v2996, %v3143
        %v3188 = vadd.f32 %v2997, %v3146
        %v3189 = vadd.f32 %v2998, %v3151
        %v3190 = vadd.f32 %v2999, %v3154
        %v3191 = vadd.f32 %v3000, %v3159
        %v3192 = vadd.f32 %v3001, %v3162
        %v3193 = vadd.f32 %v3002, %v3167
        %v3194 = vadd.f32 %v3003, %v3170
        %v3195 = vadd.f32 %v3004, %v3175
        %v3196 = vadd.f32 %v3005, %v3178
        %v3197 = vld [vmem:[%s4] sm:$0x1]
        %v3199 = vlaneseq
        %v3200 = vshrl.u32 %v3199, 7
        %v3201 = vsub.s32 0, %v3200
        %v3202 = vrot.slane %v3197, %v3201
        %v3204 = vadd.f32 %v3181, %v3202
        %v3205 = vadd.f32 %v3182, %v3202
        %v3206 = vadd.f32 %v3183, %v3202
        %v3207 = vadd.f32 %v3184, %v3202
        %v3208 = vadd.f32 %v3185, %v3202
        %v3209 = vadd.f32 %v3186, %v3202
        %v3210 = vadd.f32 %v3187, %v3202
        %v3211 = vadd.f32 %v3188, %v3202
        %v3212 = vadd.f32 %v3189, %v3202
        %v3213 = vadd.f32 %v3190, %v3202
        %v3214 = vadd.f32 %v3191, %v3202
        %v3215 = vadd.f32 %v3192, %v3202
        %v3216 = vadd.f32 %v3193, %v3202
        %v3217 = vadd.f32 %v3194, %v3202
        %v3218 = vadd.f32 %v3195, %v3202
        %v3219 = vadd.f32 %v3196, %v3202
        %v3220 = vmax.f32 %v3204, 0.0
        %v3221 = vmax.f32 %v3205, 0.0
        %v3222 = vmax.f32 %v3206, 0.0
        %v3223 = vmax.f32 %v3207, 0.0
        %v3224 = vmax.f32 %v3208, 0.0
        %v3225 = vmax.f32 %v3209, 0.0
        %v3226 = vmax.f32 %v3210, 0.0
        %v3227 = vmax.f32 %v3211, 0.0
        %v3228 = vmax.f32 %v3212, 0.0
        %v3229 = vmax.f32 %v3213, 0.0
        %v3230 = vmax.f32 %v3214, 0.0
        %v3231 = vmax.f32 %v3215, 0.0
        %v3232 = vmax.f32 %v3216, 0.0
        %v3233 = vmax.f32 %v3217, 0.0
        %v3234 = vmax.f32 %v3218, 0.0
        %v3235 = vmax.f32 %v3219, 0.0
        %v3236 = vpack.c.bf16 %v3221, %v3220
        %v3237 = vpack.c.bf16 %v3223, %v3222
        %v3238 = vpack.c.bf16 %v3225, %v3224
        %v3239 = vpack.c.bf16 %v3227, %v3226
        %v3240 = vpack.c.bf16 %v3229, %v3228
        %v3241 = vpack.c.bf16 %v3231, %v3230
        %v3242 = vpack.c.bf16 %v3233, %v3232
        %v3243 = vpack.c.bf16 %v3235, %v3234
        %v3244 = vld [vmem:[#allocation11] sm:$0xf]
        %v3245 = vld [vmem:[#allocation11 + $0x4] sm:$0xf]
        %v3246 = vld [vmem:[#allocation11 + $0x8] sm:$0xf]
        %v3247 = vld [vmem:[#allocation11 + $0xc] sm:$0xf]
        %v3248 = vld [vmem:[#allocation11 + $0x10] sm:$0xf]
        %v3249 = vld [vmem:[#allocation11 + $0x14] sm:$0xf]
        %v3250 = vld [vmem:[#allocation11 + $0x18] sm:$0xf]
        %v3251 = vld [vmem:[#allocation11 + $0x1c] sm:$0xf]
        %v3252 = vld [vmem:[#allocation11 + $0x20] sm:$0xf]
        %v3253 = vld [vmem:[#allocation11 + $0x24] sm:$0xf]
        %v3254 = vld [vmem:[#allocation11 + $0x28] sm:$0xf]
        %v3255 = vld [vmem:[#allocation11 + $0x2c] sm:$0xf]
        %v3256 = vld [vmem:[#allocation11 + $0x30] sm:$0xf]
        %v3257 = vld [vmem:[#allocation11 + $0x34] sm:$0xf]
        %v3258 = vld [vmem:[#allocation11 + $0x38] sm:$0xf]
        %v3259 = vld [vmem:[#allocation11 + $0x3c] sm:$0xf]
        %v3260 = vld [vmem:[%s8] sm:$0x1]
        %v3262 = vlaneseq
        %v3263 = vshrl.u32 %v3262, 7
        %v3264 = vsub.s32 0, %v3263
        %v3265 = vrot.slane %v3260, %v3264
        %v3283 = vunpack.c.l.b16 %v3244
        %v3284 = vunpack.c.l.b16 %v3245
        %v3285 = vunpack.c.l.b16 %v3246
        %v3286 = vunpack.c.l.b16 %v3247
        %v3287 = vunpack.c.l.b16 %v3248
        %v3288 = vunpack.c.l.b16 %v3249
        %v3289 = vunpack.c.l.b16 %v3250
        %v3290 = vunpack.c.l.b16 %v3251
        %v3291 = vunpack.c.l.b16 %v3252
        %v3292 = vunpack.c.l.b16 %v3253
        %v3293 = vunpack.c.l.b16 %v3254
        %v3294 = vunpack.c.l.b16 %v3255
        %v3295 = vunpack.c.l.b16 %v3256
        %v3296 = vunpack.c.l.b16 %v3257
        %v3297 = vunpack.c.l.b16 %v3258
        %v3298 = vunpack.c.l.b16 %v3259
        %v3299 = vpack.c.b16 %v3284, %v3283
        %v3300 = vpack.c.b16 %v3286, %v3285
        %v3301 = vpack.c.b16 %v3288, %v3287
        %v3302 = vpack.c.b16 %v3290, %v3289
        %v3303 = vpack.c.b16 %v3292, %v3291
        %v3304 = vpack.c.b16 %v3294, %v3293
        %v3305 = vpack.c.b16 %v3296, %v3295
        %v3306 = vpack.c.b16 %v3298, %v3297
        %3315 = vmatprep.subr.bf16.mxu0 0
        %3316 = vmatpush1.bf16.msra.mxu0 %v3306
        %3317 = vmatprep.subr.bf16.mxu0 0
        %3318 = vmatpush1.bf16.msra.mxu0 %v3305
        %3319 = vmatprep.subr.bf16.mxu0 0
        %3320 = vmatpush1.bf16.msra.mxu0 %v3304
        %3321 = vmatprep.subr.bf16.mxu0 0
        %3322 = vmatpush1.bf16.msra.mxu0 %v3303
        %3323 = vmatprep.subr.bf16.mxu0 0
        %3324 = vmatpush1.bf16.msra.mxu0 %v3302
        %3325 = vmatprep.subr.bf16.mxu0 0
        %3326 = vmatpush1.bf16.msra.mxu0 %v3301
        %3327 = vmatprep.subr.bf16.mxu0 0
        %3328 = vmatpush1.bf16.msra.mxu0 %v3300
        %3329 = vmatprep.subr.bf16.mxu0 0
        %3330 = vmatpush1.bf16.msra.mxu0 %v3299
        %3331 = vmatprep.subr.bf16.mxu0 0
        %3332 = vmatpush2.bf16.msra.mxu0 0
        %3333 = vmatprep.subr.bf16.mxu0 0
        %3334 = vmatpush2.bf16.msra.mxu0 0
        %3335 = vmatprep.subr.bf16.mxu0 0
        %3336 = vmatpush2.bf16.msra.mxu0 0
        %3337 = vmatprep.subr.bf16.mxu0 0
        %3338 = vmatpush2.bf16.msra.mxu0 0
        %3339 = vmatprep.subr.bf16.mxu0 0
        %3340 = vmatpush2.bf16.msra.mxu0 0
        %3341 = vmatprep.subr.bf16.mxu0 0
        %3342 = vmatpush2.bf16.msra.mxu0 0
        %3343 = vmatprep.subr.bf16.mxu0 0
        %3344 = vmatpush2.bf16.msra.mxu0 0
        %3345 = vmatprep.subr.bf16.mxu0 0
        %3346 = vmatpush2.bf16.msra.mxu0 0
        %3347 = vmatprep.mubr.bf16.mxu0 0
        %3348 = vmatmul.mubr.bf16.gmra.mxu0 %v513
        %v3349 = vpop.f32.mrf.mxu0
        %v3350 = vadd.f32 %v3265, %v3349
        %v3351 = vpop.f32.mrf.mxu0
        %v3352 = vpop.f32.mrf.mxu0
        %v3353 = vadd.f32 %v3265, %v3352
        %v3354 = vpop.f32.mrf.mxu0
        %3355 = vmatprep.mubr.bf16.mxu0 0
        %3356 = vmatmul.mubr.bf16.gmra.mxu0 %v514
        %v3357 = vpop.f32.mrf.mxu0
        %v3358 = vadd.f32 %v3265, %v3357
        %v3359 = vpop.f32.mrf.mxu0
        %v3360 = vpop.f32.mrf.mxu0
        %v3361 = vadd.f32 %v3265, %v3360
        %v3362 = vpop.f32.mrf.mxu0
        %3363 = vmatprep.mubr.bf16.mxu0 0
        %3364 = vmatmul.mubr.bf16.gmra.mxu0 %v515
        %v3365 = vpop.f32.mrf.mxu0
        %v3366 = vadd.f32 %v3265, %v3365
        %v3367 = vpop.f32.mrf.mxu0
        %v3368 = vpop.f32.mrf.mxu0
        %v3369 = vadd.f32 %v3265, %v3368
        %v3370 = vpop.f32.mrf.mxu0
        %3371 = vmatprep.mubr.bf16.mxu0 0
        %3372 = vmatmul.mubr.bf16.gmra.mxu0 %v516
        %v3373 = vpop.f32.mrf.mxu0
        %v3374 = vadd.f32 %v3265, %v3373
        %v3375 = vpop.f32.mrf.mxu0
        %v3376 = vpop.f32.mrf.mxu0
        %v3377 = vadd.f32 %v3265, %v3376
        %v3378 = vpop.f32.mrf.mxu0
        %3379 = vmatprep.mubr.bf16.mxu0 0
        %3380 = vmatmul.mubr.bf16.gmra.mxu0 %v517
        %v3381 = vpop.f32.mrf.mxu0
        %v3382 = vadd.f32 %v3265, %v3381
        %v3383 = vpop.f32.mrf.mxu0
        %v3384 = vpop.f32.mrf.mxu0
        %v3385 = vadd.f32 %v3265, %v3384
        %v3386 = vpop.f32.mrf.mxu0
        %3387 = vmatprep.mubr.bf16.mxu0 0
        %3388 = vmatmul.mubr.bf16.gmra.mxu0 %v518
        %v3389 = vpop.f32.mrf.mxu0
        %v3390 = vadd.f32 %v3265, %v3389
        %v3391 = vpop.f32.mrf.mxu0
        %v3392 = vpop.f32.mrf.mxu0
        %v3393 = vadd.f32 %v3265, %v3392
        %v3394 = vpop.f32.mrf.mxu0
        %3395 = vmatprep.mubr.bf16.mxu0 0
        %3396 = vmatmul.mubr.bf16.gmra.mxu0 %v519
        %v3397 = vpop.f32.mrf.mxu0
        %v3398 = vadd.f32 %v3265, %v3397
        %v3399 = vpop.f32.mrf.mxu0
        %v3400 = vpop.f32.mrf.mxu0
        %v3401 = vadd.f32 %v3265, %v3400
        %v3402 = vpop.f32.mrf.mxu0
        %3403 = vmatprep.mubr.bf16.mxu0 0
        %3404 = vmatmul.mubr.bf16.gmra.mxu0 %v520
        %v3405 = vpop.f32.mrf.mxu0
        %v3406 = vadd.f32 %v3265, %v3405
        %v3407 = vpop.f32.mrf.mxu0
        %v3408 = vpop.f32.mrf.mxu0
        %v3409 = vadd.f32 %v3265, %v3408
        %v3410 = vpop.f32.mrf.mxu0
        %3411 = vdwg.mxu0
        %v3412 = vld [vmem:[#allocation9] sm:$0xf]
        %v3413 = vld [vmem:[#allocation9 + $0x4] sm:$0xf]
        %v3414 = vld [vmem:[#allocation9 + $0x8] sm:$0xf]
        %v3415 = vld [vmem:[#allocation9 + $0xc] sm:$0xf]
        %v3416 = vld [vmem:[#allocation9 + $0x10] sm:$0xf]
        %v3417 = vld [vmem:[#allocation9 + $0x14] sm:$0xf]
        %v3418 = vld [vmem:[#allocation9 + $0x18] sm:$0xf]
        %v3419 = vld [vmem:[#allocation9 + $0x1c] sm:$0xf]
        %v3420 = vld [vmem:[#allocation9 + $0x20] sm:$0xf]
        %v3421 = vld [vmem:[#allocation9 + $0x24] sm:$0xf]
        %v3422 = vld [vmem:[#allocation9 + $0x28] sm:$0xf]
        %v3423 = vld [vmem:[#allocation9 + $0x2c] sm:$0xf]
        %v3424 = vld [vmem:[#allocation9 + $0x30] sm:$0xf]
        %v3425 = vld [vmem:[#allocation9 + $0x34] sm:$0xf]
        %v3426 = vld [vmem:[#allocation9 + $0x38] sm:$0xf]
        %v3427 = vld [vmem:[#allocation9 + $0x3c] sm:$0xf]
        %v3428 = vld [vmem:[%s6] sm:$0x1]
        %v3430 = vlaneseq
        %v3431 = vshrl.u32 %v3430, 7
        %v3432 = vsub.s32 0, %v3431
        %v3433 = vrot.slane %v3428, %v3432
        %v3451 = vunpack.c.l.b16 %v3412
        %v3452 = vunpack.c.l.b16 %v3413
        %v3453 = vunpack.c.l.b16 %v3414
        %v3454 = vunpack.c.l.b16 %v3415
        %v3455 = vunpack.c.l.b16 %v3416
        %v3456 = vunpack.c.l.b16 %v3417
        %v3457 = vunpack.c.l.b16 %v3418
        %v3458 = vunpack.c.l.b16 %v3419
        %v3459 = vunpack.c.l.b16 %v3420
        %v3460 = vunpack.c.l.b16 %v3421
        %v3461 = vunpack.c.l.b16 %v3422
        %v3462 = vunpack.c.l.b16 %v3423
        %v3463 = vunpack.c.l.b16 %v3424
        %v3464 = vunpack.c.l.b16 %v3425
        %v3465 = vunpack.c.l.b16 %v3426
        %v3466 = vunpack.c.l.b16 %v3427
        %v3467 = vpack.c.b16 %v3452, %v3451
        %v3468 = vpack.c.b16 %v3454, %v3453
        %v3469 = vpack.c.b16 %v3456, %v3455
        %v3470 = vpack.c.b16 %v3458, %v3457
        %v3471 = vpack.c.b16 %v3460, %v3459
        %v3472 = vpack.c.b16 %v3462, %v3461
        %v3473 = vpack.c.b16 %v3464, %v3463
        %v3474 = vpack.c.b16 %v3466, %v3465
        %3483 = vmatprep.subr.bf16.mxu0 0
        %3484 = vmatpush1.bf16.msra.mxu0 %v3474
        %3485 = vmatprep.subr.bf16.mxu0 0
        %3486 = vmatpush1.bf16.msra.mxu0 %v3473
        %3487 = vmatprep.subr.bf16.mxu0 0
        %3488 = vmatpush1.bf16.msra.mxu0 %v3472
        %3489 = vmatprep.subr.bf16.mxu0 0
        %3490 = vmatpush1.bf16.msra.mxu0 %v3471
        %3491 = vmatprep.subr.bf16.mxu0 0
        %3492 = vmatpush1.bf16.msra.mxu0 %v3470
        %3493 = vmatprep.subr.bf16.mxu0 0
        %3494 = vmatpush1.bf16.msra.mxu0 %v3469
        %3495 = vmatprep.subr.bf16.mxu0 0
        %3496 = vmatpush1.bf16.msra.mxu0 %v3468
        %3497 = vmatprep.subr.bf16.mxu0 0
        %3498 = vmatpush1.bf16.msra.mxu0 %v3467
        %3499 = vmatprep.subr.bf16.mxu0 0
        %3500 = vmatpush2.bf16.msra.mxu0 0
        %3501 = vmatprep.subr.bf16.mxu0 0
        %3502 = vmatpush2.bf16.msra.mxu0 0
        %3503 = vmatprep.subr.bf16.mxu0 0
        %3504 = vmatpush2.bf16.msra.mxu0 0
        %3505 = vmatprep.subr.bf16.mxu0 0
        %3506 = vmatpush2.bf16.msra.mxu0 0
        %3507 = vmatprep.subr.bf16.mxu0 0
        %3508 = vmatpush2.bf16.msra.mxu0 0
        %3509 = vmatprep.subr.bf16.mxu0 0
        %3510 = vmatpush2.bf16.msra.mxu0 0
        %3511 = vmatprep.subr.bf16.mxu0 0
        %3512 = vmatpush2.bf16.msra.mxu0 0
        %3513 = vmatprep.subr.bf16.mxu0 0
        %3514 = vmatpush2.bf16.msra.mxu0 0
        %3515 = vmatprep.mubr.bf16.mxu0 0
        %3516 = vmatmul.mubr.bf16.gmra.mxu0 %v3236
        %v3517 = vpop.f32.mrf.mxu0
        %v3518 = vadd.f32 %v3433, %v3517
        %v3519 = vpop.f32.mrf.mxu0
        %v3520 = vpop.f32.mrf.mxu0
        %v3521 = vadd.f32 %v3433, %v3520
        %v3522 = vpop.f32.mrf.mxu0
        %3523 = vmatprep.mubr.bf16.mxu0 0
        %3524 = vmatmul.mubr.bf16.gmra.mxu0 %v3237
        %v3525 = vpop.f32.mrf.mxu0
        %v3526 = vadd.f32 %v3433, %v3525
        %v3527 = vpop.f32.mrf.mxu0
        %v3528 = vpop.f32.mrf.mxu0
        %v3529 = vadd.f32 %v3433, %v3528
        %v3530 = vpop.f32.mrf.mxu0
        %3531 = vmatprep.mubr.bf16.mxu0 0
        %3532 = vmatmul.mubr.bf16.gmra.mxu0 %v3238
        %v3533 = vpop.f32.mrf.mxu0
        %v3534 = vadd.f32 %v3433, %v3533
        %v3535 = vpop.f32.mrf.mxu0
        %v3536 = vpop.f32.mrf.mxu0
        %v3537 = vadd.f32 %v3433, %v3536
        %v3538 = vpop.f32.mrf.mxu0
        %3539 = vmatprep.mubr.bf16.mxu0 0
        %3540 = vmatmul.mubr.bf16.gmra.mxu0 %v3239
        %v3541 = vpop.f32.mrf.mxu0
        %v3542 = vadd.f32 %v3433, %v3541
        %v3543 = vpop.f32.mrf.mxu0
        %v3544 = vpop.f32.mrf.mxu0
        %v3545 = vadd.f32 %v3433, %v3544
        %v3546 = vpop.f32.mrf.mxu0
        %3547 = vmatprep.mubr.bf16.mxu0 0
        %3548 = vmatmul.mubr.bf16.gmra.mxu0 %v3240
        %v3549 = vpop.f32.mrf.mxu0
        %v3550 = vadd.f32 %v3433, %v3549
        %v3551 = vpop.f32.mrf.mxu0
        %v3552 = vpop.f32.mrf.mxu0
        %v3553 = vadd.f32 %v3433, %v3552
        %v3554 = vpop.f32.mrf.mxu0
        %3555 = vmatprep.mubr.bf16.mxu0 0
        %3556 = vmatmul.mubr.bf16.gmra.mxu0 %v3241
        %v3557 = vpop.f32.mrf.mxu0
        %v3558 = vadd.f32 %v3433, %v3557
        %v3559 = vpop.f32.mrf.mxu0
        %v3560 = vpop.f32.mrf.mxu0
        %v3561 = vadd.f32 %v3433, %v3560
        %v3562 = vpop.f32.mrf.mxu0
        %3563 = vmatprep.mubr.bf16.mxu0 0
        %3564 = vmatmul.mubr.bf16.gmra.mxu0 %v3242
        %v3565 = vpop.f32.mrf.mxu0
        %v3566 = vadd.f32 %v3433, %v3565
        %v3567 = vpop.f32.mrf.mxu0
        %v3568 = vpop.f32.mrf.mxu0
        %v3569 = vadd.f32 %v3433, %v3568
        %v3570 = vpop.f32.mrf.mxu0
        %3571 = vmatprep.mubr.bf16.mxu0 0
        %3572 = vmatmul.mubr.bf16.gmra.mxu0 %v3243
        %v3573 = vpop.f32.mrf.mxu0
        %v3574 = vadd.f32 %v3433, %v3573
        %v3575 = vpop.f32.mrf.mxu0
        %v3576 = vpop.f32.mrf.mxu0
        %v3577 = vadd.f32 %v3433, %v3576
        %v3578 = vpop.f32.mrf.mxu0
        %3579 = vdwg.mxu0
        %v3580 = vadd.f32 %v3518, %v3350
        %v3581 = vadd.f32 %v3521, %v3353
        %v3582 = vadd.f32 %v3526, %v3358
        %v3583 = vadd.f32 %v3529, %v3361
        %v3584 = vadd.f32 %v3534, %v3366
        %v3585 = vadd.f32 %v3537, %v3369
        %v3586 = vadd.f32 %v3542, %v3374
        %v3587 = vadd.f32 %v3545, %v3377
        %v3588 = vadd.f32 %v3550, %v3382
        %v3589 = vadd.f32 %v3553, %v3385
        %v3590 = vadd.f32 %v3558, %v3390
        %v3591 = vadd.f32 %v3561, %v3393
        %v3592 = vadd.f32 %v3566, %v3398
        %v3593 = vadd.f32 %v3569, %v3401
        %v3594 = vadd.f32 %v3574, %v3406
        %v3595 = vadd.f32 %v3577, %v3409
        %v3596 = vmax.f32 %v3580, 0.0
        %v3597 = vmax.f32 %v3581, 0.0
        %v3598 = vmax.f32 %v3582, 0.0
        %v3599 = vmax.f32 %v3583, 0.0
        %v3600 = vmax.f32 %v3584, 0.0
        %v3601 = vmax.f32 %v3585, 0.0
        %v3602 = vmax.f32 %v3586, 0.0
        %v3603 = vmax.f32 %v3587, 0.0
        %v3604 = vmax.f32 %v3588, 0.0
        %v3605 = vmax.f32 %v3589, 0.0
        %v3606 = vmax.f32 %v3590, 0.0
        %v3607 = vmax.f32 %v3591, 0.0
        %v3608 = vmax.f32 %v3592, 0.0
        %v3609 = vmax.f32 %v3593, 0.0
        %v3610 = vmax.f32 %v3594, 0.0
        %v3611 = vmax.f32 %v3595, 0.0
        %v3612 = vpack.c.bf16 %v3597, %v3596
        %v3613 = vpack.c.bf16 %v3599, %v3598
        %v3614 = vpack.c.bf16 %v3601, %v3600
        %v3615 = vpack.c.bf16 %v3603, %v3602
        %v3616 = vpack.c.bf16 %v3605, %v3604
        %v3617 = vpack.c.bf16 %v3607, %v3606
        %v3618 = vpack.c.bf16 %v3609, %v3608
        %v3619 = vpack.c.bf16 %v3611, %v3610
        %v3628 = vunpack.c.l.b16 %v3612
        %v3629 = vunpack.c.h.b16 %v3612
        %v3630 = vunpack.c.l.b16 %v3613
        %v3631 = vunpack.c.h.b16 %v3613
        %v3632 = vunpack.c.l.b16 %v3614
        %v3633 = vunpack.c.h.b16 %v3614
        %v3634 = vunpack.c.l.b16 %v3615
        %v3635 = vunpack.c.h.b16 %v3615
        %v3636 = vunpack.c.l.b16 %v3616
        %v3637 = vunpack.c.h.b16 %v3616
        %v3638 = vunpack.c.l.b16 %v3617
        %v3639 = vunpack.c.h.b16 %v3617
        %v3640 = vunpack.c.l.b16 %v3618
        %v3641 = vunpack.c.h.b16 %v3618
        %v3642 = vunpack.c.l.b16 %v3619
        %v3643 = vunpack.c.h.b16 %v3619
        %v3644 = vpack.c.b16 %v3628, %v3628
        %v3645 = vpack.c.b16 %v3629, %v3629
        %v3646 = vpack.c.b16 %v3630, %v3630
        %v3647 = vpack.c.b16 %v3631, %v3631
        %v3648 = vpack.c.b16 %v3632, %v3632
        %v3649 = vpack.c.b16 %v3633, %v3633
        %v3650 = vpack.c.b16 %v3634, %v3634
        %v3651 = vpack.c.b16 %v3635, %v3635
        %v3652 = vpack.c.b16 %v3636, %v3636
        %v3653 = vpack.c.b16 %v3637, %v3637
        %v3654 = vpack.c.b16 %v3638, %v3638
        %v3655 = vpack.c.b16 %v3639, %v3639
        %v3656 = vpack.c.b16 %v3640, %v3640
        %v3657 = vpack.c.b16 %v3641, %v3641
        %v3658 = vpack.c.b16 %v3642, %v3642
        %v3659 = vpack.c.b16 %v3643, %v3643
        %3676 = vst [vmem:[%s426] sm:$0xf] %v3644
        %3677 = vst [vmem:[%s426 + $0x4] sm:$0xf] %v3645
        %3678 = vst [vmem:[%s426 + $0x8] sm:$0xf] %v3646
        %3679 = vst [vmem:[%s426 + $0xc] sm:$0xf] %v3647
        %3680 = vst [vmem:[%s426 + $0x10] sm:$0xf] %v3648
        %3681 = vst [vmem:[%s426 + $0x14] sm:$0xf] %v3649
        %3682 = vst [vmem:[%s426 + $0x18] sm:$0xf] %v3650
        %3683 = vst [vmem:[%s426 + $0x1c] sm:$0xf] %v3651
        %3684 = vst [vmem:[%s426 + $0x20] sm:$0xf] %v3652
        %3685 = vst [vmem:[%s426 + $0x24] sm:$0xf] %v3653
        %3686 = vst [vmem:[%s426 + $0x28] sm:$0xf] %v3654
        %3687 = vst [vmem:[%s426 + $0x2c] sm:$0xf] %v3655
        %3688 = vst [vmem:[%s426 + $0x30] sm:$0xf] %v3656
        %3689 = vst [vmem:[%s426 + $0x34] sm:$0xf] %v3657
        %3690 = vst [vmem:[%s426 + $0x38] sm:$0xf] %v3658
        %3691 = vst [vmem:[%s426 + $0x3c] sm:$0xf] %v3659
        %s3692 = sand.u32 %s246, 1
        %s3693 = scalar_lea.sflag [#allocation5], %s3692
        %s3694 = sand.u32 %s246, 1
        %s3695 = smul.addr %s3694, 64
        %s3696 = scalar_lea.vmem [#allocation12], %s3695
        // Predicated region
        $region77: #{tpu_custom_call.1} parent=55 // pred_check
          %p3697 = pneg %p256
        $region78: #{tpu_custom_call.1} parent=55 // pred_check_branch
          %3699 = sbr.rel (%p3697) target = $region80
        $region79: #{tpu_custom_call.1} parent=55 // pred_region
          %s3700 = smul.u32 8, %s33
          %s3702 = ssub.s32 1024, 1024
          %3703 = vsyncadd %s3693, %s3702
          %s3704 = smul.addr %s3700, 2
          %s3705 = smul.addr %s32, 32
          %s3706 = sadd.s32 %s3704, %s3705
          %s3707 = smul.addr %s3706, 64
          %s3708 = scalar_lea.hbm %s9, %s3707
          %s3709 = sshll.u32 %s3696, 4
          %s3710 = int_to_ptr.vmem [resolvable:$true] %s3709
          %3715 = dma.vmem_to_hbm [thread:$0]  %s3710, 1024, %s3708, %s3693, 64, 64, 4
        $region80: #{tpu_custom_call.1} parent=55 // pred_fallthru
          _
      $region56: #{tpu_custom_call.1} parent=5 // pred_fallthru
        _
      %p3716 = scmp.le.s32.totalorder 2, %s23
      // Predicated region
      $region81: #{tpu_custom_call.1} parent=5 // pred_check
        %p3717 = pneg %p3716
      $region82: #{tpu_custom_call.1} parent=5 // pred_check_branch
        %3719 = sbr.rel (%p3717) target = $region84
      $region83: #{tpu_custom_call.1} parent=5 // pred_region
        %s3720 = ssub.s32 %s23, 2
        // Predicated region
        $region85: #{tpu_custom_call.1} parent=83 // pred_check
          %p3721 = pneg %p262
        $region86: #{tpu_custom_call.1} parent=83 // pred_check_branch
          %3723 = sbr.rel (%p3721) target = $region88
        $region87: #{tpu_custom_call.1} parent=83 // pred_region
          %s3724 = sand.u32 %s247, 1
          %s3725 = scalar_lea.sflag [#allocation5], %s3724
          %s3726 = sand.u32 %s247, 1
          %s3727 = smul.addr %s3726, 64
          %s3728 = scalar_lea.vmem [#allocation12], %s3727
          %3729 = dma.done %s3725, 1024
        $region88: #{tpu_custom_call.1} parent=83 // pred_fallthru
          _
      $region84: #{tpu_custom_call.1} parent=5 // pred_fallthru
        _
    $region6: #{tpu_custom_call.1} parent=1 // loop_footer
      %s27 = sadd.s32 1, %s23
    $region7: #{tpu_custom_call.1} parent=1 // loop_footer_branch
      %22 = sbr.rel target = $region3
    $region8: #{tpu_custom_call.1} parent=1 // loop_exit
      _
    %3730 = vsyncpa [#allocation4], 1
    %s3731 = scalar_lea.sflag [#allocation4], 1
    %3732 = vsyncpa %s3731, 1
    %3733 = vsyncpa [#allocation7], 1
    %3734 = vsyncpa [#allocation10], 1
    %3735 = vsyncpa [#allocation5], 1
    %s3736 = scalar_lea.sflag [#allocation5], 1
    %3737 = vsyncpa %s3736, 1

</llo_original>
